<compile_context>
chip_gen: v6e
topology: v6e:2x2x1
jax: 0.10.0
libtpu: 0.0.40
codegen_flags: <defaults>
</compile_context>

<pallas_src>
import functools
import math

import jax
import jax.numpy as jnp
from jax.experimental import pallas as pl
from jax.experimental.pallas import tpu as pltpu

BN_EPS = 1e-5
LANE = 128


# ---------------------------------------------------------------------------
# Fused Pallas kernel: all GIN layers + BatchNorm + concat + global_add_pool
# ---------------------------------------------------------------------------
def _gconv_kernel(x_ref, a_ref, p_ref, w1_ref, w2_ref, misc_ref,
                  z_out_ref, g_out_ref,
                  z_cur, zpre, scl_ref, sft_ref, pool_ref,
                  *, tm, n_tiles, n_real, n_pad, h_pad):
    l = pl.program_id(0)       # layer index
    ph = pl.program_id(1)      # 0 = compute + stats + pool, 1 = normalize + writeback
    i = pl.program_id(2)       # row-tile index
    row0 = pl.multiple_of(i * tm, tm)

    # ---- one-time init (first grid step): layer-0 input becomes resident ---
    @pl.when(jnp.logical_and(l == 0, jnp.logical_and(ph == 0, i == 0)))
    def _():
        z_cur[...] = x_ref[...]                       # bf16

    # ======================= pass 0: compute + statistics ===================
    @pl.when(ph == 0)
    def _():
        # per-layer reset of BN partial stats and pool accumulator
        @pl.when(i == 0)
        def _():
            scl_ref[...] = jnp.zeros_like(scl_ref)    # reused: partial sum
            sft_ref[...] = jnp.zeros_like(sft_ref)    # reused: partial sum-of-squares
            pool_ref[...] = jnp.zeros_like(pool_ref)

        misc = misc_ref[0]                            # [4, h] f32: b1, b2, gamma, beta

        # GIN aggregation (self loop folded into A_hat) + MLP, bf16 MXU / f32 acc
        a_tile = a_ref[pl.ds(row0, tm), :]                            # [tm, N] bf16
        h = jnp.dot(a_tile, z_cur[...], preferred_element_type=jnp.float32)
        h = jnp.dot(h.astype(jnp.bfloat16), w1_ref[0],
                    preferred_element_type=jnp.float32) + misc[0:1, :]
        h = jnp.maximum(h, 0.0)
        h = jnp.dot(h.astype(jnp.bfloat16), w2_ref[0],
                    preferred_element_type=jnp.float32) + misc[1:2, :]
        zp = jnp.maximum(h, 0.0)                                      # post-conv ReLU
        zpre[pl.ds(row0, tm), :] = zp

        # global_add_pool partial — hidden under the big matmuls.
        # Padded columns of P are zero, so padded rows never contribute.
        pool_ref[...] += jnp.dot(p_ref[:, pl.ds(row0, tm)], zp,
                                 preferred_element_type=jnp.float32)

        # BatchNorm partial statistics (masking only emitted / run when needed)
        if n_real >= n_pad:
            scl_ref[...] += jnp.sum(zp, axis=0, keepdims=True)
            sft_ref[...] += jnp.sum(zp * zp, axis=0, keepdims=True)
        else:
            tile_full = (row0 + tm) <= n_real

            @pl.when(tile_full)
            def _():
                scl_ref[...] += jnp.sum(zp, axis=0, keepdims=True)
                sft_ref[...] += jnp.sum(zp * zp, axis=0, keepdims=True)

            @pl.when(jnp.logical_not(tile_full))
            def _():
                ridx = jax.lax.broadcasted_iota(jnp.int32, (tm, h_pad), 0) + row0
                zv = jnp.where(ridx < n_real, zp, 0.0)
                scl_ref[...] += jnp.sum(zv, axis=0, keepdims=True)
                sft_ref[...] += jnp.sum(zv * zv, axis=0, keepdims=True)

        # last row tile: turn stats into (scale, shift) and emit the pooled slab
        @pl.when(i == n_tiles - 1)
        def _():
            inv_n = 1.0 / n_real
            mean = scl_ref[...] * inv_n                                # [1, h]
            var = jnp.maximum(sft_ref[...] * inv_n - mean * mean, 0.0)  # biased var
            scale = jax.lax.rsqrt(var + BN_EPS) * misc[2:3, :]
            shift = misc[3:4, :] - mean * scale
            scl_ref[...] = scale                     # carried into pass 1
            sft_ref[...] = shift
            # P @ (zp*scale + shift) == (P @ zp) * scale + rowsum(P) * shift
            cnt = jnp.sum(p_ref[...], axis=1, keepdims=True)          # [g, 1]
            g_out_ref[...] = pool_ref[...] * scale + cnt * shift

    # ======================= pass 1: normalize + writeback ==================
    @pl.when(ph == 1)
    def _():
        zn = zpre[pl.ds(row0, tm), :] * scl_ref[...] + sft_ref[...]   # f32
        # lane-dense, 128-wide per-layer concat slab (unmasked stores)
        z_out_ref[pl.ds(row0, tm), :] = zn
        if n_real < n_pad:
            # keep padded rows of the next layer's input at zero
            ridx = jax.lax.broadcasted_iota(jnp.int32, (tm, h_pad), 0) + row0
            zn = jnp.where(ridx < n_real, zn, 0.0)
        # next layer's input stays resident in VMEM (bf16 for the MXU)
        z_cur[pl.ds(row0, tm), :] = zn.astype(jnp.bfloat16)


# ---------------------------------------------------------------------------
# Wrapper
# ---------------------------------------------------------------------------
def gconv_forward(x_pad, a_hat, p_pad, w1_s, w2_s, misc_s,
                  *, n_real, tm=256, single_buffer_resident=True):
    n_pad, c_pad = x_pad.shape
    num_layers, _, h_pad = w1_s.shape
    assert c_pad == h_pad, "pad input channels and hidden to the same width"
    tm = min(tm, n_pad)
    assert n_pad % tm == 0
    g_pad = p_pad.shape[0]
    n_tiles = n_pad // tm
    out_cols = h_pad * num_layers

    kernel = functools.partial(_gconv_kernel, tm=tm, n_tiles=n_tiles,
                               n_real=n_real, n_pad=n_pad, h_pad=h_pad)

    # Constant-index resident operands: single buffering (no point double
    # buffering something that never changes block index).
    resident_kw = dict(pipeline_mode=pl.Buffered(1)) if single_buffer_resident else {}

    in_specs = [
        pl.BlockSpec((n_pad, c_pad), lambda l, p, i: (0, 0), **resident_kw),   # x
        pl.BlockSpec((n_pad, n_pad), lambda l, p, i: (0, 0), **resident_kw),   # A_hat
        pl.BlockSpec((g_pad, n_pad), lambda l, p, i: (0, 0), **resident_kw),   # P
        pl.BlockSpec((1, c_pad, h_pad), lambda l, p, i: (l, 0, 0)),            # W1[l]
        pl.BlockSpec((1, h_pad, h_pad), lambda l, p, i: (l, 0, 0)),            # W2[l]
        pl.BlockSpec((1, 4, h_pad), lambda l, p, i: (l, 0, 0)),                # b1,b2,gamma,beta
    ]
    out_specs = [
        pl.BlockSpec((n_pad, h_pad), lambda l, p, i: (0, l)),   # per-layer concat slab
        pl.BlockSpec((g_pad, h_pad), lambda l, p, i: (0, l)),   # per-layer pooled slab
    ]
    scratch_shapes = [
        pltpu.VMEM((n_pad, c_pad), jnp.bfloat16),   # z_cur: current layer input
        pltpu.VMEM((n_pad, h_pad), jnp.float32),    # zpre: pre-BN activations (f32)
        pltpu.VMEM((1, h_pad), jnp.float32),        # BN partial sum -> scale
        pltpu.VMEM((1, h_pad), jnp.float32),        # BN partial sumsq -> shift
        pltpu.VMEM((g_pad, h_pad), jnp.float32),    # global_add_pool accumulator
    ]

    # --- size the VMEM limit from the actual resident footprint -------------
    def _nbytes(shape, dtype):
        return math.prod(shape) * jnp.dtype(dtype).itemsize

    res_bufs = 1 if single_buffer_resident else 2
    resident = (
        res_bufs * (_nbytes((n_pad, c_pad), x_pad.dtype)
                    + _nbytes((n_pad, n_pad), a_hat.dtype)
                    + _nbytes((g_pad, n_pad), p_pad.dtype))
        + 2 * (_nbytes((1, c_pad, h_pad), w1_s.dtype)
               + _nbytes((1, h_pad, h_pad), w2_s.dtype)
               + _nbytes((1, 4, h_pad), misc_s.dtype)
               + _nbytes((n_pad, h_pad), jnp.float32)      # z_out block
               + _nbytes((g_pad, h_pad), jnp.float32))     # g_out block
        + _nbytes((n_pad, c_pad), jnp.bfloat16)            # z_cur
        + _nbytes((n_pad, h_pad), jnp.float32)             # zpre
        + 2 * _nbytes((8, h_pad), jnp.float32)             # scale / shift (padded)
        + _nbytes((max(g_pad, 8), h_pad), jnp.float32))    # pool
    cap = 128 * 1024 * 1024
    try:  # per-generation capacity (e.g. 64 MiB on v7x, 128 MiB on v5e/v6e)
        info_cap = getattr(pltpu.get_tpu_info(), "vmem_capacity_bytes", None)
        if info_cap:
            cap = int(info_cap)
    except Exception:
        pass
    vmem_limit = min(int(0.85 * cap), max(resident + (32 << 20), 48 << 20))

    grid_spec = pltpu.PrefetchScalarGridSpec(
        num_scalar_prefetch=0,
        grid=(num_layers, 2, n_tiles),
        in_specs=in_specs,
        out_specs=out_specs,
        scratch_shapes=scratch_shapes,
    )

    return pl.pallas_call(
        kernel,
        out_shape=(jax.ShapeDtypeStruct((n_pad, out_cols), jnp.float32),
                   jax.ShapeDtypeStruct((g_pad, out_cols), jnp.float32)),
        grid_spec=grid_spec,
        compiler_params=pltpu.CompilerParams(
            dimension_semantics=("arbitrary", "arbitrary", "arbitrary"),
            vmem_limit_bytes=vmem_limit),
    )(x_pad, a_hat, p_pad, w1_s, w2_s, misc_s)


# ---------------------------------------------------------------------------
# Pure-JAX reference mirroring the kernel's bf16-input / f32-accumulate matmuls
# ---------------------------------------------------------------------------
def gconv_reference(x, a_hat, p, params):
    def mm(a, b):
        return jnp.dot(a.astype(jnp.bfloat16), b.astype(jnp.bfloat16),
                       preferred_element_type=jnp.float32)

    z = x
    zs = []
    for lp in params:
        h = mm(a_hat, z)                                   # GIN aggregation (+self)
        h = jnp.maximum(mm(h, lp["w1"]) + lp["b1"], 0.0)
        h = mm(h, lp["w2"]) + lp["b2"]
        z2 = jnp.maximum(h, 0.0)
        mean = jnp.mean(z2, axis=0, keepdims=True)
        var = jnp.mean(jnp.square(z2 - mean), axis=0, keepdims=True)
        z = (z2 - mean) * jax.lax.rsqrt(var + BN_EPS) * lp["gamma"] + lp["beta"]
        zs.append(z)
    z_cat = jnp.concatenate(zs, axis=1)
    g_cat = jnp.dot(p, z_cat, precision=jax.lax.Precision.HIGHEST)
    return z_cat, g_cat


# ---------------------------------------------------------------------------
# Main
# ---------------------------------------------------------------------------
if __name__ == "__main__":
    key = jax.random.PRNGKey(0)

    # small shapes consistent with the module
    N = 512              # nodes (multiple of the row tile)
    INPUT_DIM = 32
    HIDDEN = 128         # one full lane width -> unmasked stores, full MXU lanes
    NUM_LAYERS = 2
    NUM_GRAPHS = 4
    E = 2048             # edges
    TM = 256             # fills the 256x256 MXU M dim on v6e/v7x (use 128 on v5e)
    G_PAD = 8            # sublane-pad the graph axis
    C_PAD = H_PAD = HIDDEN

    k_x, k_e0, k_e1, *k_params = jax.random.split(key, 3 + NUM_LAYERS)

    # node features, edge_index, batch assignment
    x = jax.random.normal(k_x, (N, INPUT_DIM), jnp.float32)
    src = jax.random.randint(k_e0, (E,), 0, N)
    dst = jax.random.randint(k_e1, (E,), 0, N)
    batch = jnp.repeat(jnp.arange(NUM_GRAPHS, dtype=jnp.int32), N // NUM_GRAPHS)

    # glue: dense adjacency with the GIN self connection folded in (A_hat = A + I)
    a = jnp.zeros((N, N), jnp.float32).at[dst, src].add(1.0)
    a_hat = a + jnp.eye(N, dtype=jnp.float32)
    # one-hot pooling matrix P[graph, node]
    p = (batch[None, :] == jnp.arange(NUM_GRAPHS, dtype=jnp.int32)[:, None]
         ).astype(jnp.float32)

    # parameters (PyTorch nn.Linear is [out,in]; stored transposed as [in,out])
    params = []
    for li in range(NUM_LAYERS):
        din = INPUT_DIM if li == 0 else HIDDEN
        kw1, kb1, kw2, kb2 = jax.random.split(k_params[li], 4)
        params.append(dict(
            w1=jax.random.normal(kw1, (din, HIDDEN), jnp.float32) * 0.1,
            b1=jax.random.normal(kb1, (HIDDEN,), jnp.float32) * 0.1,
            w2=jax.random.normal(kw2, (HIDDEN, HIDDEN), jnp.float32) * 0.1,
            b2=jax.random.normal(kb2, (HIDDEN,), jnp.float32) * 0.1,
            gamma=jnp.ones((HIDDEN,), jnp.float32),    # BatchNorm1d weight init
            beta=jnp.zeros((HIDDEN,), jnp.float32),    # BatchNorm1d bias init
        ))

    # ---- pad / stack parameters for the fused kernel (channels -> 128 lanes)
    w1_s = jnp.stack([
        jnp.zeros((C_PAD, H_PAD), jnp.float32).at[:lp["w1"].shape[0], :].set(lp["w1"])
        for lp in params]).astype(jnp.bfloat16)
    w2_s = jnp.stack([lp["w2"] for lp in params]).astype(jnp.bfloat16)
    # merged per-layer vectors: [num_layers, 4, H] = (b1, b2, gamma, beta)
    misc_s = jnp.stack([jnp.stack([lp["b1"], lp["b2"], lp["gamma"], lp["beta"]])
                        for lp in params])

    x_pad = jnp.zeros((N, C_PAD), jnp.float32).at[:, :INPUT_DIM].set(x)
    x_pad = x_pad.astype(jnp.bfloat16)
    a_hat_bf16 = a_hat.astype(jnp.bfloat16)
    p_pad = jnp.zeros((G_PAD, N), jnp.float32).at[:NUM_GRAPHS, :].set(p)

    # ---- run fused kernel (fall back to double-buffered resident operands
    #      if pipeline_mode=pl.Buffered(1) is rejected by this jax build) ----
    fwd = functools.partial(gconv_forward, n_real=N, tm=TM)
    try:
        z_out, g_out = fwd(x_pad, a_hat_bf16, p_pad, w1_s, w2_s, misc_s,
                           single_buffer_resident=True)
        jax.block_until_ready((z_out, g_out))
    except Exception:
        z_out, g_out = fwd(x_pad, a_hat_bf16, p_pad, w1_s, w2_s, misc_s,
                           single_buffer_resident=False)
        jax.block_until_ready((z_out, g_out))

    z_out = z_out[:N]
    g_out = g_out[:NUM_GRAPHS]

    # ---- correctness check (tolerance loosened for bf16 MXU inputs) ----
    z_ref, g_ref = gconv_reference(x, a_hat, p, params)
    assert z_out.shape == (N, HIDDEN * NUM_LAYERS)
    assert g_out.shape == (NUM_GRAPHS, HIDDEN * NUM_LAYERS)
    assert jnp.allclose(z_out, z_ref, atol=2e-2, rtol=2e-2), \
        float(jnp.max(jnp.abs(z_out - z_ref)))
    assert jnp.allclose(g_out, g_ref, atol=2e-2, rtol=2e-2), \
        float(jnp.max(jnp.abs(g_out - g_ref)))

    print("KERNEL_OK")
</pallas_src>

<mosaic_0001>
module attributes {stable_mosaic.version = 11 : i64} {
  func.func @_gconv_kernel(%arg0: i32, %arg1: i32, %arg2: i32, %arg3: memref<512x128xbf16, #tpu.memory_space<vmem>>, %arg4: memref<512x512xbf16, #tpu.memory_space<vmem>>, %arg5: memref<8x512xf32, #tpu.memory_space<vmem>>, %arg6: memref<1x128x128xbf16, #tpu.memory_space<vmem>>, %arg7: memref<1x128x128xbf16, #tpu.memory_space<vmem>>, %arg8: memref<1x4x128xf32, #tpu.memory_space<vmem>>, %arg9: memref<512x128xf32, #tpu.memory_space<vmem>>, %arg10: memref<8x128xf32, #tpu.memory_space<vmem>>, %arg11: memref<512x128xbf16, #tpu.memory_space<vmem>>, %arg12: memref<512x128xf32, #tpu.memory_space<vmem>>, %arg13: memref<1x128xf32, #tpu.memory_space<vmem>>, %arg14: memref<1x128xf32, #tpu.memory_space<vmem>>, %arg15: memref<8x128xf32, #tpu.memory_space<vmem>>) attributes {dimension_semantics = [#tpu.dimension_semantics<arbitrary>, #tpu.dimension_semantics<arbitrary>, #tpu.dimension_semantics<arbitrary>], iteration_bounds = array<i64: 2, 2, 2>, scalar_prefetch = 0 : i64, scratch_operands = 5 : i64, tpu.core_type = #tpu.core_type<tc>, window_params = [{pipeline_mode = #tpu.pipeline_mode<synchronous>, transform_indices = @transform_0, window_bounds = array<i64: 512, 128>}, {pipeline_mode = #tpu.pipeline_mode<synchronous>, transform_indices = @transform_1, window_bounds = array<i64: 512, 512>}, {pipeline_mode = #tpu.pipeline_mode<synchronous>, transform_indices = @transform_2, window_bounds = array<i64: 8, 512>}, {transform_indices = @transform_3, window_bounds = array<i64: 1, 128, 128>}, {transform_indices = @transform_4, window_bounds = array<i64: 1, 128, 128>}, {transform_indices = @transform_5, window_bounds = array<i64: 1, 4, 128>}, {transform_indices = @transform_6, window_bounds = array<i64: 512, 128>}, {transform_indices = @transform_7, window_bounds = array<i64: 8, 128>}]} {
    %c256_i32 = arith.constant 256 : i32
    %0 = arith.muli %arg2, %c256_i32 : i32
    %1 = tpu.assume_multiple %0, 256 : i32
    %c0_i32 = arith.constant 0 : i32
    %2 = arith.cmpi eq, %arg0, %c0_i32 : i32
    %c0_i32_0 = arith.constant 0 : i32
    %3 = arith.cmpi eq, %arg1, %c0_i32_0 : i32
    %c0_i32_1 = arith.constant 0 : i32
    %4 = arith.cmpi eq, %arg2, %c0_i32_1 : i32
    %5 = arith.andi %3, %4 : i1
    %6 = arith.andi %2, %5 : i1
    %7 = arith.extui %6 : i1 to i32
    %c0_i32_2 = arith.constant 0 : i32
    %8 = arith.cmpi ne, %7, %c0_i32_2 : i32
    scf.if %8 {
      %c0 = arith.constant 0 : index
      %c0_6 = arith.constant 0 : index
      %15 = vector.load %arg3[%c0, %c0_6] : memref<512x128xbf16, #tpu.memory_space<vmem>>, vector<512x128xbf16>
      %c0_7 = arith.constant 0 : index
      %c0_8 = arith.constant 0 : index
      %16 = vector.load %arg11[%c0_7, %c0_8] : memref<512x128xbf16, #tpu.memory_space<vmem>>, vector<512x128xbf16>
      tpu.vector_store %arg11[%c0_7, %c0_8], %15 {strides = array<i32>} : memref<512x128xbf16, #tpu.memory_space<vmem>>, vector<512x128xbf16>,
    } else {
    }
    %c0_i32_3 = arith.constant 0 : i32
    %9 = arith.cmpi eq, %arg1, %c0_i32_3 : i32
    %10 = arith.extui %9 : i1 to i32
    %c0_i32_4 = arith.constant 0 : i32
    %11 = arith.cmpi ne, %10, %c0_i32_4 : i32
    scf.if %11 {
      %c0_i32_6 = arith.constant 0 : i32
      %15 = arith.cmpi eq, %arg2, %c0_i32_6 : i32
      %16 = arith.extui %15 : i1 to i32
      %c0_i32_7 = arith.constant 0 : i32
      %17 = arith.cmpi ne, %16, %c0_i32_7 : i32
      scf.if %17 {
        %cst_42 = arith.constant 0.000000e+00 : f32
        %64 = vector.broadcast %cst_42 : f32 to vector<1x128xf32>
        %c0_43 = arith.constant 0 : index
        %c0_44 = arith.constant 0 : index
        %65 = vector.load %arg13[%c0_43, %c0_44] : memref<1x128xf32, #tpu.memory_space<vmem>>, vector<1x128xf32>
        tpu.vector_store %arg13[%c0_43, %c0_44], %64 {strides = array<i32>} : memref<1x128xf32, #tpu.memory_space<vmem>>, vector<1x128xf32>,
        %cst_45 = arith.constant 0.000000e+00 : f32
        %66 = vector.broadcast %cst_45 : f32 to vector<1x128xf32>
        %c0_46 = arith.constant 0 : index
        %c0_47 = arith.constant 0 : index
        %67 = vector.load %arg14[%c0_46, %c0_47] : memref<1x128xf32, #tpu.memory_space<vmem>>, vector<1x128xf32>
        tpu.vector_store %arg14[%c0_46, %c0_47], %66 {strides = array<i32>} : memref<1x128xf32, #tpu.memory_space<vmem>>, vector<1x128xf32>,
        %cst_48 = arith.constant 0.000000e+00 : f32
        %68 = vector.broadcast %cst_48 : f32 to vector<8x128xf32>
        %c0_49 = arith.constant 0 : index
        %c0_50 = arith.constant 0 : index
        %69 = vector.load %arg15[%c0_49, %c0_50] : memref<8x128xf32, #tpu.memory_space<vmem>>, vector<8x128xf32>
        tpu.vector_store %arg15[%c0_49, %c0_50], %68 {strides = array<i32>} : memref<8x128xf32, #tpu.memory_space<vmem>>, vector<8x128xf32>,
      } else {
      }
      %c0 = arith.constant 0 : index
      %c0_8 = arith.constant 0 : index
      %c0_9 = arith.constant 0 : index
      %18 = vector.load %arg8[%c0, %c0_8, %c0_9] : memref<1x4x128xf32, #tpu.memory_space<vmem>>, vector<1x4x128xf32>
      %19 = vector.shape_cast %18 : vector<1x4x128xf32> to vector<4x128xf32>
      %20 = arith.index_cast %1 : i32 to index
      %c0_10 = arith.constant 0 : index
      %21 = vector.load %arg4[%20, %c0_10] : memref<512x512xbf16, #tpu.memory_space<vmem>>, vector<256x512xbf16>
      %c0_11 = arith.constant 0 : index
      %c0_12 = arith.constant 0 : index
      %22 = vector.load %arg11[%c0_11, %c0_12] : memref<512x128xbf16, #tpu.memory_space<vmem>>, vector<512x128xbf16>
      %cst = arith.constant dense<0.000000e+00> : vector<256x128xf32>
      %23 = tpu.matmul %21, %22, %cst {dimension_numbers = #tpu.dot_dimension_numbers<[1], [0], [0], [1], [0, 0, 1, 1], [], []>} : vector<256x512xbf16>, vector<512x128xbf16>, vector<256x128xf32> -> vector<256x128xf32>
      %24 = arith.truncf %23 : vector<256x128xf32> to vector<256x128xbf16>
      %c0_13 = arith.constant 0 : index
      %c0_14 = arith.constant 0 : index
      %c0_15 = arith.constant 0 : index
      %25 = vector.load %arg6[%c0_13, %c0_14, %c0_15] : memref<1x128x128xbf16, #tpu.memory_space<vmem>>, vector<1x128x128xbf16>
      %26 = vector.shape_cast %25 : vector<1x128x128xbf16> to vector<128x128xbf16>
      %cst_16 = arith.constant dense<0.000000e+00> : vector<256x128xf32>
      %27 = tpu.matmul %24, %26, %cst_16 {dimension_numbers = #tpu.dot_dimension_numbers<[1], [0], [0], [1], [0, 0, 1, 1], [], []>} : vector<256x128xbf16>, vector<128x128xbf16>, vector<256x128xf32> -> vector<256x128xf32>
      %28 = vector.extract_strided_slice %19 {offsets = [0, 0], sizes = [1, 128], strides = [1, 1]} : vector<4x128xf32> to vector<1x128xf32>
      %29 = vector.broadcast %28 : vector<1x128xf32> to vector<256x128xf32>
      %30 = arith.addf %27, %29 : vector<256x128xf32>
      %cst_17 = arith.constant 0.000000e+00 : f32
      %31 = vector.broadcast %cst_17 : f32 to vector<256x128xf32>
      %32 = arith.maximumf %30, %31 : vector<256x128xf32>
      %33 = arith.truncf %32 : vector<256x128xf32> to vector<256x128xbf16>
      %c0_18 = arith.constant 0 : index
      %c0_19 = arith.constant 0 : index
      %c0_20 = arith.constant 0 : index
      %34 = vector.load %arg7[%c0_18, %c0_19, %c0_20] : memref<1x128x128xbf16, #tpu.memory_space<vmem>>, vector<1x128x128xbf16>
      %35 = vector.shape_cast %34 : vector<1x128x128xbf16> to vector<128x128xbf16>
      %cst_21 = arith.constant dense<0.000000e+00> : vector<256x128xf32>
      %36 = tpu.matmul %33, %35, %cst_21 {dimension_numbers = #tpu.dot_dimension_numbers<[1], [0], [0], [1], [0, 0, 1, 1], [], []>} : vector<256x128xbf16>, vector<128x128xbf16>, vector<256x128xf32> -> vector<256x128xf32>
      %37 = vector.extract_strided_slice %19 {offsets = [1, 0], sizes = [1, 128], strides = [1, 1]} : vector<4x128xf32> to vector<1x128xf32>
      %38 = vector.broadcast %37 : vector<1x128xf32> to vector<256x128xf32>
      %39 = arith.addf %36, %38 : vector<256x128xf32>
      %cst_22 = arith.constant 0.000000e+00 : f32
      %40 = vector.broadcast %cst_22 : f32 to vector<256x128xf32>
      %41 = arith.maximumf %39, %40 : vector<256x128xf32>
      %42 = arith.index_cast %1 : i32 to index
      %c0_23 = arith.constant 0 : index
      %43 = vector.load %arg12[%42, %c0_23] : memref<512x128xf32, #tpu.memory_space<vmem>>, vector<256x128xf32>
      tpu.vector_store %arg12[%42, %c0_23], %41 {strides = array<i32>} : memref<512x128xf32, #tpu.memory_space<vmem>>, vector<256x128xf32>,
      %c0_24 = arith.constant 0 : index
      %c0_25 = arith.constant 0 : index
      %44 = vector.load %arg15[%c0_24, %c0_25] : memref<8x128xf32, #tpu.memory_space<vmem>>, vector<8x128xf32>
      %c0_26 = arith.constant 0 : index
      %45 = arith.index_cast %1 : i32 to index
      %46 = vector.load %arg5[%c0_26, %45] : memref<8x512xf32, #tpu.memory_space<vmem>>, vector<8x256xf32>
      %cst_27 = arith.constant dense<0.000000e+00> : vector<8x128xf32>
      %47 = tpu.matmul %46, %41, %cst_27 {dimension_numbers = #tpu.dot_dimension_numbers<[1], [0], [0], [1], [0, 0, 1, 1], [], []>} : vector<8x256xf32>, vector<256x128xf32>, vector<8x128xf32> -> vector<8x128xf32>
      %48 = arith.addf %44, %47 : vector<8x128xf32>
      %c0_28 = arith.constant 0 : index
      %c0_29 = arith.constant 0 : index
      %49 = vector.load %arg15[%c0_28, %c0_29] : memref<8x128xf32, #tpu.memory_space<vmem>>, vector<8x128xf32>
      tpu.vector_store %arg15[%c0_28, %c0_29], %48 {strides = array<i32>} : memref<8x128xf32, #tpu.memory_space<vmem>>, vector<8x128xf32>,
      %c0_30 = arith.constant 0 : index
      %c0_31 = arith.constant 0 : index
      %50 = vector.load %arg13[%c0_30, %c0_31] : memref<1x128xf32, #tpu.memory_space<vmem>>, vector<1x128xf32>
      %cst_32 = arith.constant dense<0.000000e+00> : vector<128xf32>
      %51 = vector.multi_reduction <add>, %41, %cst_32 [0] : vector<256x128xf32> to vector<128xf32>
      %52 = vector.shape_cast %51 : vector<128xf32> to vector<1x128xf32>
      %53 = arith.addf %50, %52 : vector<1x128xf32>
      %c0_33 = arith.constant 0 : index
      %c0_34 = arith.constant 0 : index
      %54 = vector.load %arg13[%c0_33, %c0_34] : memref<1x128xf32, #tpu.memory_space<vmem>>, vector<1x128xf32>
      tpu.vector_store %arg13[%c0_33, %c0_34], %53 {strides = array<i32>} : memref<1x128xf32, #tpu.memory_space<vmem>>, vector<1x128xf32>,
      %c0_35 = arith.constant 0 : index
      %c0_36 = arith.constant 0 : index
      %55 = vector.load %arg14[%c0_35, %c0_36] : memref<1x128xf32, #tpu.memory_space<vmem>>, vector<1x128xf32>
      %56 = arith.mulf %41, %41 : vector<256x128xf32>
      %cst_37 = arith.constant dense<0.000000e+00> : vector<128xf32>
      %57 = vector.multi_reduction <add>, %56, %cst_37 [0] : vector<256x128xf32> to vector<128xf32>
      %58 = vector.shape_cast %57 : vector<128xf32> to vector<1x128xf32>
      %59 = arith.addf %55, %58 : vector<1x128xf32>
      %c0_38 = arith.constant 0 : index
      %c0_39 = arith.constant 0 : index
      %60 = vector.load %arg14[%c0_38, %c0_39] : memref<1x128xf32, #tpu.memory_space<vmem>>, vector<1x128xf32>
      tpu.vector_store %arg14[%c0_38, %c0_39], %59 {strides = array<i32>} : memref<1x128xf32, #tpu.memory_space<vmem>>, vector<1x128xf32>,
      %c1_i32_40 = arith.constant 1 : i32
      %61 = arith.cmpi eq, %arg2, %c1_i32_40 : i32
      %62 = arith.extui %61 : i1 to i32
      %c0_i32_41 = arith.constant 0 : i32
      %63 = arith.cmpi ne, %62, %c0_i32_41 : i32
      scf.if %63 {
        %c0_42 = arith.constant 0 : index
        %c0_43 = arith.constant 0 : index
        %64 = vector.load %arg13[%c0_42, %c0_43] : memref<1x128xf32, #tpu.memory_space<vmem>>, vector<1x128xf32>
        %cst_44 = arith.constant 0.001953125 : f32
        %65 = vector.broadcast %cst_44 : f32 to vector<1x128xf32>
        %66 = arith.mulf %64, %65 : vector<1x128xf32>
        %c0_45 = arith.constant 0 : index
        %c0_46 = arith.constant 0 : index
        %67 = vector.load %arg14[%c0_45, %c0_46] : memref<1x128xf32, #tpu.memory_space<vmem>>, vector<1x128xf32>
        %cst_47 = arith.constant 0.001953125 : f32
        %68 = vector.broadcast %cst_47 : f32 to vector<1x128xf32>
        %69 = arith.mulf %67, %68 : vector<1x128xf32>
        %70 = arith.mulf %66, %66 : vector<1x128xf32>
        %71 = arith.subf %69, %70 : vector<1x128xf32>
        %cst_48 = arith.constant 0.000000e+00 : f32
        %72 = vector.broadcast %cst_48 : f32 to vector<1x128xf32>
        %73 = arith.maximumf %71, %72 : vector<1x128xf32>
        %cst_49 = arith.constant 9.99999974E-6 : f32
        %74 = vector.broadcast %cst_49 : f32 to vector<1x128xf32>
        %75 = arith.addf %73, %74 : vector<1x128xf32>
        %76 = math.rsqrt %75 : vector<1x128xf32>
        %77 = vector.extract_strided_slice %19 {offsets = [2, 0], sizes = [1, 128], strides = [1, 1]} : vector<4x128xf32> to vector<1x128xf32>
        %78 = arith.mulf %76, %77 : vector<1x128xf32>
        %79 = vector.extract_strided_slice %19 {offsets = [3, 0], sizes = [1, 128], strides = [1, 1]} : vector<4x128xf32> to vector<1x128xf32>
        %80 = arith.mulf %66, %78 : vector<1x128xf32>
        %81 = arith.subf %79, %80 : vector<1x128xf32>
        %c0_50 = arith.constant 0 : index
        %c0_51 = arith.constant 0 : index
        %82 = vector.load %arg13[%c0_50, %c0_51] : memref<1x128xf32, #tpu.memory_space<vmem>>, vector<1x128xf32>
        tpu.vector_store %arg13[%c0_50, %c0_51], %78 {strides = array<i32>} : memref<1x128xf32, #tpu.memory_space<vmem>>, vector<1x128xf32>,
        %c0_52 = arith.constant 0 : index
        %c0_53 = arith.constant 0 : index
        %83 = vector.load %arg14[%c0_52, %c0_53] : memref<1x128xf32, #tpu.memory_space<vmem>>, vector<1x128xf32>
        tpu.vector_store %arg14[%c0_52, %c0_53], %81 {strides = array<i32>} : memref<1x128xf32, #tpu.memory_space<vmem>>, vector<1x128xf32>,
        %c0_54 = arith.constant 0 : index
        %c0_55 = arith.constant 0 : index
        %84 = vector.load %arg5[%c0_54, %c0_55] : memref<8x512xf32, #tpu.memory_space<vmem>>, vector<8x512xf32>
        %cst_56 = arith.constant dense<0.000000e+00> : vector<8xf32>
        %85 = vector.multi_reduction <add>, %84, %cst_56 [1] : vector<8x512xf32> to vector<8xf32>
        %86 = vector.shape_cast %85 : vector<8xf32> to vector<8x1xf32>
        %c0_57 = arith.constant 0 : index
        %c0_58 = arith.constant 0 : index
        %87 = vector.load %arg15[%c0_57, %c0_58] : memref<8x128xf32, #tpu.memory_space<vmem>>, vector<8x128xf32>
        %88 = vector.broadcast %78 : vector<1x128xf32> to vector<8x128xf32>
        %89 = arith.mulf %87, %88 : vector<8x128xf32>
        %90 = vector.broadcast %86 : vector<8x1xf32> to vector<8x128xf32>
        %91 = vector.broadcast %81 : vector<1x128xf32> to vector<8x128xf32>
        %92 = arith.mulf %90, %91 : vector<8x128xf32>
        %93 = arith.addf %89, %92 : vector<8x128xf32>
        %c0_59 = arith.constant 0 : index
        %c0_60 = arith.constant 0 : index
        %94 = vector.load %arg10[%c0_59, %c0_60] : memref<8x128xf32, #tpu.memory_space<vmem>>, vector<8x128xf32>
        tpu.vector_store %arg10[%c0_59, %c0_60], %93 {strides = array<i32>} : memref<8x128xf32, #tpu.memory_space<vmem>>, vector<8x128xf32>,
      } else {
      }
    } else {
    }
    %c1_i32 = arith.constant 1 : i32
    %12 = arith.cmpi eq, %arg1, %c1_i32 : i32
    %13 = arith.extui %12 : i1 to i32
    %c0_i32_5 = arith.constant 0 : i32
    %14 = arith.cmpi ne, %13, %c0_i32_5 : i32
    scf.if %14 {
      %15 = arith.index_cast %1 : i32 to index
      %c0 = arith.constant 0 : index
      %16 = vector.load %arg12[%15, %c0] : memref<512x128xf32, #tpu.memory_space<vmem>>, vector<256x128xf32>
      %c0_6 = arith.constant 0 : index
      %c0_7 = arith.constant 0 : index
      %17 = vector.load %arg13[%c0_6, %c0_7] : memref<1x128xf32, #tpu.memory_space<vmem>>, vector<1x128xf32>
      %18 = vector.broadcast %17 : vector<1x128xf32> to vector<256x128xf32>
      %19 = arith.mulf %16, %18 : vector<256x128xf32>
      %c0_8 = arith.constant 0 : index
      %c0_9 = arith.constant 0 : index
      %20 = vector.load %arg14[%c0_8, %c0_9] : memref<1x128xf32, #tpu.memory_space<vmem>>, vector<1x128xf32>
      %21 = vector.broadcast %20 : vector<1x128xf32> to vector<256x128xf32>
      %22 = arith.addf %19, %21 : vector<256x128xf32>
      %23 = arith.index_cast %1 : i32 to index
      %c0_10 = arith.constant 0 : index
      %24 = vector.load %arg9[%23, %c0_10] : memref<512x128xf32, #tpu.memory_space<vmem>>, vector<256x128xf32>
      tpu.vector_store %arg9[%23, %c0_10], %22 {strides = array<i32>} : memref<512x128xf32, #tpu.memory_space<vmem>>, vector<256x128xf32>,
      %25 = arith.truncf %22 : vector<256x128xf32> to vector<256x128xbf16>
      %26 = arith.index_cast %1 : i32 to index
      %c0_11 = arith.constant 0 : index
      %27 = vector.load %arg11[%26, %c0_11] : memref<512x128xbf16, #tpu.memory_space<vmem>>, vector<256x128xbf16>
      tpu.vector_store %arg11[%26, %c0_11], %25 {strides = array<i32>} : memref<512x128xbf16, #tpu.memory_space<vmem>>, vector<256x128xbf16>,
    } else {
    }
    return
  }
  func.func @transform_0(%arg0: i32, %arg1: i32, %arg2: i32) -> (i32, i32) {
    %c0_i32 = arith.constant 0 : i32
    %c0_i32_0 = arith.constant 0 : i32
    %c0_i32_1 = arith.constant 0 : i32
    return %c0_i32, %c0_i32_0 : i32, i32
  }
  func.func @transform_1(%arg0: i32, %arg1: i32, %arg2: i32) -> (i32, i32) {
    %c0_i32 = arith.constant 0 : i32
    %c0_i32_0 = arith.constant 0 : i32
    %c0_i32_1 = arith.constant 0 : i32
    return %c0_i32, %c0_i32_0 : i32, i32
  }
  func.func @transform_2(%arg0: i32, %arg1: i32, %arg2: i32) -> (i32, i32) {
    %c0_i32 = arith.constant 0 : i32
    %c0_i32_0 = arith.constant 0 : i32
    %c0_i32_1 = arith.constant 0 : i32
    return %c0_i32, %c0_i32_0 : i32, i32
  }
  func.func @transform_3(%arg0: i32, %arg1: i32, %arg2: i32) -> (i32, i32, i32) {
    %c0_i32 = arith.constant 0 : i32
    %c0_i32_0 = arith.constant 0 : i32
    %c0_i32_1 = arith.constant 0 : i32
    return %arg0, %c0_i32, %c0_i32_0 : i32, i32, i32
  }
  func.func @transform_4(%arg0: i32, %arg1: i32, %arg2: i32) -> (i32, i32, i32) {
    %c0_i32 = arith.constant 0 : i32
    %c0_i32_0 = arith.constant 0 : i32
    %c0_i32_1 = arith.constant 0 : i32
    return %arg0, %c0_i32, %c0_i32_0 : i32, i32, i32
  }
  func.func @transform_5(%arg0: i32, %arg1: i32, %arg2: i32) -> (i32, i32, i32) {
    %c0_i32 = arith.constant 0 : i32
    %c0_i32_0 = arith.constant 0 : i32
    %c0_i32_1 = arith.constant 0 : i32
    return %arg0, %c0_i32, %c0_i32_0 : i32, i32, i32
  }
  func.func @transform_6(%arg0: i32, %arg1: i32, %arg2: i32) -> (i32, i32) {
    %c0_i32 = arith.constant 0 : i32
    %c0_i32_0 = arith.constant 0 : i32
    return %c0_i32, %arg0 : i32, i32
  }
  func.func @transform_7(%arg0: i32, %arg1: i32, %arg2: i32) -> (i32, i32) {
    %c0_i32 = arith.constant 0 : i32
    %c0_i32_0 = arith.constant 0 : i32
    return %c0_i32, %arg0 : i32, i32
  }
}

module attributes {stable_mosaic.version = 11 : i64} {
  func.func @_gconv_kernel(%arg0: i32, %arg1: i32, %arg2: i32, %arg3: memref<512x128xbf16, #tpu.memory_space<vmem>>, %arg4: memref<512x512xbf16, #tpu.memory_space<vmem>>, %arg5: memref<8x512xf32, #tpu.memory_space<vmem>>, %arg6: memref<1x128x128xbf16, #tpu.memory_space<vmem>>, %arg7: memref<1x128x128xbf16, #tpu.memory_space<vmem>>, %arg8: memref<1x4x128xf32, #tpu.memory_space<vmem>>, %arg9: memref<512x128xf32, #tpu.memory_space<vmem>>, %arg10: memref<8x128xf32, #tpu.memory_space<vmem>>, %arg11: memref<512x128xbf16, #tpu.memory_space<vmem>>, %arg12: memref<512x128xf32, #tpu.memory_space<vmem>>, %arg13: memref<1x128xf32, #tpu.memory_space<vmem>>, %arg14: memref<1x128xf32, #tpu.memory_space<vmem>>, %arg15: memref<8x128xf32, #tpu.memory_space<vmem>>) attributes {dimension_semantics = [#tpu.dimension_semantics<arbitrary>, #tpu.dimension_semantics<arbitrary>, #tpu.dimension_semantics<arbitrary>], iteration_bounds = array<i64: 2, 2, 2>, scalar_prefetch = 0 : i64, scratch_operands = 5 : i64, tpu.core_type = #tpu.core_type<tc>, window_params = [{pipeline_mode = #tpu.pipeline_mode<synchronous>, transform_indices = @transform_0, window_bounds = array<i64: 512, 128>}, {pipeline_mode = #tpu.pipeline_mode<synchronous>, transform_indices = @transform_1, window_bounds = array<i64: 512, 512>}, {pipeline_mode = #tpu.pipeline_mode<synchronous>, transform_indices = @transform_2, window_bounds = array<i64: 8, 512>}, {transform_indices = @transform_3, window_bounds = array<i64: 1, 128, 128>}, {transform_indices = @transform_4, window_bounds = array<i64: 1, 128, 128>}, {transform_indices = @transform_5, window_bounds = array<i64: 1, 4, 128>}, {transform_indices = @transform_6, window_bounds = array<i64: 512, 128>}, {transform_indices = @transform_7, window_bounds = array<i64: 8, 128>}]} {
    %c256_i32 = arith.constant 256 : i32
    %0 = arith.muli %arg2, %c256_i32 : i32
    %1 = tpu.assume_multiple %0, 256 : i32
    %c0_i32 = arith.constant 0 : i32
    %2 = arith.cmpi eq, %arg0, %c0_i32 : i32
    %c0_i32_0 = arith.constant 0 : i32
    %3 = arith.cmpi eq, %arg1, %c0_i32_0 : i32
    %c0_i32_1 = arith.constant 0 : i32
    %4 = arith.cmpi eq, %arg2, %c0_i32_1 : i32
    %5 = arith.andi %3, %4 : i1
    %6 = arith.andi %2, %5 : i1
    %7 = arith.extui %6 : i1 to i32
    %c0_i32_2 = arith.constant 0 : i32
    %8 = arith.cmpi ne, %7, %c0_i32_2 : i32
    scf.if %8 {
      %c0 = arith.constant 0 : index
      %c0_6 = arith.constant 0 : index
      %15 = vector.load %arg3[%c0, %c0_6] : memref<512x128xbf16, #tpu.memory_space<vmem>>, vector<512x128xbf16>
      %c0_7 = arith.constant 0 : index
      %c0_8 = arith.constant 0 : index
      %16 = vector.load %arg11[%c0_7, %c0_8] : memref<512x128xbf16, #tpu.memory_space<vmem>>, vector<512x128xbf16>
      tpu.vector_store %arg11[%c0_7, %c0_8], %15 {strides = array<i32>} : memref<512x128xbf16, #tpu.memory_space<vmem>>, vector<512x128xbf16>,
    } else {
    }
    %c0_i32_3 = arith.constant 0 : i32
    %9 = arith.cmpi eq, %arg1, %c0_i32_3 : i32
    %10 = arith.extui %9 : i1 to i32
    %c0_i32_4 = arith.constant 0 : i32
    %11 = arith.cmpi ne, %10, %c0_i32_4 : i32
    scf.if %11 {
      %c0_i32_6 = arith.constant 0 : i32
      %15 = arith.cmpi eq, %arg2, %c0_i32_6 : i32
      %16 = arith.extui %15 : i1 to i32
      %c0_i32_7 = arith.constant 0 : i32
      %17 = arith.cmpi ne, %16, %c0_i32_7 : i32
      scf.if %17 {
        %cst_42 = arith.constant 0.000000e+00 : f32
        %64 = vector.broadcast %cst_42 : f32 to vector<1x128xf32>
        %c0_43 = arith.constant 0 : index
        %c0_44 = arith.constant 0 : index
        %65 = vector.load %arg13[%c0_43, %c0_44] : memref<1x128xf32, #tpu.memory_space<vmem>>, vector<1x128xf32>
        tpu.vector_store %arg13[%c0_43, %c0_44], %64 {strides = array<i32>} : memref<1x128xf32, #tpu.memory_space<vmem>>, vector<1x128xf32>,
        %cst_45 = arith.constant 0.000000e+00 : f32
        %66 = vector.broadcast %cst_45 : f32 to vector<1x128xf32>
        %c0_46 = arith.constant 0 : index
        %c0_47 = arith.constant 0 : index
        %67 = vector.load %arg14[%c0_46, %c0_47] : memref<1x128xf32, #tpu.memory_space<vmem>>, vector<1x128xf32>
        tpu.vector_store %arg14[%c0_46, %c0_47], %66 {strides = array<i32>} : memref<1x128xf32, #tpu.memory_space<vmem>>, vector<1x128xf32>,
        %cst_48 = arith.constant 0.000000e+00 : f32
        %68 = vector.broadcast %cst_48 : f32 to vector<8x128xf32>
        %c0_49 = arith.constant 0 : index
        %c0_50 = arith.constant 0 : index
        %69 = vector.load %arg15[%c0_49, %c0_50] : memref<8x128xf32, #tpu.memory_space<vmem>>, vector<8x128xf32>
        tpu.vector_store %arg15[%c0_49, %c0_50], %68 {strides = array<i32>} : memref<8x128xf32, #tpu.memory_space<vmem>>, vector<8x128xf32>,
      } else {
      }
      %c0 = arith.constant 0 : index
      %c0_8 = arith.constant 0 : index
      %c0_9 = arith.constant 0 : index
      %18 = vector.load %arg8[%c0, %c0_8, %c0_9] : memref<1x4x128xf32, #tpu.memory_space<vmem>>, vector<1x4x128xf32>
      %19 = vector.shape_cast %18 : vector<1x4x128xf32> to vector<4x128xf32>
      %20 = arith.index_cast %1 : i32 to index
      %c0_10 = arith.constant 0 : index
      %21 = vector.load %arg4[%20, %c0_10] : memref<512x512xbf16, #tpu.memory_space<vmem>>, vector<256x512xbf16>
      %c0_11 = arith.constant 0 : index
      %c0_12 = arith.constant 0 : index
      %22 = vector.load %arg11[%c0_11, %c0_12] : memref<512x128xbf16, #tpu.memory_space<vmem>>, vector<512x128xbf16>
      %cst = arith.constant dense<0.000000e+00> : vector<256x128xf32>
      %23 = tpu.matmul %21, %22, %cst {dimension_numbers = #tpu.dot_dimension_numbers<[1], [0], [0], [1], [0, 0, 1, 1], [], []>} : vector<256x512xbf16>, vector<512x128xbf16>, vector<256x128xf32> -> vector<256x128xf32>
      %24 = arith.truncf %23 : vector<256x128xf32> to vector<256x128xbf16>
      %c0_13 = arith.constant 0 : index
      %c0_14 = arith.constant 0 : index
      %c0_15 = arith.constant 0 : index
      %25 = vector.load %arg6[%c0_13, %c0_14, %c0_15] : memref<1x128x128xbf16, #tpu.memory_space<vmem>>, vector<1x128x128xbf16>
      %26 = vector.shape_cast %25 : vector<1x128x128xbf16> to vector<128x128xbf16>
      %cst_16 = arith.constant dense<0.000000e+00> : vector<256x128xf32>
      %27 = tpu.matmul %24, %26, %cst_16 {dimension_numbers = #tpu.dot_dimension_numbers<[1], [0], [0], [1], [0, 0, 1, 1], [], []>} : vector<256x128xbf16>, vector<128x128xbf16>, vector<256x128xf32> -> vector<256x128xf32>
      %28 = vector.extract_strided_slice %19 {offsets = [0, 0], sizes = [1, 128], strides = [1, 1]} : vector<4x128xf32> to vector<1x128xf32>
      %29 = vector.broadcast %28 : vector<1x128xf32> to vector<256x128xf32>
      %30 = arith.addf %27, %29 : vector<256x128xf32>
      %cst_17 = arith.constant 0.000000e+00 : f32
      %31 = vector.broadcast %cst_17 : f32 to vector<256x128xf32>
      %32 = arith.maximumf %30, %31 : vector<256x128xf32>
      %33 = arith.truncf %32 : vector<256x128xf32> to vector<256x128xbf16>
      %c0_18 = arith.constant 0 : index
      %c0_19 = arith.constant 0 : index
      %c0_20 = arith.constant 0 : index
      %34 = vector.load %arg7[%c0_18, %c0_19, %c0_20] : memref<1x128x128xbf16, #tpu.memory_space<vmem>>, vector<1x128x128xbf16>
      %35 = vector.shape_cast %34 : vector<1x128x128xbf16> to vector<128x128xbf16>
      %cst_21 = arith.constant dense<0.000000e+00> : vector<256x128xf32>
      %36 = tpu.matmul %33, %35, %cst_21 {dimension_numbers = #tpu.dot_dimension_numbers<[1], [0], [0], [1], [0, 0, 1, 1], [], []>} : vector<256x128xbf16>, vector<128x128xbf16>, vector<256x128xf32> -> vector<256x128xf32>
      %37 = vector.extract_strided_slice %19 {offsets = [1, 0], sizes = [1, 128], strides = [1, 1]} : vector<4x128xf32> to vector<1x128xf32>
      %38 = vector.broadcast %37 : vector<1x128xf32> to vector<256x128xf32>
      %39 = arith.addf %36, %38 : vector<256x128xf32>
      %cst_22 = arith.constant 0.000000e+00 : f32
      %40 = vector.broadcast %cst_22 : f32 to vector<256x128xf32>
      %41 = arith.maximumf %39, %40 : vector<256x128xf32>
      %42 = arith.index_cast %1 : i32 to index
      %c0_23 = arith.constant 0 : index
      %43 = vector.load %arg12[%42, %c0_23] : memref<512x128xf32, #tpu.memory_space<vmem>>, vector<256x128xf32>
      tpu.vector_store %arg12[%42, %c0_23], %41 {strides = array<i32>} : memref<512x128xf32, #tpu.memory_space<vmem>>, vector<256x128xf32>,
      %c0_24 = arith.constant 0 : index
      %c0_25 = arith.constant 0 : index
      %44 = vector.load %arg15[%c0_24, %c0_25] : memref<8x128xf32, #tpu.memory_space<vmem>>, vector<8x128xf32>
      %c0_26 = arith.constant 0 : index
      %45 = arith.index_cast %1 : i32 to index
      %46 = vector.load %arg5[%c0_26, %45] : memref<8x512xf32, #tpu.memory_space<vmem>>, vector<8x256xf32>
      %cst_27 = arith.constant dense<0.000000e+00> : vector<8x128xf32>
      %47 = tpu.matmul %46, %41, %cst_27 {dimension_numbers = #tpu.dot_dimension_numbers<[1], [0], [0], [1], [0, 0, 1, 1], [], []>} : vector<8x256xf32>, vector<256x128xf32>, vector<8x128xf32> -> vector<8x128xf32>
      %48 = arith.addf %44, %47 : vector<8x128xf32>
      %c0_28 = arith.constant 0 : index
      %c0_29 = arith.constant 0 : index
      %49 = vector.load %arg15[%c0_28, %c0_29] : memref<8x128xf32, #tpu.memory_space<vmem>>, vector<8x128xf32>
      tpu.vector_store %arg15[%c0_28, %c0_29], %48 {strides = array<i32>} : memref<8x128xf32, #tpu.memory_space<vmem>>, vector<8x128xf32>,
      %c0_30 = arith.constant 0 : index
      %c0_31 = arith.constant 0 : index
      %50 = vector.load %arg13[%c0_30, %c0_31] : memref<1x128xf32, #tpu.memory_space<vmem>>, vector<1x128xf32>
      %cst_32 = arith.constant dense<0.000000e+00> : vector<128xf32>
      %51 = vector.multi_reduction <add>, %41, %cst_32 [0] : vector<256x128xf32> to vector<128xf32>
      %52 = vector.shape_cast %51 : vector<128xf32> to vector<1x128xf32>
      %53 = arith.addf %50, %52 : vector<1x128xf32>
      %c0_33 = arith.constant 0 : index
      %c0_34 = arith.constant 0 : index
      %54 = vector.load %arg13[%c0_33, %c0_34] : memref<1x128xf32, #tpu.memory_space<vmem>>, vector<1x128xf32>
      tpu.vector_store %arg13[%c0_33, %c0_34], %53 {strides = array<i32>} : memref<1x128xf32, #tpu.memory_space<vmem>>, vector<1x128xf32>,
      %c0_35 = arith.constant 0 : index
      %c0_36 = arith.constant 0 : index
      %55 = vector.load %arg14[%c0_35, %c0_36] : memref<1x128xf32, #tpu.memory_space<vmem>>, vector<1x128xf32>
      %56 = arith.mulf %41, %41 : vector<256x128xf32>
      %cst_37 = arith.constant dense<0.000000e+00> : vector<128xf32>
      %57 = vector.multi_reduction <add>, %56, %cst_37 [0] : vector<256x128xf32> to vector<128xf32>
      %58 = vector.shape_cast %57 : vector<128xf32> to vector<1x128xf32>
      %59 = arith.addf %55, %58 : vector<1x128xf32>
      %c0_38 = arith.constant 0 : index
      %c0_39 = arith.constant 0 : index
      %60 = vector.load %arg14[%c0_38, %c0_39] : memref<1x128xf32, #tpu.memory_space<vmem>>, vector<1x128xf32>
      tpu.vector_store %arg14[%c0_38, %c0_39], %59 {strides = array<i32>} : memref<1x128xf32, #tpu.memory_space<vmem>>, vector<1x128xf32>,
      %c1_i32_40 = arith.constant 1 : i32
      %61 = arith.cmpi eq, %arg2, %c1_i32_40 : i32
      %62 = arith.extui %61 : i1 to i32
      %c0_i32_41 = arith.constant 0 : i32
      %63 = arith.cmpi ne, %62, %c0_i32_41 : i32
      scf.if %63 {
        %c0_42 = arith.constant 0 : index
        %c0_43 = arith.constant 0 : index
        %64 = vector.load %arg13[%c0_42, %c0_43] : memref<1x128xf32, #tpu.memory_space<vmem>>, vector<1x128xf32>
        %cst_44 = arith.constant 0.001953125 : f32
        %65 = vector.broadcast %cst_44 : f32 to vector<1x128xf32>
        %66 = arith.mulf %64, %65 : vector<1x128xf32>
        %c0_45 = arith.constant 0 : index
        %c0_46 = arith.constant 0 : index
        %67 = vector.load %arg14[%c0_45, %c0_46] : memref<1x128xf32, #tpu.memory_space<vmem>>, vector<1x128xf32>
        %cst_47 = arith.constant 0.001953125 : f32
        %68 = vector.broadcast %cst_47 : f32 to vector<1x128xf32>
        %69 = arith.mulf %67, %68 : vector<1x128xf32>
        %70 = arith.mulf %66, %66 : vector<1x128xf32>
        %71 = arith.subf %69, %70 : vector<1x128xf32>
        %cst_48 = arith.constant 0.000000e+00 : f32
        %72 = vector.broadcast %cst_48 : f32 to vector<1x128xf32>
        %73 = arith.maximumf %71, %72 : vector<1x128xf32>
        %cst_49 = arith.constant 9.99999974E-6 : f32
        %74 = vector.broadcast %cst_49 : f32 to vector<1x128xf32>
        %75 = arith.addf %73, %74 : vector<1x128xf32>
        %76 = math.rsqrt %75 : vector<1x128xf32>
        %77 = vector.extract_strided_slice %19 {offsets = [2, 0], sizes = [1, 128], strides = [1, 1]} : vector<4x128xf32> to vector<1x128xf32>
        %78 = arith.mulf %76, %77 : vector<1x128xf32>
        %79 = vector.extract_strided_slice %19 {offsets = [3, 0], sizes = [1, 128], strides = [1, 1]} : vector<4x128xf32> to vector<1x128xf32>
        %80 = arith.mulf %66, %78 : vector<1x128xf32>
        %81 = arith.subf %79, %80 : vector<1x128xf32>
        %c0_50 = arith.constant 0 : index
        %c0_51 = arith.constant 0 : index
        %82 = vector.load %arg13[%c0_50, %c0_51] : memref<1x128xf32, #tpu.memory_space<vmem>>, vector<1x128xf32>
        tpu.vector_store %arg13[%c0_50, %c0_51], %78 {strides = array<i32>} : memref<1x128xf32, #tpu.memory_space<vmem>>, vector<1x128xf32>,
        %c0_52 = arith.constant 0 : index
        %c0_53 = arith.constant 0 : index
        %83 = vector.load %arg14[%c0_52, %c0_53] : memref<1x128xf32, #tpu.memory_space<vmem>>, vector<1x128xf32>
        tpu.vector_store %arg14[%c0_52, %c0_53], %81 {strides = array<i32>} : memref<1x128xf32, #tpu.memory_space<vmem>>, vector<1x128xf32>,
        %c0_54 = arith.constant 0 : index
        %c0_55 = arith.constant 0 : index
        %84 = vector.load %arg5[%c0_54, %c0_55] : memref<8x512xf32, #tpu.memory_space<vmem>>, vector<8x512xf32>
        %cst_56 = arith.constant dense<0.000000e+00> : vector<8xf32>
        %85 = vector.multi_reduction <add>, %84, %cst_56 [1] : vector<8x512xf32> to vector<8xf32>
        %86 = vector.shape_cast %85 : vector<8xf32> to vector<8x1xf32>
        %c0_57 = arith.constant 0 : index
        %c0_58 = arith.constant 0 : index
        %87 = vector.load %arg15[%c0_57, %c0_58] : memref<8x128xf32, #tpu.memory_space<vmem>>, vector<8x128xf32>
        %88 = vector.broadcast %78 : vector<1x128xf32> to vector<8x128xf32>
        %89 = arith.mulf %87, %88 : vector<8x128xf32>
        %90 = vector.broadcast %86 : vector<8x1xf32> to vector<8x128xf32>
        %91 = vector.broadcast %81 : vector<1x128xf32> to vector<8x128xf32>
        %92 = arith.mulf %90, %91 : vector<8x128xf32>
        %93 = arith.addf %89, %92 : vector<8x128xf32>
        %c0_59 = arith.constant 0 : index
        %c0_60 = arith.constant 0 : index
        %94 = vector.load %arg10[%c0_59, %c0_60] : memref<8x128xf32, #tpu.memory_space<vmem>>, vector<8x128xf32>
        tpu.vector_store %arg10[%c0_59, %c0_60], %93 {strides = array<i32>} : memref<8x128xf32, #tpu.memory_space<vmem>>, vector<8x128xf32>,
      } else {
      }
    } else {
    }
    %c1_i32 = arith.constant 1 : i32
    %12 = arith.cmpi eq, %arg1, %c1_i32 : i32
    %13 = arith.extui %12 : i1 to i32
    %c0_i32_5 = arith.constant 0 : i32
    %14 = arith.cmpi ne, %13, %c0_i32_5 : i32
    scf.if %14 {
      %15 = arith.index_cast %1 : i32 to index
      %c0 = arith.constant 0 : index
      %16 = vector.load %arg12[%15, %c0] : memref<512x128xf32, #tpu.memory_space<vmem>>, vector<256x128xf32>
      %c0_6 = arith.constant 0 : index
      %c0_7 = arith.constant 0 : index
      %17 = vector.load %arg13[%c0_6, %c0_7] : memref<1x128xf32, #tpu.memory_space<vmem>>, vector<1x128xf32>
      %18 = vector.broadcast %17 : vector<1x128xf32> to vector<256x128xf32>
      %19 = arith.mulf %16, %18 : vector<256x128xf32>
      %c0_8 = arith.constant 0 : index
      %c0_9 = arith.constant 0 : index
      %20 = vector.load %arg14[%c0_8, %c0_9] : memref<1x128xf32, #tpu.memory_space<vmem>>, vector<1x128xf32>
      %21 = vector.broadcast %20 : vector<1x128xf32> to vector<256x128xf32>
      %22 = arith.addf %19, %21 : vector<256x128xf32>
      %23 = arith.index_cast %1 : i32 to index
      %c0_10 = arith.constant 0 : index
      %24 = vector.load %arg9[%23, %c0_10] : memref<512x128xf32, #tpu.memory_space<vmem>>, vector<256x128xf32>
      tpu.vector_store %arg9[%23, %c0_10], %22 {strides = array<i32>} : memref<512x128xf32, #tpu.memory_space<vmem>>, vector<256x128xf32>,
      %25 = arith.truncf %22 : vector<256x128xf32> to vector<256x128xbf16>
      %26 = arith.index_cast %1 : i32 to index
      %c0_11 = arith.constant 0 : index
      %27 = vector.load %arg11[%26, %c0_11] : memref<512x128xbf16, #tpu.memory_space<vmem>>, vector<256x128xbf16>
      tpu.vector_store %arg11[%26, %c0_11], %25 {strides = array<i32>} : memref<512x128xbf16, #tpu.memory_space<vmem>>, vector<256x128xbf16>,
    } else {
    }
    return
  }
  func.func @transform_0(%arg0: i32, %arg1: i32, %arg2: i32) -> (i32, i32) {
    %c0_i32 = arith.constant 0 : i32
    %c0_i32_0 = arith.constant 0 : i32
    %c0_i32_1 = arith.constant 0 : i32
    return %c0_i32, %c0_i32_0 : i32, i32
  }
  func.func @transform_1(%arg0: i32, %arg1: i32, %arg2: i32) -> (i32, i32) {
    %c0_i32 = arith.constant 0 : i32
    %c0_i32_0 = arith.constant 0 : i32
    %c0_i32_1 = arith.constant 0 : i32
    return %c0_i32, %c0_i32_0 : i32, i32
  }
  func.func @transform_2(%arg0: i32, %arg1: i32, %arg2: i32) -> (i32, i32) {
    %c0_i32 = arith.constant 0 : i32
    %c0_i32_0 = arith.constant 0 : i32
    %c0_i32_1 = arith.constant 0 : i32
    return %c0_i32, %c0_i32_0 : i32, i32
  }
  func.func @transform_3(%arg0: i32, %arg1: i32, %arg2: i32) -> (i32, i32, i32) {
    %c0_i32 = arith.constant 0 : i32
    %c0_i32_0 = arith.constant 0 : i32
    %c0_i32_1 = arith.constant 0 : i32
    return %arg0, %c0_i32, %c0_i32_0 : i32, i32, i32
  }
  func.func @transform_4(%arg0: i32, %arg1: i32, %arg2: i32) -> (i32, i32, i32) {
    %c0_i32 = arith.constant 0 : i32
    %c0_i32_0 = arith.constant 0 : i32
    %c0_i32_1 = arith.constant 0 : i32
    return %arg0, %c0_i32, %c0_i32_0 : i32, i32, i32
  }
  func.func @transform_5(%arg0: i32, %arg1: i32, %arg2: i32) -> (i32, i32, i32) {
    %c0_i32 = arith.constant 0 : i32
    %c0_i32_0 = arith.constant 0 : i32
    %c0_i32_1 = arith.constant 0 : i32
    return %arg0, %c0_i32, %c0_i32_0 : i32, i32, i32
  }
  func.func @transform_6(%arg0: i32, %arg1: i32, %arg2: i32) -> (i32, i32) {
    %c0_i32 = arith.constant 0 : i32
    %c0_i32_0 = arith.constant 0 : i32
    return %c0_i32, %arg0 : i32, i32
  }
  func.func @transform_7(%arg0: i32, %arg1: i32, %arg2: i32) -> (i32, i32) {
    %c0_i32 = arith.constant 0 : i32
    %c0_i32_0 = arith.constant 0 : i32
    return %c0_i32, %arg0 : i32, i32
  }
}

</mosaic_0001>

<llo_original>
// kernel: tpu_custom_call.1
$region0: #{tpu_custom_call.1}
  #allocation0 [shape = 'u32[]', space=smem, size = 0x4, offset = 0x4, fixed_abs, tag = 'smem constant byte address 0x4 - core index']
  #allocation1 [shape = 'u32[144,128]{1,0:T(1,128)}', space=vmem, size = 0x12000, scoped, tag = 'internal scratch']
  #allocation2 [shape = 'bf16[512,128]{1,0:T(8,128)(2,1)}', space=vmem, size = 0x20000, scoped, tag = 'scratch operand']
  #allocation3 [shape = 'f32[512,128]{1,0:T(8,128)}', space=vmem, size = 0x40000, scoped, tag = 'scratch operand']
  #allocation4 [shape = 'f32[1,128]{1,0:T(1,128)}', space=vmem, size = 0x200, scoped, tag = 'scratch operand']
  #allocation5 [shape = 'f32[1,128]{1,0:T(1,128)}', space=vmem, size = 0x200, scoped, tag = 'scratch operand']
  #allocation6 [shape = 'f32[8,128]{1,0:T(8,128)}', space=vmem, size = 0x1000, scoped, tag = 'scratch operand']
  %s0 = inlined_call_operand.hbm [shape: bf16[512,128], index: 0, kind: input, shape index: {}]
  %s1 = inlined_call_operand.hbm [shape: bf16[512,512], index: 1, kind: input, shape index: {}]
  %s2 = inlined_call_operand.hbm [shape: f32[8,512], index: 2, kind: input, shape index: {}]
  %s3 = inlined_call_operand.hbm [shape: bf16[2,128,128], index: 3, kind: input, shape index: {}]
  %s4 = inlined_call_operand.hbm [shape: bf16[2,128,128], index: 4, kind: input, shape index: {}]
  %s5 = inlined_call_operand.vmem [shape: f32[2,4,128], index: 5, kind: input, shape index: {}]
  %s6 = inlined_call_operand.hbm [shape: f32[512,256], index: 6, kind: output, shape index: {0}]
  %s7 = inlined_call_operand.hbm [shape: f32[8,256], index: 7, kind: output, shape index: {1}]
  %8 = xla_tuple %s6, %s7
  %s9 = sld [smem:[#allocation0]]
  $region105: #{tpu_custom_call.1} parent=0
    _
  %s11 = ssub.s32 1, %s9
  %s12 = scalar_select 0, %s11, %s9
  $region1: #{tpu_custom_call.1} parent=0
    #allocation7 [shape = 'u8[131072]{0}', space=vmem, size = 0x20000, scoped, tag = 'input window, operand 0, single buffered']
    #allocation8 [shape = 's32[2]{0}', space=sflag, size = 0x8, scoped, tag = 'scoped memory for tpu_custom_call.1']
    #allocation9 [shape = 's32[2]{0}', space=sflag, size = 0x8, scoped, tag = 'scoped memory for tpu_custom_call.1']
    #allocation10 [shape = 'u8[524288]{0}', space=vmem, size = 0x80000, scoped, tag = 'input window, operand 1, single buffered']
    #allocation11 [shape = 's32[1]{0}', space=sflag, size = 0x4, scoped, tag = 'scoped memory for tpu_custom_call.1']
    #allocation12 [shape = 'u8[16384]{0}', space=vmem, size = 0x4000, scoped, tag = 'input window, operand 2, single buffered']
    #allocation13 [shape = 'u8[65536]{0}', space=vmem, size = 0x10000, scoped, tag = 'input window, operand 3']
    #allocation14 [shape = 's32[2]{0}', space=sflag, size = 0x8, scoped, tag = 'scoped memory for tpu_custom_call.1']
    #allocation15 [shape = 'u8[65536]{0}', space=vmem, size = 0x10000, scoped, tag = 'input window, operand 4']
    #allocation16 [shape = 'u8[524288]{0}', space=vmem, size = 0x80000, scoped, tag = 'output window, operand 0']
    #allocation17 [shape = 'u8[8192]{0}', space=vmem, size = 0x2000, scoped, tag = 'output window, operand 1']
    #allocation18 [shape = 's32[2]{0}', space=sflag, size = 0x8, scoped, tag = 'scoped memory for tpu_custom_call.1']
    %13 = vsyncpa [#allocation8], 0
    %14 = vsyncpa [#allocation11], 0
    %15 = vsyncpa [#allocation14], 0
    %s16 = scalar_lea.sflag [#allocation14], 1
    %17 = vsyncpa %s16, 0
    %18 = vsyncpa [#allocation9], 0
    %s19 = scalar_lea.sflag [#allocation9], 1
    %20 = vsyncpa %s19, 0
    %21 = vsyncpa [#allocation18], 0
    %s22 = scalar_lea.sflag [#allocation18], 1
    %23 = vsyncpa %s22, 0
    loop: start=0, step=1, limit=10
    $region2: #{tpu_custom_call.1} parent=1 // loop_pre_header
      _
    $region3: #{tpu_custom_call.1} parent=1 // loop_header
      %s25 = sphi 0, %s29
      %p26 = scmp.ge.s32.totalorder %s25, 10
      %s32 = sphi 0, %s51
      %s33 = sphi 0, %s47
      %s34 = sphi 0, %s43
      %s35 = sphi 0, %s32
      %s36 = sphi 0, %s33
      %s37 = sphi 0, %s34
      %s38 = sphi 0, %s35
      %s39 = sphi 0, %s36
      %s40 = sphi 0, %s37
      %s52 = sphi 0, %s52
      %s54 = sphi 0, %s52
      %s55 = sphi 0, %s54
      %s69 = sphi 0, %s55
      %s73 = sphi 0, %s73
      %s75 = sphi 0, %s73
      %s76 = sphi 0, %s75
      %s90 = sphi 0, %s76
      %s94 = sphi 0, %s94
      %s96 = sphi 0, %s94
      %s97 = sphi 0, %s96
      %s111 = sphi 0, %s97
      %s117 = sphi 0, %s119
      %s120 = sphi 0, %s117
      %s121 = sphi 0, %s120
      %s137 = sphi 0, %s121
      %s143 = sphi 0, %s145
      %s146 = sphi 0, %s143
      %s147 = sphi 0, %s146
      %s163 = sphi 0, %s147
      %s169 = sphi 0, %s171
      %s172 = sphi 0, %s169
      %s173 = sphi 0, %s172
      %s189 = sphi 0, %s173
      %s195 = sphi 0, %s197
      %s198 = sphi 0, %s195
      %s199 = sphi 0, %s198
      %s215 = sphi 0, %s199
      %s221 = sphi 0, %s223
      %s224 = sphi 0, %s221
      %s225 = sphi 0, %s224
      %s241 = sphi 0, %s225
    $region4: #{tpu_custom_call.1} parent=1 // loop_header_branch
      %28 = sbr.rel (%p26) target = $region8
    $region5: #{tpu_custom_call.1} parent=1 // loop_body
      %s30 = ssub.s32 %s25, 1
      %s31 = ssub.s32 %s25, 2
      %s41 = sadd.s32 1, %s34
      %p42 = scmp.ge.s32.totalorder %s41, 2
      %s43 = scalar_select %p42, 0, %s41
      %s44 = sadd.s32 1, %s33
      %s45 = scalar_select %p42, %s44, %s33
      %p46 = scmp.ge.s32.totalorder %s45, 2
      %s47 = scalar_select %p46, 0, %s45
      %s48 = sadd.s32 1, %s32
      %s49 = scalar_select %p46, %s48, %s32
      %p50 = scmp.ge.s32.totalorder %s49, 2
      %s51 = scalar_select %p50, 0, %s49
      %s53 = sadd.s32 %s52, 1
      %p56 = scmp.eq.s32.totalorder %s25, 7
      %p57 = scmp.ne.s32.totalorder %s52, %s54
      %p58 = scmp.eq.s32.totalorder %s25, 0
      %p59 = por %p57, %p58
      %p60 = scmp.ne.s32.totalorder %s52, %s54
      %p61 = scmp.eq.s32.totalorder %s30, 7
      %p62 = por %p60, %p61
      %p63 = scmp.ne.s32.totalorder %s54, %s55
      %p64 = scmp.eq.s32.totalorder %s30, 0
      %p65 = por %p63, %p64
      %p66 = scmp.ne.s32.totalorder %s54, %s55
      %p67 = scmp.eq.s32.totalorder %s31, 7
      %p68 = por %p66, %p67
      %p70 = scmp.ne.s32.totalorder %s55, %s69
      %p71 = scmp.eq.s32.totalorder %s31, 0
      %p72 = por %p70, %p71
      %s74 = sadd.s32 %s73, 1
      %p77 = scmp.eq.s32.totalorder %s25, 7
      %p78 = scmp.ne.s32.totalorder %s73, %s75
      %p79 = scmp.eq.s32.totalorder %s25, 0
      %p80 = por %p78, %p79
      %p81 = scmp.ne.s32.totalorder %s73, %s75
      %p82 = scmp.eq.s32.totalorder %s30, 7
      %p83 = por %p81, %p82
      %p84 = scmp.ne.s32.totalorder %s75, %s76
      %p85 = scmp.eq.s32.totalorder %s30, 0
      %p86 = por %p84, %p85
      %p87 = scmp.ne.s32.totalorder %s75, %s76
      %p88 = scmp.eq.s32.totalorder %s31, 7
      %p89 = por %p87, %p88
      %p91 = scmp.ne.s32.totalorder %s76, %s90
      %p92 = scmp.eq.s32.totalorder %s31, 0
      %p93 = por %p91, %p92
      %s95 = sadd.s32 %s94, 1
      %p98 = scmp.eq.s32.totalorder %s25, 7
      %p99 = scmp.ne.s32.totalorder %s94, %s96
      %p100 = scmp.eq.s32.totalorder %s25, 0
      %p101 = por %p99, %p100
      %p102 = scmp.ne.s32.totalorder %s94, %s96
      %p103 = scmp.eq.s32.totalorder %s30, 7
      %p104 = por %p102, %p103
      %p105 = scmp.ne.s32.totalorder %s96, %s97
      %p106 = scmp.eq.s32.totalorder %s30, 0
      %p107 = por %p105, %p106
      %p108 = scmp.ne.s32.totalorder %s96, %s97
      %p109 = scmp.eq.s32.totalorder %s31, 7
      %p110 = por %p108, %p109
      %p112 = scmp.ne.s32.totalorder %s97, %s111
      %p113 = scmp.eq.s32.totalorder %s31, 0
      %p114 = por %p112, %p113
      %s115 = ssub.s32 %s32, %s51
      %p116 = scmp.eq.s32.totalorder %s115, 0
      %s118 = sadd.s32 %s117, 1
      %s119 = scalar_select %p116, %s117, %s118
      %p122 = pneg %p116
      %p123 = scmp.eq.s32.totalorder %s25, 7
      %p124 = por %p122, %p123
      %p125 = scmp.ne.s32.totalorder %s117, %s120
      %p126 = scmp.eq.s32.totalorder %s25, 0
      %p127 = por %p125, %p126
      %p128 = scmp.ne.s32.totalorder %s117, %s120
      %p129 = scmp.eq.s32.totalorder %s30, 7
      %p130 = por %p128, %p129
      %p131 = scmp.ne.s32.totalorder %s120, %s121
      %p132 = scmp.eq.s32.totalorder %s30, 0
      %p133 = por %p131, %p132
      %p134 = scmp.ne.s32.totalorder %s120, %s121
      %p135 = scmp.eq.s32.totalorder %s31, 7
      %p136 = por %p134, %p135
      %p138 = scmp.ne.s32.totalorder %s121, %s137
      %p139 = scmp.eq.s32.totalorder %s31, 0
      %p140 = por %p138, %p139
      %s141 = ssub.s32 %s32, %s51
      %p142 = scmp.eq.s32.totalorder %s141, 0
      %s144 = sadd.s32 %s143, 1
      %s145 = scalar_select %p142, %s143, %s144
      %p148 = pneg %p142
      %p149 = scmp.eq.s32.totalorder %s25, 7
      %p150 = por %p148, %p149
      %p151 = scmp.ne.s32.totalorder %s143, %s146
      %p152 = scmp.eq.s32.totalorder %s25, 0
      %p153 = por %p151, %p152
      %p154 = scmp.ne.s32.totalorder %s143, %s146
      %p155 = scmp.eq.s32.totalorder %s30, 7
      %p156 = por %p154, %p155
      %p157 = scmp.ne.s32.totalorder %s146, %s147
      %p158 = scmp.eq.s32.totalorder %s30, 0
      %p159 = por %p157, %p158
      %p160 = scmp.ne.s32.totalorder %s146, %s147
      %p161 = scmp.eq.s32.totalorder %s31, 7
      %p162 = por %p160, %p161
      %p164 = scmp.ne.s32.totalorder %s147, %s163
      %p165 = scmp.eq.s32.totalorder %s31, 0
      %p166 = por %p164, %p165
      %s167 = ssub.s32 %s32, %s51
      %p168 = scmp.eq.s32.totalorder %s167, 0
      %s170 = sadd.s32 %s169, 1
      %s171 = scalar_select %p168, %s169, %s170
      %p174 = pneg %p168
      %p175 = scmp.eq.s32.totalorder %s25, 7
      %p176 = por %p174, %p175
      %p177 = scmp.ne.s32.totalorder %s169, %s172
      %p178 = scmp.eq.s32.totalorder %s25, 0
      %p179 = por %p177, %p178
      %p180 = scmp.ne.s32.totalorder %s169, %s172
      %p181 = scmp.eq.s32.totalorder %s30, 7
      %p182 = por %p180, %p181
      %p183 = scmp.ne.s32.totalorder %s172, %s173
      %p184 = scmp.eq.s32.totalorder %s30, 0
      %p185 = por %p183, %p184
      %p186 = scmp.ne.s32.totalorder %s172, %s173
      %p187 = scmp.eq.s32.totalorder %s31, 7
      %p188 = por %p186, %p187
      %p190 = scmp.ne.s32.totalorder %s173, %s189
      %p191 = scmp.eq.s32.totalorder %s31, 0
      %p192 = por %p190, %p191
      %s193 = ssub.s32 %s32, %s51
      %p194 = scmp.eq.s32.totalorder %s193, 0
      %s196 = sadd.s32 %s195, 1
      %s197 = scalar_select %p194, %s195, %s196
      %p200 = pneg %p194
      %p201 = scmp.eq.s32.totalorder %s25, 7
      %p202 = por %p200, %p201
      %p203 = scmp.ne.s32.totalorder %s195, %s198
      %p204 = scmp.eq.s32.totalorder %s25, 0
      %p205 = por %p203, %p204
      %p206 = scmp.ne.s32.totalorder %s195, %s198
      %p207 = scmp.eq.s32.totalorder %s30, 7
      %p208 = por %p206, %p207
      %p209 = scmp.ne.s32.totalorder %s198, %s199
      %p210 = scmp.eq.s32.totalorder %s30, 0
      %p211 = por %p209, %p210
      %p212 = scmp.ne.s32.totalorder %s198, %s199
      %p213 = scmp.eq.s32.totalorder %s31, 7
      %p214 = por %p212, %p213
      %p216 = scmp.ne.s32.totalorder %s199, %s215
      %p217 = scmp.eq.s32.totalorder %s31, 0
      %p218 = por %p216, %p217
      %s219 = ssub.s32 %s32, %s51
      %p220 = scmp.eq.s32.totalorder %s219, 0
      %s222 = sadd.s32 %s221, 1
      %s223 = scalar_select %p220, %s221, %s222
      %p226 = pneg %p220
      %p227 = scmp.eq.s32.totalorder %s25, 7
      %p228 = por %p226, %p227
      %p229 = scmp.ne.s32.totalorder %s221, %s224
      %p230 = scmp.eq.s32.totalorder %s25, 0
      %p231 = por %p229, %p230
      %p232 = scmp.ne.s32.totalorder %s221, %s224
      %p233 = scmp.eq.s32.totalorder %s30, 7
      %p234 = por %p232, %p233
      %p235 = scmp.ne.s32.totalorder %s224, %s225
      %p236 = scmp.eq.s32.totalorder %s30, 0
      %p237 = por %p235, %p236
      %p238 = scmp.ne.s32.totalorder %s224, %s225
      %p239 = scmp.eq.s32.totalorder %s31, 7
      %p240 = por %p238, %p239
      %p242 = scmp.ne.s32.totalorder %s225, %s241
      %p243 = scmp.eq.s32.totalorder %s31, 0
      %p244 = por %p242, %p243
      %p245 = scmp.le.s32.totalorder 1, %s25
      %p246 = scmp.lt.s32.totalorder %s25, 9
      %p247 = pnand %p245, %p246
      %p248 = pneg %p247
      // Predicated region
      $region9: #{tpu_custom_call.1} parent=5 // pred_check
        _
      $region10: #{tpu_custom_call.1} parent=5 // pred_check_branch
        %250 = sbr.rel (%p247) target = $region12
      $region11: #{tpu_custom_call.1} parent=5 // pred_region
        %s251 = ssub.s32 %s25, 1
        // Predicated region
        $region13: #{tpu_custom_call.1} parent=11 // pred_check
          %p252 = pneg %p65
        $region14: #{tpu_custom_call.1} parent=11 // pred_check_branch
          %254 = sbr.rel (%p252) target = $region16
        $region15: #{tpu_custom_call.1} parent=11 // pred_region
          %s256 = ssub.s32 4096, 4096
          %257 = vsyncadd [#allocation8], %s256
          %s258 = sshll.u32 [#allocation7], 4
          %s259 = int_to_ptr.vmem [resolvable:$true] %s258
          %264 = dma.hbm_to_vmem [thread:$0]  %s0, 4096, %s259, [#allocation8], 64, 64, 4
        $region16: #{tpu_custom_call.1} parent=11 // pred_fallthru
          _
        // Predicated region
        $region17: #{tpu_custom_call.1} parent=11 // pred_check
          %p265 = pneg %p86
        $region18: #{tpu_custom_call.1} parent=11 // pred_check_branch
          %267 = sbr.rel (%p265) target = $region20
        $region19: #{tpu_custom_call.1} parent=11 // pred_region
          %s269 = ssub.s32 16384, 16384
          %270 = vsyncadd [#allocation11], %s269
          %s271 = sshll.u32 [#allocation10], 4
          %s272 = int_to_ptr.vmem [resolvable:$true] %s271
          %277 = dma.hbm_to_vmem [thread:$0]  %s1, 16384, %s272, [#allocation11], 256, 256, 16
        $region20: #{tpu_custom_call.1} parent=11 // pred_fallthru
          _
        // Predicated region
        $region21: #{tpu_custom_call.1} parent=11 // pred_check
          %p278 = pneg %p107
        $region22: #{tpu_custom_call.1} parent=11 // pred_check_branch
          %280 = sbr.rel (%p278) target = $region24
        $region23: #{tpu_custom_call.1} parent=11 // pred_region
          %s282 = ssub.s32 512, 512
          %283 = vsyncadd [#allocation11], %s282
          %s285 = sshll.u32 [#allocation12], 4
          %s286 = int_to_ptr.vmem [resolvable:$true] %s285
          %288 = dma.hbm_to_vmem [thread:$0]  %s2, 512, %s286, [#allocation11]
        $region24: #{tpu_custom_call.1} parent=11 // pred_fallthru
          _
      $region12: #{tpu_custom_call.1} parent=5 // pred_fallthru
        _
      %p289 = scmp.lt.s32.totalorder %s25, 8
      // Predicated region
      $region25: #{tpu_custom_call.1} parent=5 // pred_check
        %p290 = pneg %p289
      $region26: #{tpu_custom_call.1} parent=5 // pred_check_branch
        %292 = sbr.rel (%p290) target = $region28
      $region27: #{tpu_custom_call.1} parent=5 // pred_region
        // Predicated region
        $region29: #{tpu_custom_call.1} parent=27 // pred_check
          %p293 = pneg %p127
        $region30: #{tpu_custom_call.1} parent=27 // pred_check_branch
          %295 = sbr.rel (%p293) target = $region32
        $region31: #{tpu_custom_call.1} parent=27 // pred_region
          %s296 = sand.u32 %s25, 1
          %s297 = scalar_lea.sflag [#allocation14], %s296
          %s298 = sand.u32 %s117, 1
          %s299 = smul.addr %s298, 64
          %s300 = scalar_lea.vmem [#allocation13], %s299
          %s302 = ssub.s32 1024, 1024
          %303 = vsyncadd %s297, %s302
          %s304 = smul.addr %s32, 16
          %s305 = smul.addr %s304, 64
          %s306 = scalar_lea.hbm %s3, %s305
          %s307 = sshll.u32 %s300, 4
          %s308 = int_to_ptr.vmem [resolvable:$true] %s307
          %313 = dma.hbm_to_vmem [thread:$0]  %s306, 1024, %s308, %s297, 64, 64, 4
        $region32: #{tpu_custom_call.1} parent=27 // pred_fallthru
          _
        // Predicated region
        $region33: #{tpu_custom_call.1} parent=27 // pred_check
          %p314 = pneg %p153
        $region34: #{tpu_custom_call.1} parent=27 // pred_check_branch
          %316 = sbr.rel (%p314) target = $region36
        $region35: #{tpu_custom_call.1} parent=27 // pred_region
          %s317 = sand.u32 %s25, 1
          %s318 = scalar_lea.sflag [#allocation14], %s317
          %s319 = sand.u32 %s143, 1
          %s320 = smul.addr %s319, 64
          %s321 = scalar_lea.vmem [#allocation15], %s320
          %s323 = ssub.s32 1024, 1024
          %324 = vsyncadd %s318, %s323
          %s325 = smul.addr %s32, 16
          %s326 = smul.addr %s325, 64
          %s327 = scalar_lea.hbm %s4, %s326
          %s328 = sshll.u32 %s321, 4
          %s329 = int_to_ptr.vmem [resolvable:$true] %s328
          %334 = dma.hbm_to_vmem [thread:$0]  %s327, 1024, %s329, %s318, 64, 64, 4
        $region36: #{tpu_custom_call.1} parent=27 // pred_fallthru
          _
        // Predicated region
        $region37: #{tpu_custom_call.1} parent=27 // pred_check
          %p335 = pneg %p179
        $region38: #{tpu_custom_call.1} parent=27 // pred_check_branch
          %337 = sbr.rel (%p335) target = $region40
        $region39: #{tpu_custom_call.1} parent=27 // pred_region
          %p338 = scmp.lt.s32.totalorder %s32, 1
          %s339 = scalar_select %p338, %s32, 1
          %s340 = smul.addr %s339, 4
          %s341 = scalar_lea.vmem %s5, %s340
        $region40: #{tpu_custom_call.1} parent=27 // pred_fallthru
          _
      $region28: #{tpu_custom_call.1} parent=5 // pred_fallthru
        _
      %p342 = scmp.le.s32.totalorder 1, %s25
      %p343 = scmp.lt.s32.totalorder %s25, 9
      %p344 = pnand %p342, %p343
      %p345 = pneg %p344
      // Predicated region
      $region41: #{tpu_custom_call.1} parent=5 // pred_check
        _
      $region42: #{tpu_custom_call.1} parent=5 // pred_check_branch
        %347 = sbr.rel (%p344) target = $region44
      $region43: #{tpu_custom_call.1} parent=5 // pred_region
        %s348 = ssub.s32 %s25, 1
        // Predicated region
        $region45: #{tpu_custom_call.1} parent=43 // pred_check
          %p349 = pneg %p65
        $region46: #{tpu_custom_call.1} parent=43 // pred_check_branch
          %351 = sbr.rel (%p349) target = $region48
        $region47: #{tpu_custom_call.1} parent=43 // pred_region
          %352 = dma.done [#allocation8], 4096
        $region48: #{tpu_custom_call.1} parent=43 // pred_fallthru
          _
        // Predicated region
        $region49: #{tpu_custom_call.1} parent=43 // pred_check
          %p353 = pneg %p86
        $region50: #{tpu_custom_call.1} parent=43 // pred_check_branch
          %355 = sbr.rel (%p353) target = $region52
        $region51: #{tpu_custom_call.1} parent=43 // pred_region
          %356 = dma.done [#allocation11], 16384
        $region52: #{tpu_custom_call.1} parent=43 // pred_fallthru
          _
        // Predicated region
        $region53: #{tpu_custom_call.1} parent=43 // pred_check
          %p357 = pneg %p107
        $region54: #{tpu_custom_call.1} parent=43 // pred_check_branch
          %359 = sbr.rel (%p357) target = $region56
        $region55: #{tpu_custom_call.1} parent=43 // pred_region
          %360 = dma.done [#allocation11], 512
        $region56: #{tpu_custom_call.1} parent=43 // pred_fallthru
          _
        %s361 = sand.u32 %s30, 1
        %s362 = scalar_lea.sflag [#allocation14], %s361
        %s363 = sand.u32 %s120, 1
        %s364 = smul.addr %s363, 64
        %s365 = scalar_lea.vmem [#allocation13], %s364
        // Predicated region
        $region57: #{tpu_custom_call.1} parent=43 // pred_check
          %p366 = pneg %p133
        $region58: #{tpu_custom_call.1} parent=43 // pred_check_branch
          %368 = sbr.rel (%p366) target = $region60
        $region59: #{tpu_custom_call.1} parent=43 // pred_region
          %369 = dma.done %s362, 1024
        $region60: #{tpu_custom_call.1} parent=43 // pred_fallthru
          _
        %s370 = sand.u32 %s30, 1
        %s371 = scalar_lea.sflag [#allocation14], %s370
        %s372 = sand.u32 %s146, 1
        %s373 = smul.addr %s372, 64
        %s374 = scalar_lea.vmem [#allocation15], %s373
        // Predicated region
        $region61: #{tpu_custom_call.1} parent=43 // pred_check
          %p375 = pneg %p159
        $region62: #{tpu_custom_call.1} parent=43 // pred_check_branch
          %377 = sbr.rel (%p375) target = $region64
        $region63: #{tpu_custom_call.1} parent=43 // pred_region
          %378 = dma.done %s371, 1024
        $region64: #{tpu_custom_call.1} parent=43 // pred_fallthru
          _
        %p379 = pneg %p65
        %p380 = pneg %p62
        %p381 = pneg %p86
        %p382 = pneg %p83
        %p383 = pneg %p107
        %p384 = pneg %p104
        %s385 = sand.u32 %s30, 1
        %s386 = scalar_lea.sflag [#allocation14], %s385
        %s387 = sand.u32 %s120, 1
        %s388 = smul.addr %s387, 64
        %s389 = scalar_lea.vmem [#allocation13], %s388
        %p390 = pneg %p133
        %p391 = pneg %p130
        %s392 = sand.u32 %s30, 1
        %s393 = scalar_lea.sflag [#allocation14], %s392
        %s394 = sand.u32 %s146, 1
        %s395 = smul.addr %s394, 64
        %s396 = scalar_lea.vmem [#allocation15], %s395
        %p397 = pneg %p159
        %p398 = pneg %p156
        %p399 = scmp.lt.s32.totalorder %s35, 1
        %s400 = scalar_select %p399, %s35, 1
        %s401 = smul.addr %s400, 4
        %s402 = scalar_lea.vmem %s5, %s401
        %p403 = pneg %p185
        %p404 = pneg %p182
        %p405 = pneg %p211
        %p406 = pneg %p208
        %s407 = sand.u32 %s198, 1
        %s408 = scalar_lea.sflag [#allocation9], %s407
        %s409 = sand.u32 %s198, 1
        %s410 = smul.addr %s409, 512
        %s411 = scalar_lea.vmem [#allocation16], %s410
        %p412 = pneg %p237
        %p413 = pneg %p234
        %s414 = sand.u32 %s224, 1
        %s415 = scalar_lea.sflag [#allocation18], %s414
        %s416 = sand.u32 %s224, 1
        %s417 = smul.addr %s416, 8
        %s418 = scalar_lea.vmem [#allocation17], %s417
        %p419 = scmp.lt.s32.totalorder %s35, 1
        %s420 = scalar_select %p419, %s35, 1
        %s421 = smul.addr %s420, 4
        %s422 = scalar_lea.vmem %s5, %s421
        %s424 = smul.u32 %s37, 256
        %p425 = scmp.eq.s32.totalorder %s35, 0
        %p426 = scmp.eq.s32.totalorder %s36, 0
        %p427 = scmp.eq.s32.totalorder %s37, 0
        %p428 = pnand %p426, %p427
        %p429 = pneg %p428
        %p430 = pnand %p425, %p429
        %p431 = pneg %p430
        // Predicated region
        $region65: #{tpu_custom_call.1} parent=43 // pred_check
          _
        $region66: #{tpu_custom_call.1} parent=43 // pred_check_branch
          %433 = sbr.rel (%p430) target = $region68
        $region67: #{tpu_custom_call.1} parent=43 // pred_region
          %v434 = vld [vmem:[#allocation7] sm:$0xf]
          %v435 = vld [vmem:[#allocation7 + $0x4] sm:$0xf]
          %v436 = vld [vmem:[#allocation7 + $0x8] sm:$0xf]
          %v437 = vld [vmem:[#allocation7 + $0xc] sm:$0xf]
          %v438 = vld [vmem:[#allocation7 + $0x10] sm:$0xf]
          %v439 = vld [vmem:[#allocation7 + $0x14] sm:$0xf]
          %v440 = vld [vmem:[#allocation7 + $0x18] sm:$0xf]
          %v441 = vld [vmem:[#allocation7 + $0x1c] sm:$0xf]
          %v442 = vld [vmem:[#allocation7 + $0x20] sm:$0xf]
          %v443 = vld [vmem:[#allocation7 + $0x24] sm:$0xf]
          %v444 = vld [vmem:[#allocation7 + $0x28] sm:$0xf]
          %v445 = vld [vmem:[#allocation7 + $0x2c] sm:$0xf]
          %v446 = vld [vmem:[#allocation7 + $0x30] sm:$0xf]
          %v447 = vld [vmem:[#allocation7 + $0x34] sm:$0xf]
          %v448 = vld [vmem:[#allocation7 + $0x38] sm:$0xf]
          %v449 = vld [vmem:[#allocation7 + $0x3c] sm:$0xf]
          %v450 = vld [vmem:[#allocation7 + $0x40] sm:$0xf]
          %v451 = vld [vmem:[#allocation7 + $0x44] sm:$0xf]
          %v452 = vld [vmem:[#allocation7 + $0x48] sm:$0xf]
          %v453 = vld [vmem:[#allocation7 + $0x4c] sm:$0xf]
          %v454 = vld [vmem:[#allocation7 + $0x50] sm:$0xf]
          %v455 = vld [vmem:[#allocation7 + $0x54] sm:$0xf]
          %v456 = vld [vmem:[#allocation7 + $0x58] sm:$0xf]
          %v457 = vld [vmem:[#allocation7 + $0x5c] sm:$0xf]
          %v458 = vld [vmem:[#allocation7 + $0x60] sm:$0xf]
          %v459 = vld [vmem:[#allocation7 + $0x64] sm:$0xf]
          %v460 = vld [vmem:[#allocation7 + $0x68] sm:$0xf]
          %v461 = vld [vmem:[#allocation7 + $0x6c] sm:$0xf]
          %v462 = vld [vmem:[#allocation7 + $0x70] sm:$0xf]
          %v463 = vld [vmem:[#allocation7 + $0x74] sm:$0xf]
          %v464 = vld [vmem:[#allocation7 + $0x78] sm:$0xf]
          %v465 = vld [vmem:[#allocation7 + $0x7c] sm:$0xf]
          %v466 = vld [vmem:[#allocation7 + $0x80] sm:$0xf]
          %v467 = vld [vmem:[#allocation7 + $0x84] sm:$0xf]
          %v468 = vld [vmem:[#allocation7 + $0x88] sm:$0xf]
          %v469 = vld [vmem:[#allocation7 + $0x8c] sm:$0xf]
          %v470 = vld [vmem:[#allocation7 + $0x90] sm:$0xf]
          %v471 = vld [vmem:[#allocation7 + $0x94] sm:$0xf]
          %v472 = vld [vmem:[#allocation7 + $0x98] sm:$0xf]
          %v473 = vld [vmem:[#allocation7 + $0x9c] sm:$0xf]
          %v474 = vld [vmem:[#allocation7 + $0xa0] sm:$0xf]
          %v475 = vld [vmem:[#allocation7 + $0xa4] sm:$0xf]
          %v476 = vld [vmem:[#allocation7 + $0xa8] sm:$0xf]
          %v477 = vld [vmem:[#allocation7 + $0xac] sm:$0xf]
          %v478 = vld [vmem:[#allocation7 + $0xb0] sm:$0xf]
          %v479 = vld [vmem:[#allocation7 + $0xb4] sm:$0xf]
          %v480 = vld [vmem:[#allocation7 + $0xb8] sm:$0xf]
          %v481 = vld [vmem:[#allocation7 + $0xbc] sm:$0xf]
          %v482 = vld [vmem:[#allocation7 + $0xc0] sm:$0xf]
          %v483 = vld [vmem:[#allocation7 + $0xc4] sm:$0xf]
          %v484 = vld [vmem:[#allocation7 + $0xc8] sm:$0xf]
          %v485 = vld [vmem:[#allocation7 + $0xcc] sm:$0xf]
          %v486 = vld [vmem:[#allocation7 + $0xd0] sm:$0xf]
          %v487 = vld [vmem:[#allocation7 + $0xd4] sm:$0xf]
          %v488 = vld [vmem:[#allocation7 + $0xd8] sm:$0xf]
          %v489 = vld [vmem:[#allocation7 + $0xdc] sm:$0xf]
          %v490 = vld [vmem:[#allocation7 + $0xe0] sm:$0xf]
          %v491 = vld [vmem:[#allocation7 + $0xe4] sm:$0xf]
          %v492 = vld [vmem:[#allocation7 + $0xe8] sm:$0xf]
          %v493 = vld [vmem:[#allocation7 + $0xec] sm:$0xf]
          %v494 = vld [vmem:[#allocation7 + $0xf0] sm:$0xf]
          %v495 = vld [vmem:[#allocation7 + $0xf4] sm:$0xf]
          %v496 = vld [vmem:[#allocation7 + $0xf8] sm:$0xf]
          %v497 = vld [vmem:[#allocation7 + $0xfc] sm:$0xf]
          %498 = vst [vmem:[#allocation2] sm:$0xf] %v434
          %499 = vst [vmem:[#allocation2 + $0x4] sm:$0xf] %v435
          %500 = vst [vmem:[#allocation2 + $0x8] sm:$0xf] %v436
          %501 = vst [vmem:[#allocation2 + $0xc] sm:$0xf] %v437
          %502 = vst [vmem:[#allocation2 + $0x10] sm:$0xf] %v438
          %503 = vst [vmem:[#allocation2 + $0x14] sm:$0xf] %v439
          %504 = vst [vmem:[#allocation2 + $0x18] sm:$0xf] %v440
          %505 = vst [vmem:[#allocation2 + $0x1c] sm:$0xf] %v441
          %506 = vst [vmem:[#allocation2 + $0x20] sm:$0xf] %v442
          %507 = vst [vmem:[#allocation2 + $0x24] sm:$0xf] %v443
          %508 = vst [vmem:[#allocation2 + $0x28] sm:$0xf] %v444
          %509 = vst [vmem:[#allocation2 + $0x2c] sm:$0xf] %v445
          %510 = vst [vmem:[#allocation2 + $0x30] sm:$0xf] %v446
          %511 = vst [vmem:[#allocation2 + $0x34] sm:$0xf] %v447
          %512 = vst [vmem:[#allocation2 + $0x38] sm:$0xf] %v448
          %513 = vst [vmem:[#allocation2 + $0x3c] sm:$0xf] %v449
          %514 = vst [vmem:[#allocation2 + $0x40] sm:$0xf] %v450
          %515 = vst [vmem:[#allocation2 + $0x44] sm:$0xf] %v451
          %516 = vst [vmem:[#allocation2 + $0x48] sm:$0xf] %v452
          %517 = vst [vmem:[#allocation2 + $0x4c] sm:$0xf] %v453
          %518 = vst [vmem:[#allocation2 + $0x50] sm:$0xf] %v454
          %519 = vst [vmem:[#allocation2 + $0x54] sm:$0xf] %v455
          %520 = vst [vmem:[#allocation2 + $0x58] sm:$0xf] %v456
          %521 = vst [vmem:[#allocation2 + $0x5c] sm:$0xf] %v457
          %522 = vst [vmem:[#allocation2 + $0x60] sm:$0xf] %v458
          %523 = vst [vmem:[#allocation2 + $0x64] sm:$0xf] %v459
          %524 = vst [vmem:[#allocation2 + $0x68] sm:$0xf] %v460
          %525 = vst [vmem:[#allocation2 + $0x6c] sm:$0xf] %v461
          %526 = vst [vmem:[#allocation2 + $0x70] sm:$0xf] %v462
          %527 = vst [vmem:[#allocation2 + $0x74] sm:$0xf] %v463
          %528 = vst [vmem:[#allocation2 + $0x78] sm:$0xf] %v464
          %529 = vst [vmem:[#allocation2 + $0x7c] sm:$0xf] %v465
          %530 = vst [vmem:[#allocation2 + $0x80] sm:$0xf] %v466
          %531 = vst [vmem:[#allocation2 + $0x84] sm:$0xf] %v467
          %532 = vst [vmem:[#allocation2 + $0x88] sm:$0xf] %v468
          %533 = vst [vmem:[#allocation2 + $0x8c] sm:$0xf] %v469
          %534 = vst [vmem:[#allocation2 + $0x90] sm:$0xf] %v470
          %535 = vst [vmem:[#allocation2 + $0x94] sm:$0xf] %v471
          %536 = vst [vmem:[#allocation2 + $0x98] sm:$0xf] %v472
          %537 = vst [vmem:[#allocation2 + $0x9c] sm:$0xf] %v473
          %538 = vst [vmem:[#allocation2 + $0xa0] sm:$0xf] %v474
          %539 = vst [vmem:[#allocation2 + $0xa4] sm:$0xf] %v475
          %540 = vst [vmem:[#allocation2 + $0xa8] sm:$0xf] %v476
          %541 = vst [vmem:[#allocation2 + $0xac] sm:$0xf] %v477
          %542 = vst [vmem:[#allocation2 + $0xb0] sm:$0xf] %v478
          %543 = vst [vmem:[#allocation2 + $0xb4] sm:$0xf] %v479
          %544 = vst [vmem:[#allocation2 + $0xb8] sm:$0xf] %v480
          %545 = vst [vmem:[#allocation2 + $0xbc] sm:$0xf] %v481
          %546 = vst [vmem:[#allocation2 + $0xc0] sm:$0xf] %v482
          %547 = vst [vmem:[#allocation2 + $0xc4] sm:$0xf] %v483
          %548 = vst [vmem:[#allocation2 + $0xc8] sm:$0xf] %v484
          %549 = vst [vmem:[#allocation2 + $0xcc] sm:$0xf] %v485
          %550 = vst [vmem:[#allocation2 + $0xd0] sm:$0xf] %v486
          %551 = vst [vmem:[#allocation2 + $0xd4] sm:$0xf] %v487
          %552 = vst [vmem:[#allocation2 + $0xd8] sm:$0xf] %v488
          %553 = vst [vmem:[#allocation2 + $0xdc] sm:$0xf] %v489
          %554 = vst [vmem:[#allocation2 + $0xe0] sm:$0xf] %v490
          %555 = vst [vmem:[#allocation2 + $0xe4] sm:$0xf] %v491
          %556 = vst [vmem:[#allocation2 + $0xe8] sm:$0xf] %v492
          %557 = vst [vmem:[#allocation2 + $0xec] sm:$0xf] %v493
          %558 = vst [vmem:[#allocation2 + $0xf0] sm:$0xf] %v494
          %559 = vst [vmem:[#allocation2 + $0xf4] sm:$0xf] %v495
          %560 = vst [vmem:[#allocation2 + $0xf8] sm:$0xf] %v496
          %561 = vst [vmem:[#allocation2 + $0xfc] sm:$0xf] %v497
        $region68: #{tpu_custom_call.1} parent=43 // pred_fallthru
          _
        // Predicated region
        $region69: #{tpu_custom_call.1} parent=43 // pred_check
          %p562 = pneg %p426
        $region70: #{tpu_custom_call.1} parent=43 // pred_check_branch
          %564 = sbr.rel (%p562) target = $region72
        $region71: #{tpu_custom_call.1} parent=43 // pred_region
          // Predicated region
          $region73: #{tpu_custom_call.1} parent=71 // pred_check
            %p565 = pneg %p427
          $region74: #{tpu_custom_call.1} parent=71 // pred_check_branch
            %567 = sbr.rel (%p565) target = $region76
          $region75: #{tpu_custom_call.1} parent=71 // pred_region
            %568 = vst [vmem:[#allocation4] sm:$0x1] 0.0
            %569 = vst [vmem:[#allocation5] sm:$0x1] 0.0
            %570 = vst [vmem:[#allocation6] sm:$0xff] 0.0
          $region76: #{tpu_custom_call.1} parent=71 // pred_fallthru
            _
          %v571 = vld [vmem:[%s422] sm:$0xf]
          %s572 = sshra.s32 %s424, 3
          %s573 = sand.u32 %s424, 7
          %s574 = smul.u32 %s572, 4
          %s575 = smul.addr %s574, 4
          %s576 = scalar_lea.vmem [#allocation10], %s575
          %v577 = vld [vmem:[%s576] sm:$0xff]
          %v578 = vld [vmem:[%s576 + $0x8] sm:$0xff]
          %v579 = vld [vmem:[%s576 + $0x10] sm:$0xff]
          %v580 = vld [vmem:[%s576 + $0x18] sm:$0xff]
          %v581 = vld [vmem:[%s576 + $0x20] sm:$0xff]
          %v582 = vld [vmem:[%s576 + $0x28] sm:$0xff]
          %v583 = vld [vmem:[%s576 + $0x30] sm:$0xff]
          %v584 = vld [vmem:[%s576 + $0x38] sm:$0xff]
          %v585 = vld [vmem:[%s576 + $0x40] sm:$0xff]
          %v586 = vld [vmem:[%s576 + $0x48] sm:$0xff]
          %v587 = vld [vmem:[%s576 + $0x50] sm:$0xff]
          %v588 = vld [vmem:[%s576 + $0x58] sm:$0xff]
          %v589 = vld [vmem:[%s576 + $0x60] sm:$0xff]
          %v590 = vld [vmem:[%s576 + $0x68] sm:$0xff]
          %v591 = vld [vmem:[%s576 + $0x70] sm:$0xff]
          %v592 = vld [vmem:[%s576 + $0x78] sm:$0xff]
          %v593 = vld [vmem:[%s576 + $0x80] sm:$0xff]
          %v594 = vld [vmem:[%s576 + $0x88] sm:$0xff]
          %v595 = vld [vmem:[%s576 + $0x90] sm:$0xff]
          %v596 = vld [vmem:[%s576 + $0x98] sm:$0xff]
          %v597 = vld [vmem:[%s576 + $0xa0] sm:$0xff]
          %v598 = vld [vmem:[%s576 + $0xa8] sm:$0xff]
          %v599 = vld [vmem:[%s576 + $0xb0] sm:$0xff]
          %v600 = vld [vmem:[%s576 + $0xb8] sm:$0xff]
          %v601 = vld [vmem:[%s576 + $0xc0] sm:$0xff]
          %v602 = vld [vmem:[%s576 + $0xc8] sm:$0xff]
          %v603 = vld [vmem:[%s576 + $0xd0] sm:$0xff]
          %v604 = vld [vmem:[%s576 + $0xd8] sm:$0xff]
          %v605 = vld [vmem:[%s576 + $0xe0] sm:$0xff]
          %v606 = vld [vmem:[%s576 + $0xe8] sm:$0xff]
          %v607 = vld [vmem:[%s576 + $0xf0] sm:$0xff]
          %v608 = vld [vmem:[%s576 + $0xf8] sm:$0xff]
          %v609 = vld [vmem:[%s576 + $0x100] sm:$0xff]
          %v610 = vld [vmem:[%s576 + $0x108] sm:$0xff]
          %v611 = vld [vmem:[%s576 + $0x110] sm:$0xff]
          %v612 = vld [vmem:[%s576 + $0x118] sm:$0xff]
          %v613 = vld [vmem:[%s576 + $0x120] sm:$0xff]
          %v614 = vld [vmem:[%s576 + $0x128] sm:$0xff]
          %v615 = vld [vmem:[%s576 + $0x130] sm:$0xff]
          %v616 = vld [vmem:[%s576 + $0x138] sm:$0xff]
          %v617 = vld [vmem:[%s576 + $0x140] sm:$0xff]
          %v618 = vld [vmem:[%s576 + $0x148] sm:$0xff]
          %v619 = vld [vmem:[%s576 + $0x150] sm:$0xff]
          %v620 = vld [vmem:[%s576 + $0x158] sm:$0xff]
          %v621 = vld [vmem:[%s576 + $0x160] sm:$0xff]
          %v622 = vld [vmem:[%s576 + $0x168] sm:$0xff]
          %v623 = vld [vmem:[%s576 + $0x170] sm:$0xff]
          %v624 = vld [vmem:[%s576 + $0x178] sm:$0xff]
          %v625 = vld [vmem:[%s576 + $0x180] sm:$0xff]
          %v626 = vld [vmem:[%s576 + $0x188] sm:$0xff]
          %v627 = vld [vmem:[%s576 + $0x190] sm:$0xff]
          %v628 = vld [vmem:[%s576 + $0x198] sm:$0xff]
          %v629 = vld [vmem:[%s576 + $0x1a0] sm:$0xff]
          %v630 = vld [vmem:[%s576 + $0x1a8] sm:$0xff]
          %v631 = vld [vmem:[%s576 + $0x1b0] sm:$0xff]
          %v632 = vld [vmem:[%s576 + $0x1b8] sm:$0xff]
          %v633 = vld [vmem:[%s576 + $0x1c0] sm:$0xff]
          %v634 = vld [vmem:[%s576 + $0x1c8] sm:$0xff]
          %v635 = vld [vmem:[%s576 + $0x1d0] sm:$0xff]
          %v636 = vld [vmem:[%s576 + $0x1d8] sm:$0xff]
          %v637 = vld [vmem:[%s576 + $0x1e0] sm:$0xff]
          %v638 = vld [vmem:[%s576 + $0x1e8] sm:$0xff]
          %v639 = vld [vmem:[%s576 + $0x1f0] sm:$0xff]
          %v640 = vld [vmem:[%s576 + $0x1f8] sm:$0xff]
          %v641 = vld [vmem:[#allocation2] sm:$0xf]
          %v642 = vld [vmem:[#allocation2 + $0x4] sm:$0xf]
          %v643 = vld [vmem:[#allocation2 + $0x8] sm:$0xf]
          %v644 = vld [vmem:[#allocation2 + $0xc] sm:$0xf]
          %v645 = vld [vmem:[#allocation2 + $0x10] sm:$0xf]
          %v646 = vld [vmem:[#allocation2 + $0x14] sm:$0xf]
          %v647 = vld [vmem:[#allocation2 + $0x18] sm:$0xf]
          %v648 = vld [vmem:[#allocation2 + $0x1c] sm:$0xf]
          %v649 = vld [vmem:[#allocation2 + $0x20] sm:$0xf]
          %v650 = vld [vmem:[#allocation2 + $0x24] sm:$0xf]
          %v651 = vld [vmem:[#allocation2 + $0x28] sm:$0xf]
          %v652 = vld [vmem:[#allocation2 + $0x2c] sm:$0xf]
          %v653 = vld [vmem:[#allocation2 + $0x30] sm:$0xf]
          %v654 = vld [vmem:[#allocation2 + $0x34] sm:$0xf]
          %v655 = vld [vmem:[#allocation2 + $0x38] sm:$0xf]
          %v656 = vld [vmem:[#allocation2 + $0x3c] sm:$0xf]
          %v657 = vld [vmem:[#allocation2 + $0x40] sm:$0xf]
          %v658 = vld [vmem:[#allocation2 + $0x44] sm:$0xf]
          %v659 = vld [vmem:[#allocation2 + $0x48] sm:$0xf]
          %v660 = vld [vmem:[#allocation2 + $0x4c] sm:$0xf]
          %v661 = vld [vmem:[#allocation2 + $0x50] sm:$0xf]
          %v662 = vld [vmem:[#allocation2 + $0x54] sm:$0xf]
          %v663 = vld [vmem:[#allocation2 + $0x58] sm:$0xf]
          %v664 = vld [vmem:[#allocation2 + $0x5c] sm:$0xf]
          %v665 = vld [vmem:[#allocation2 + $0x60] sm:$0xf]
          %v666 = vld [vmem:[#allocation2 + $0x64] sm:$0xf]
          %v667 = vld [vmem:[#allocation2 + $0x68] sm:$0xf]
          %v668 = vld [vmem:[#allocation2 + $0x6c] sm:$0xf]
          %v669 = vld [vmem:[#allocation2 + $0x70] sm:$0xf]
          %v670 = vld [vmem:[#allocation2 + $0x74] sm:$0xf]
          %v671 = vld [vmem:[#allocation2 + $0x78] sm:$0xf]
          %v672 = vld [vmem:[#allocation2 + $0x7c] sm:$0xf]
          %v673 = vld [vmem:[#allocation2 + $0x80] sm:$0xf]
          %v674 = vld [vmem:[#allocation2 + $0x84] sm:$0xf]
          %v675 = vld [vmem:[#allocation2 + $0x88] sm:$0xf]
          %v676 = vld [vmem:[#allocation2 + $0x8c] sm:$0xf]
          %v677 = vld [vmem:[#allocation2 + $0x90] sm:$0xf]
          %v678 = vld [vmem:[#allocation2 + $0x94] sm:$0xf]
          %v679 = vld [vmem:[#allocation2 + $0x98] sm:$0xf]
          %v680 = vld [vmem:[#allocation2 + $0x9c] sm:$0xf]
          %v681 = vld [vmem:[#allocation2 + $0xa0] sm:$0xf]
          %v682 = vld [vmem:[#allocation2 + $0xa4] sm:$0xf]
          %v683 = vld [vmem:[#allocation2 + $0xa8] sm:$0xf]
          %v684 = vld [vmem:[#allocation2 + $0xac] sm:$0xf]
          %v685 = vld [vmem:[#allocation2 + $0xb0] sm:$0xf]
          %v686 = vld [vmem:[#allocation2 + $0xb4] sm:$0xf]
          %v687 = vld [vmem:[#allocation2 + $0xb8] sm:$0xf]
          %v688 = vld [vmem:[#allocation2 + $0xbc] sm:$0xf]
          %v689 = vld [vmem:[#allocation2 + $0xc0] sm:$0xf]
          %v690 = vld [vmem:[#allocation2 + $0xc4] sm:$0xf]
          %v691 = vld [vmem:[#allocation2 + $0xc8] sm:$0xf]
          %v692 = vld [vmem:[#allocation2 + $0xcc] sm:$0xf]
          %v693 = vld [vmem:[#allocation2 + $0xd0] sm:$0xf]
          %v694 = vld [vmem:[#allocation2 + $0xd4] sm:$0xf]
          %v695 = vld [vmem:[#allocation2 + $0xd8] sm:$0xf]
          %v696 = vld [vmem:[#allocation2 + $0xdc] sm:$0xf]
          %v697 = vld [vmem:[#allocation2 + $0xe0] sm:$0xf]
          %v698 = vld [vmem:[#allocation2 + $0xe4] sm:$0xf]
          %v699 = vld [vmem:[#allocation2 + $0xe8] sm:$0xf]
          %v700 = vld [vmem:[#allocation2 + $0xec] sm:$0xf]
          %v701 = vld [vmem:[#allocation2 + $0xf0] sm:$0xf]
          %v702 = vld [vmem:[#allocation2 + $0xf4] sm:$0xf]
          %v703 = vld [vmem:[#allocation2 + $0xf8] sm:$0xf]
          %v704 = vld [vmem:[#allocation2 + $0xfc] sm:$0xf]
          %v769 = vunpack.c.l.b16 %v577
          %v770 = vunpack.c.h.b16 %v577
          %v771 = vunpack.c.l.b16 %v578
          %v772 = vunpack.c.h.b16 %v578
          %v773 = vunpack.c.l.b16 %v579
          %v774 = vunpack.c.h.b16 %v579
          %v775 = vunpack.c.l.b16 %v580
          %v776 = vunpack.c.h.b16 %v580
          %v777 = vunpack.c.l.b16 %v581
          %v778 = vunpack.c.h.b16 %v581
          %v779 = vunpack.c.l.b16 %v582
          %v780 = vunpack.c.h.b16 %v582
          %v781 = vunpack.c.l.b16 %v583
          %v782 = vunpack.c.h.b16 %v583
          %v783 = vunpack.c.l.b16 %v584
          %v784 = vunpack.c.h.b16 %v584
          %v785 = vunpack.c.l.b16 %v585
          %v786 = vunpack.c.h.b16 %v585
          %v787 = vunpack.c.l.b16 %v586
          %v788 = vunpack.c.h.b16 %v586
          %v789 = vunpack.c.l.b16 %v587
          %v790 = vunpack.c.h.b16 %v587
          %v791 = vunpack.c.l.b16 %v588
          %v792 = vunpack.c.h.b16 %v588
          %v793 = vunpack.c.l.b16 %v589
          %v794 = vunpack.c.h.b16 %v589
          %v795 = vunpack.c.l.b16 %v590
          %v796 = vunpack.c.h.b16 %v590
          %v797 = vunpack.c.l.b16 %v591
          %v798 = vunpack.c.h.b16 %v591
          %v799 = vunpack.c.l.b16 %v592
          %v800 = vunpack.c.h.b16 %v592
          %v801 = vunpack.c.l.b16 %v593
          %v802 = vunpack.c.h.b16 %v593
          %v803 = vunpack.c.l.b16 %v594
          %v804 = vunpack.c.h.b16 %v594
          %v805 = vunpack.c.l.b16 %v595
          %v806 = vunpack.c.h.b16 %v595
          %v807 = vunpack.c.l.b16 %v596
          %v808 = vunpack.c.h.b16 %v596
          %v809 = vunpack.c.l.b16 %v597
          %v810 = vunpack.c.h.b16 %v597
          %v811 = vunpack.c.l.b16 %v598
          %v812 = vunpack.c.h.b16 %v598
          %v813 = vunpack.c.l.b16 %v599
          %v814 = vunpack.c.h.b16 %v599
          %v815 = vunpack.c.l.b16 %v600
          %v816 = vunpack.c.h.b16 %v600
          %v817 = vunpack.c.l.b16 %v601
          %v818 = vunpack.c.h.b16 %v601
          %v819 = vunpack.c.l.b16 %v602
          %v820 = vunpack.c.h.b16 %v602
          %v821 = vunpack.c.l.b16 %v603
          %v822 = vunpack.c.h.b16 %v603
          %v823 = vunpack.c.l.b16 %v604
          %v824 = vunpack.c.h.b16 %v604
          %v825 = vunpack.c.l.b16 %v605
          %v826 = vunpack.c.h.b16 %v605
          %v827 = vunpack.c.l.b16 %v606
          %v828 = vunpack.c.h.b16 %v606
          %v829 = vunpack.c.l.b16 %v607
          %v830 = vunpack.c.h.b16 %v607
          %v831 = vunpack.c.l.b16 %v608
          %v832 = vunpack.c.h.b16 %v608
          %v833 = vunpack.c.l.b16 %v609
          %v834 = vunpack.c.h.b16 %v609
          %v835 = vunpack.c.l.b16 %v610
          %v836 = vunpack.c.h.b16 %v610
          %v837 = vunpack.c.l.b16 %v611
          %v838 = vunpack.c.h.b16 %v611
          %v839 = vunpack.c.l.b16 %v612
          %v840 = vunpack.c.h.b16 %v612
          %v841 = vunpack.c.l.b16 %v613
          %v842 = vunpack.c.h.b16 %v613
          %v843 = vunpack.c.l.b16 %v614
          %v844 = vunpack.c.h.b16 %v614
          %v845 = vunpack.c.l.b16 %v615
          %v846 = vunpack.c.h.b16 %v615
          %v847 = vunpack.c.l.b16 %v616
          %v848 = vunpack.c.h.b16 %v616
          %v849 = vunpack.c.l.b16 %v617
          %v850 = vunpack.c.h.b16 %v617
          %v851 = vunpack.c.l.b16 %v618
          %v852 = vunpack.c.h.b16 %v618
          %v853 = vunpack.c.l.b16 %v619
          %v854 = vunpack.c.h.b16 %v619
          %v855 = vunpack.c.l.b16 %v620
          %v856 = vunpack.c.h.b16 %v620
          %v857 = vunpack.c.l.b16 %v621
          %v858 = vunpack.c.h.b16 %v621
          %v859 = vunpack.c.l.b16 %v622
          %v860 = vunpack.c.h.b16 %v622
          %v861 = vunpack.c.l.b16 %v623
          %v862 = vunpack.c.h.b16 %v623
          %v863 = vunpack.c.l.b16 %v624
          %v864 = vunpack.c.h.b16 %v624
          %v865 = vunpack.c.l.b16 %v625
          %v866 = vunpack.c.h.b16 %v625
          %v867 = vunpack.c.l.b16 %v626
          %v868 = vunpack.c.h.b16 %v626
          %v869 = vunpack.c.l.b16 %v627
          %v870 = vunpack.c.h.b16 %v627
          %v871 = vunpack.c.l.b16 %v628
          %v872 = vunpack.c.h.b16 %v628
          %v873 = vunpack.c.l.b16 %v629
          %v874 = vunpack.c.h.b16 %v629
          %v875 = vunpack.c.l.b16 %v630
          %v876 = vunpack.c.h.b16 %v630
          %v877 = vunpack.c.l.b16 %v631
          %v878 = vunpack.c.h.b16 %v631
          %v879 = vunpack.c.l.b16 %v632
          %v880 = vunpack.c.h.b16 %v632
          %v881 = vunpack.c.l.b16 %v633
          %v882 = vunpack.c.h.b16 %v633
          %v883 = vunpack.c.l.b16 %v634
          %v884 = vunpack.c.h.b16 %v634
          %v885 = vunpack.c.l.b16 %v635
          %v886 = vunpack.c.h.b16 %v635
          %v887 = vunpack.c.l.b16 %v636
          %v888 = vunpack.c.h.b16 %v636
          %v889 = vunpack.c.l.b16 %v637
          %v890 = vunpack.c.h.b16 %v637
          %v891 = vunpack.c.l.b16 %v638
          %v892 = vunpack.c.h.b16 %v638
          %v893 = vunpack.c.l.b16 %v639
          %v894 = vunpack.c.h.b16 %v639
          %v895 = vunpack.c.l.b16 %v640
          %v896 = vunpack.c.h.b16 %v640
          %v897 = vpack.c.b16 %v773, %v769
          %v898 = vpack.c.b16 %v774, %v770
          %v899 = vpack.c.b16 %v775, %v771
          %v900 = vpack.c.b16 %v776, %v772
          %v901 = vpack.c.b16 %v781, %v777
          %v902 = vpack.c.b16 %v782, %v778
          %v903 = vpack.c.b16 %v783, %v779
          %v904 = vpack.c.b16 %v784, %v780
          %v905 = vpack.c.b16 %v789, %v785
          %v906 = vpack.c.b16 %v790, %v786
          %v907 = vpack.c.b16 %v791, %v787
          %v908 = vpack.c.b16 %v792, %v788
          %v909 = vpack.c.b16 %v797, %v793
          %v910 = vpack.c.b16 %v798, %v794
          %v911 = vpack.c.b16 %v799, %v795
          %v912 = vpack.c.b16 %v800, %v796
          %v913 = vpack.c.b16 %v805, %v801
          %v914 = vpack.c.b16 %v806, %v802
          %v915 = vpack.c.b16 %v807, %v803
          %v916 = vpack.c.b16 %v808, %v804
          %v917 = vpack.c.b16 %v813, %v809
          %v918 = vpack.c.b16 %v814, %v810
          %v919 = vpack.c.b16 %v815, %v811
          %v920 = vpack.c.b16 %v816, %v812
          %v921 = vpack.c.b16 %v821, %v817
          %v922 = vpack.c.b16 %v822, %v818
          %v923 = vpack.c.b16 %v823, %v819
          %v924 = vpack.c.b16 %v824, %v820
          %v925 = vpack.c.b16 %v829, %v825
          %v926 = vpack.c.b16 %v830, %v826
          %v927 = vpack.c.b16 %v831, %v827
          %v928 = vpack.c.b16 %v832, %v828
          %v929 = vpack.c.b16 %v837, %v833
          %v930 = vpack.c.b16 %v838, %v834
          %v931 = vpack.c.b16 %v839, %v835
          %v932 = vpack.c.b16 %v840, %v836
          %v933 = vpack.c.b16 %v845, %v841
          %v934 = vpack.c.b16 %v846, %v842
          %v935 = vpack.c.b16 %v847, %v843
          %v936 = vpack.c.b16 %v848, %v844
          %v937 = vpack.c.b16 %v853, %v849
          %v938 = vpack.c.b16 %v854, %v850
          %v939 = vpack.c.b16 %v855, %v851
          %v940 = vpack.c.b16 %v856, %v852
          %v941 = vpack.c.b16 %v861, %v857
          %v942 = vpack.c.b16 %v862, %v858
          %v943 = vpack.c.b16 %v863, %v859
          %v944 = vpack.c.b16 %v864, %v860
          %v945 = vpack.c.b16 %v869, %v865
          %v946 = vpack.c.b16 %v870, %v866
          %v947 = vpack.c.b16 %v871, %v867
          %v948 = vpack.c.b16 %v872, %v868
          %v949 = vpack.c.b16 %v877, %v873
          %v950 = vpack.c.b16 %v878, %v874
          %v951 = vpack.c.b16 %v879, %v875
          %v952 = vpack.c.b16 %v880, %v876
          %v953 = vpack.c.b16 %v885, %v881
          %v954 = vpack.c.b16 %v886, %v882
          %v955 = vpack.c.b16 %v887, %v883
          %v956 = vpack.c.b16 %v888, %v884
          %v957 = vpack.c.b16 %v893, %v889
          %v958 = vpack.c.b16 %v894, %v890
          %v959 = vpack.c.b16 %v895, %v891
          %v960 = vpack.c.b16 %v896, %v892
          %v1089 = vunpack.c.l.b16 %v641
          %v1090 = vunpack.c.l.b16 %v642
          %v1091 = vunpack.c.l.b16 %v643
          %v1092 = vunpack.c.l.b16 %v644
          %v1093 = vunpack.c.l.b16 %v645
          %v1094 = vunpack.c.l.b16 %v646
          %v1095 = vunpack.c.l.b16 %v647
          %v1096 = vunpack.c.l.b16 %v648
          %v1097 = vunpack.c.l.b16 %v649
          %v1098 = vunpack.c.l.b16 %v650
          %v1099 = vunpack.c.l.b16 %v651
          %v1100 = vunpack.c.l.b16 %v652
          %v1101 = vunpack.c.l.b16 %v653
          %v1102 = vunpack.c.l.b16 %v654
          %v1103 = vunpack.c.l.b16 %v655
          %v1104 = vunpack.c.l.b16 %v656
          %v1105 = vunpack.c.l.b16 %v657
          %v1106 = vunpack.c.l.b16 %v658
          %v1107 = vunpack.c.l.b16 %v659
          %v1108 = vunpack.c.l.b16 %v660
          %v1109 = vunpack.c.l.b16 %v661
          %v1110 = vunpack.c.l.b16 %v662
          %v1111 = vunpack.c.l.b16 %v663
          %v1112 = vunpack.c.l.b16 %v664
          %v1113 = vunpack.c.l.b16 %v665
          %v1114 = vunpack.c.l.b16 %v666
          %v1115 = vunpack.c.l.b16 %v667
          %v1116 = vunpack.c.l.b16 %v668
          %v1117 = vunpack.c.l.b16 %v669
          %v1118 = vunpack.c.l.b16 %v670
          %v1119 = vunpack.c.l.b16 %v671
          %v1120 = vunpack.c.l.b16 %v672
          %v1121 = vunpack.c.l.b16 %v673
          %v1122 = vunpack.c.l.b16 %v674
          %v1123 = vunpack.c.l.b16 %v675
          %v1124 = vunpack.c.l.b16 %v676
          %v1125 = vunpack.c.l.b16 %v677
          %v1126 = vunpack.c.l.b16 %v678
          %v1127 = vunpack.c.l.b16 %v679
          %v1128 = vunpack.c.l.b16 %v680
          %v1129 = vunpack.c.l.b16 %v681
          %v1130 = vunpack.c.l.b16 %v682
          %v1131 = vunpack.c.l.b16 %v683
          %v1132 = vunpack.c.l.b16 %v684
          %v1133 = vunpack.c.l.b16 %v685
          %v1134 = vunpack.c.l.b16 %v686
          %v1135 = vunpack.c.l.b16 %v687
          %v1136 = vunpack.c.l.b16 %v688
          %v1137 = vunpack.c.l.b16 %v689
          %v1138 = vunpack.c.l.b16 %v690
          %v1139 = vunpack.c.l.b16 %v691
          %v1140 = vunpack.c.l.b16 %v692
          %v1141 = vunpack.c.l.b16 %v693
          %v1142 = vunpack.c.l.b16 %v694
          %v1143 = vunpack.c.l.b16 %v695
          %v1144 = vunpack.c.l.b16 %v696
          %v1145 = vunpack.c.l.b16 %v697
          %v1146 = vunpack.c.l.b16 %v698
          %v1147 = vunpack.c.l.b16 %v699
          %v1148 = vunpack.c.l.b16 %v700
          %v1149 = vunpack.c.l.b16 %v701
          %v1150 = vunpack.c.l.b16 %v702
          %v1151 = vunpack.c.l.b16 %v703
          %v1152 = vunpack.c.l.b16 %v704
          %v1153 = vpack.c.b16 %v1090, %v1089
          %v1154 = vpack.c.b16 %v1092, %v1091
          %v1155 = vpack.c.b16 %v1094, %v1093
          %v1156 = vpack.c.b16 %v1096, %v1095
          %v1157 = vpack.c.b16 %v1098, %v1097
          %v1158 = vpack.c.b16 %v1100, %v1099
          %v1159 = vpack.c.b16 %v1102, %v1101
          %v1160 = vpack.c.b16 %v1104, %v1103
          %v1161 = vpack.c.b16 %v1106, %v1105
          %v1162 = vpack.c.b16 %v1108, %v1107
          %v1163 = vpack.c.b16 %v1110, %v1109
          %v1164 = vpack.c.b16 %v1112, %v1111
          %v1165 = vpack.c.b16 %v1114, %v1113
          %v1166 = vpack.c.b16 %v1116, %v1115
          %v1167 = vpack.c.b16 %v1118, %v1117
          %v1168 = vpack.c.b16 %v1120, %v1119
          %v1169 = vpack.c.b16 %v1122, %v1121
          %v1170 = vpack.c.b16 %v1124, %v1123
          %v1171 = vpack.c.b16 %v1126, %v1125
          %v1172 = vpack.c.b16 %v1128, %v1127
          %v1173 = vpack.c.b16 %v1130, %v1129
          %v1174 = vpack.c.b16 %v1132, %v1131
          %v1175 = vpack.c.b16 %v1134, %v1133
          %v1176 = vpack.c.b16 %v1136, %v1135
          %v1177 = vpack.c.b16 %v1138, %v1137
          %v1178 = vpack.c.b16 %v1140, %v1139
          %v1179 = vpack.c.b16 %v1142, %v1141
          %v1180 = vpack.c.b16 %v1144, %v1143
          %v1181 = vpack.c.b16 %v1146, %v1145
          %v1182 = vpack.c.b16 %v1148, %v1147
          %v1183 = vpack.c.b16 %v1150, %v1149
          %v1184 = vpack.c.b16 %v1152, %v1151
          %1217 = vmatprep.subr.bf16.mxu0 0
          %1218 = vmatpush1.bf16.msra.mxu0 %v1160
          %1219 = vmatprep.subr.bf16.mxu0 0
          %1220 = vmatpush1.bf16.msra.mxu0 %v1159
          %1221 = vmatprep.subr.bf16.mxu0 0
          %1222 = vmatpush1.bf16.msra.mxu0 %v1158
          %1223 = vmatprep.subr.bf16.mxu0 0
          %1224 = vmatpush1.bf16.msra.mxu0 %v1157
          %1225 = vmatprep.subr.bf16.mxu0 0
          %1226 = vmatpush1.bf16.msra.mxu0 %v1156
          %1227 = vmatprep.subr.bf16.mxu0 0
          %1228 = vmatpush1.bf16.msra.mxu0 %v1155
          %1229 = vmatprep.subr.bf16.mxu0 0
          %1230 = vmatpush1.bf16.msra.mxu0 %v1154
          %1231 = vmatprep.subr.bf16.mxu0 0
          %1232 = vmatpush1.bf16.msra.mxu0 %v1153
          %1233 = vmatprep.subr.bf16.mxu0 0
          %1234 = vmatpush2.bf16.msra.mxu0 %v1168
          %1235 = vmatprep.subr.bf16.mxu0 0
          %1236 = vmatpush2.bf16.msra.mxu0 %v1167
          %1237 = vmatprep.subr.bf16.mxu0 0
          %1238 = vmatpush2.bf16.msra.mxu0 %v1166
          %1239 = vmatprep.subr.bf16.mxu0 0
          %1240 = vmatpush2.bf16.msra.mxu0 %v1165
          %1241 = vmatprep.subr.bf16.mxu0 0
          %1242 = vmatpush2.bf16.msra.mxu0 %v1164
          %1243 = vmatprep.subr.bf16.mxu0 0
          %1244 = vmatpush2.bf16.msra.mxu0 %v1163
          %1245 = vmatprep.subr.bf16.mxu0 0
          %1246 = vmatpush2.bf16.msra.mxu0 %v1162
          %1247 = vmatprep.subr.bf16.mxu0 0
          %1248 = vmatpush2.bf16.msra.mxu0 %v1161
          %1249 = vmatprep.mubr.bf16.mxu0 %v898
          %1250 = vmatmul.mubr.bf16.gmra.mxu0 %v897
          %v1251 = vpop.f32.mrf.mxu0
          %v1252 = vadd.f32 0.0, %v1251
          %v1253 = vpop.f32.mrf.mxu0
          %v1254 = vpop.f32.mrf.mxu0
          %v1255 = vadd.f32 0.0, %v1254
          %v1256 = vpop.f32.mrf.mxu0
          %1257 = vmatprep.mubr.bf16.mxu0 %v902
          %1258 = vmatmul.mubr.bf16.gmra.mxu0 %v901
          %v1259 = vpop.f32.mrf.mxu0
          %v1260 = vadd.f32 0.0, %v1259
          %v1261 = vpop.f32.mrf.mxu0
          %v1262 = vpop.f32.mrf.mxu0
          %v1263 = vadd.f32 0.0, %v1262
          %v1264 = vpop.f32.mrf.mxu0
          %1265 = vmatprep.mubr.bf16.mxu0 %v906
          %1266 = vmatmul.mubr.bf16.gmra.mxu0 %v905
          %v1267 = vpop.f32.mrf.mxu0
          %v1268 = vadd.f32 0.0, %v1267
          %v1269 = vpop.f32.mrf.mxu0
          %v1270 = vpop.f32.mrf.mxu0
          %v1271 = vadd.f32 0.0, %v1270
          %v1272 = vpop.f32.mrf.mxu0
          %1273 = vmatprep.mubr.bf16.mxu0 %v910
          %1274 = vmatmul.mubr.bf16.gmra.mxu0 %v909
          %v1275 = vpop.f32.mrf.mxu0
          %v1276 = vadd.f32 0.0, %v1275
          %v1277 = vpop.f32.mrf.mxu0
          %v1278 = vpop.f32.mrf.mxu0
          %v1279 = vadd.f32 0.0, %v1278
          %v1280 = vpop.f32.mrf.mxu0
          %1281 = vmatprep.mubr.bf16.mxu0 %v914
          %1282 = vmatmul.mubr.bf16.gmra.mxu0 %v913
          %v1283 = vpop.f32.mrf.mxu0
          %v1284 = vadd.f32 0.0, %v1283
          %v1285 = vpop.f32.mrf.mxu0
          %v1286 = vpop.f32.mrf.mxu0
          %v1287 = vadd.f32 0.0, %v1286
          %v1288 = vpop.f32.mrf.mxu0
          %1289 = vmatprep.mubr.bf16.mxu0 %v918
          %1290 = vmatmul.mubr.bf16.gmra.mxu0 %v917
          %v1291 = vpop.f32.mrf.mxu0
          %v1292 = vadd.f32 0.0, %v1291
          %v1293 = vpop.f32.mrf.mxu0
          %v1294 = vpop.f32.mrf.mxu0
          %v1295 = vadd.f32 0.0, %v1294
          %v1296 = vpop.f32.mrf.mxu0
          %1297 = vmatprep.mubr.bf16.mxu0 %v922
          %1298 = vmatmul.mubr.bf16.gmra.mxu0 %v921
          %v1299 = vpop.f32.mrf.mxu0
          %v1300 = vadd.f32 0.0, %v1299
          %v1301 = vpop.f32.mrf.mxu0
          %v1302 = vpop.f32.mrf.mxu0
          %v1303 = vadd.f32 0.0, %v1302
          %v1304 = vpop.f32.mrf.mxu0
          %1305 = vmatprep.mubr.bf16.mxu0 %v926
          %1306 = vmatmul.mubr.bf16.gmra.mxu0 %v925
          %v1307 = vpop.f32.mrf.mxu0
          %v1308 = vadd.f32 0.0, %v1307
          %v1309 = vpop.f32.mrf.mxu0
          %v1310 = vpop.f32.mrf.mxu0
          %v1311 = vadd.f32 0.0, %v1310
          %v1312 = vpop.f32.mrf.mxu0
          %1313 = vmatprep.mubr.bf16.mxu0 %v930
          %1314 = vmatmul.mubr.bf16.gmra.mxu0 %v929
          %v1315 = vpop.f32.mrf.mxu0
          %v1316 = vadd.f32 0.0, %v1315
          %v1317 = vpop.f32.mrf.mxu0
          %v1318 = vpop.f32.mrf.mxu0
          %v1319 = vadd.f32 0.0, %v1318
          %v1320 = vpop.f32.mrf.mxu0
          %1321 = vmatprep.mubr.bf16.mxu0 %v934
          %1322 = vmatmul.mubr.bf16.gmra.mxu0 %v933
          %v1323 = vpop.f32.mrf.mxu0
          %v1324 = vadd.f32 0.0, %v1323
          %v1325 = vpop.f32.mrf.mxu0
          %v1326 = vpop.f32.mrf.mxu0
          %v1327 = vadd.f32 0.0, %v1326
          %v1328 = vpop.f32.mrf.mxu0
          %1329 = vmatprep.mubr.bf16.mxu0 %v938
          %1330 = vmatmul.mubr.bf16.gmra.mxu0 %v937
          %v1331 = vpop.f32.mrf.mxu0
          %v1332 = vadd.f32 0.0, %v1331
          %v1333 = vpop.f32.mrf.mxu0
          %v1334 = vpop.f32.mrf.mxu0
          %v1335 = vadd.f32 0.0, %v1334
          %v1336 = vpop.f32.mrf.mxu0
          %1337 = vmatprep.mubr.bf16.mxu0 %v942
          %1338 = vmatmul.mubr.bf16.gmra.mxu0 %v941
          %v1339 = vpop.f32.mrf.mxu0
          %v1340 = vadd.f32 0.0, %v1339
          %v1341 = vpop.f32.mrf.mxu0
          %v1342 = vpop.f32.mrf.mxu0
          %v1343 = vadd.f32 0.0, %v1342
          %v1344 = vpop.f32.mrf.mxu0
          %1345 = vmatprep.mubr.bf16.mxu0 %v946
          %1346 = vmatmul.mubr.bf16.gmra.mxu0 %v945
          %v1347 = vpop.f32.mrf.mxu0
          %v1348 = vadd.f32 0.0, %v1347
          %v1349 = vpop.f32.mrf.mxu0
          %v1350 = vpop.f32.mrf.mxu0
          %v1351 = vadd.f32 0.0, %v1350
          %v1352 = vpop.f32.mrf.mxu0
          %1353 = vmatprep.mubr.bf16.mxu0 %v950
          %1354 = vmatmul.mubr.bf16.gmra.mxu0 %v949
          %v1355 = vpop.f32.mrf.mxu0
          %v1356 = vadd.f32 0.0, %v1355
          %v1357 = vpop.f32.mrf.mxu0
          %v1358 = vpop.f32.mrf.mxu0
          %v1359 = vadd.f32 0.0, %v1358
          %v1360 = vpop.f32.mrf.mxu0
          %1361 = vmatprep.mubr.bf16.mxu0 %v954
          %1362 = vmatmul.mubr.bf16.gmra.mxu0 %v953
          %v1363 = vpop.f32.mrf.mxu0
          %v1364 = vadd.f32 0.0, %v1363
          %v1365 = vpop.f32.mrf.mxu0
          %v1366 = vpop.f32.mrf.mxu0
          %v1367 = vadd.f32 0.0, %v1366
          %v1368 = vpop.f32.mrf.mxu0
          %1369 = vmatprep.mubr.bf16.mxu0 %v958
          %1370 = vmatmul.mubr.bf16.gmra.mxu0 %v957
          %v1371 = vpop.f32.mrf.mxu0
          %v1372 = vadd.f32 0.0, %v1371
          %v1373 = vpop.f32.mrf.mxu0
          %v1374 = vpop.f32.mrf.mxu0
          %v1375 = vadd.f32 0.0, %v1374
          %v1376 = vpop.f32.mrf.mxu0
          %1377 = vdwg.mxu0
          %1378 = vmatprep.subr.bf16.mxu0 0
          %1379 = vmatpush1.bf16.msra.mxu0 %v1176
          %1380 = vmatprep.subr.bf16.mxu0 0
          %1381 = vmatpush1.bf16.msra.mxu0 %v1175
          %1382 = vmatprep.subr.bf16.mxu0 0
          %1383 = vmatpush1.bf16.msra.mxu0 %v1174
          %1384 = vmatprep.subr.bf16.mxu0 0
          %1385 = vmatpush1.bf16.msra.mxu0 %v1173
          %1386 = vmatprep.subr.bf16.mxu0 0
          %1387 = vmatpush1.bf16.msra.mxu0 %v1172
          %1388 = vmatprep.subr.bf16.mxu0 0
          %1389 = vmatpush1.bf16.msra.mxu0 %v1171
          %1390 = vmatprep.subr.bf16.mxu0 0
          %1391 = vmatpush1.bf16.msra.mxu0 %v1170
          %1392 = vmatprep.subr.bf16.mxu0 0
          %1393 = vmatpush1.bf16.msra.mxu0 %v1169
          %1394 = vmatprep.subr.bf16.mxu0 0
          %1395 = vmatpush2.bf16.msra.mxu0 %v1184
          %1396 = vmatprep.subr.bf16.mxu0 0
          %1397 = vmatpush2.bf16.msra.mxu0 %v1183
          %1398 = vmatprep.subr.bf16.mxu0 0
          %1399 = vmatpush2.bf16.msra.mxu0 %v1182
          %1400 = vmatprep.subr.bf16.mxu0 0
          %1401 = vmatpush2.bf16.msra.mxu0 %v1181
          %1402 = vmatprep.subr.bf16.mxu0 0
          %1403 = vmatpush2.bf16.msra.mxu0 %v1180
          %1404 = vmatprep.subr.bf16.mxu0 0
          %1405 = vmatpush2.bf16.msra.mxu0 %v1179
          %1406 = vmatprep.subr.bf16.mxu0 0
          %1407 = vmatpush2.bf16.msra.mxu0 %v1178
          %1408 = vmatprep.subr.bf16.mxu0 0
          %1409 = vmatpush2.bf16.msra.mxu0 %v1177
          %1410 = vmatprep.mubr.bf16.mxu0 %v900
          %1411 = vmatmul.mubr.bf16.gmra.mxu0 %v899
          %v1412 = vpop.f32.mrf.mxu0
          %v1413 = vadd.f32 %v1252, %v1412
          %v1414 = vpop.f32.mrf.mxu0
          %v1415 = vpop.f32.mrf.mxu0
          %v1416 = vadd.f32 %v1255, %v1415
          %v1417 = vpop.f32.mrf.mxu0
          %1418 = vmatprep.mubr.bf16.mxu0 %v904
          %1419 = vmatmul.mubr.bf16.gmra.mxu0 %v903
          %v1420 = vpop.f32.mrf.mxu0
          %v1421 = vadd.f32 %v1260, %v1420
          %v1422 = vpop.f32.mrf.mxu0
          %v1423 = vpop.f32.mrf.mxu0
          %v1424 = vadd.f32 %v1263, %v1423
          %v1425 = vpop.f32.mrf.mxu0
          %1426 = vmatprep.mubr.bf16.mxu0 %v908
          %1427 = vmatmul.mubr.bf16.gmra.mxu0 %v907
          %v1428 = vpop.f32.mrf.mxu0
          %v1429 = vadd.f32 %v1268, %v1428
          %v1430 = vpop.f32.mrf.mxu0
          %v1431 = vpop.f32.mrf.mxu0
          %v1432 = vadd.f32 %v1271, %v1431
          %v1433 = vpop.f32.mrf.mxu0
          %1434 = vmatprep.mubr.bf16.mxu0 %v912
          %1435 = vmatmul.mubr.bf16.gmra.mxu0 %v911
          %v1436 = vpop.f32.mrf.mxu0
          %v1437 = vadd.f32 %v1276, %v1436
          %v1438 = vpop.f32.mrf.mxu0
          %v1439 = vpop.f32.mrf.mxu0
          %v1440 = vadd.f32 %v1279, %v1439
          %v1441 = vpop.f32.mrf.mxu0
          %1442 = vmatprep.mubr.bf16.mxu0 %v916
          %1443 = vmatmul.mubr.bf16.gmra.mxu0 %v915
          %v1444 = vpop.f32.mrf.mxu0
          %v1445 = vadd.f32 %v1284, %v1444
          %v1446 = vpop.f32.mrf.mxu0
          %v1447 = vpop.f32.mrf.mxu0
          %v1448 = vadd.f32 %v1287, %v1447
          %v1449 = vpop.f32.mrf.mxu0
          %1450 = vmatprep.mubr.bf16.mxu0 %v920
          %1451 = vmatmul.mubr.bf16.gmra.mxu0 %v919
          %v1452 = vpop.f32.mrf.mxu0
          %v1453 = vadd.f32 %v1292, %v1452
          %v1454 = vpop.f32.mrf.mxu0
          %v1455 = vpop.f32.mrf.mxu0
          %v1456 = vadd.f32 %v1295, %v1455
          %v1457 = vpop.f32.mrf.mxu0
          %1458 = vmatprep.mubr.bf16.mxu0 %v924
          %1459 = vmatmul.mubr.bf16.gmra.mxu0 %v923
          %v1460 = vpop.f32.mrf.mxu0
          %v1461 = vadd.f32 %v1300, %v1460
          %v1462 = vpop.f32.mrf.mxu0
          %v1463 = vpop.f32.mrf.mxu0
          %v1464 = vadd.f32 %v1303, %v1463
          %v1465 = vpop.f32.mrf.mxu0
          %1466 = vmatprep.mubr.bf16.mxu0 %v928
          %1467 = vmatmul.mubr.bf16.gmra.mxu0 %v927
          %v1468 = vpop.f32.mrf.mxu0
          %v1469 = vadd.f32 %v1308, %v1468
          %v1470 = vpop.f32.mrf.mxu0
          %v1471 = vpop.f32.mrf.mxu0
          %v1472 = vadd.f32 %v1311, %v1471
          %v1473 = vpop.f32.mrf.mxu0
          %1474 = vmatprep.mubr.bf16.mxu0 %v932
          %1475 = vmatmul.mubr.bf16.gmra.mxu0 %v931
          %v1476 = vpop.f32.mrf.mxu0
          %v1477 = vadd.f32 %v1316, %v1476
          %v1478 = vpop.f32.mrf.mxu0
          %v1479 = vpop.f32.mrf.mxu0
          %v1480 = vadd.f32 %v1319, %v1479
          %v1481 = vpop.f32.mrf.mxu0
          %1482 = vmatprep.mubr.bf16.mxu0 %v936
          %1483 = vmatmul.mubr.bf16.gmra.mxu0 %v935
          %v1484 = vpop.f32.mrf.mxu0
          %v1485 = vadd.f32 %v1324, %v1484
          %v1486 = vpop.f32.mrf.mxu0
          %v1487 = vpop.f32.mrf.mxu0
          %v1488 = vadd.f32 %v1327, %v1487
          %v1489 = vpop.f32.mrf.mxu0
          %1490 = vmatprep.mubr.bf16.mxu0 %v940
          %1491 = vmatmul.mubr.bf16.gmra.mxu0 %v939
          %v1492 = vpop.f32.mrf.mxu0
          %v1493 = vadd.f32 %v1332, %v1492
          %v1494 = vpop.f32.mrf.mxu0
          %v1495 = vpop.f32.mrf.mxu0
          %v1496 = vadd.f32 %v1335, %v1495
          %v1497 = vpop.f32.mrf.mxu0
          %1498 = vmatprep.mubr.bf16.mxu0 %v944
          %1499 = vmatmul.mubr.bf16.gmra.mxu0 %v943
          %v1500 = vpop.f32.mrf.mxu0
          %v1501 = vadd.f32 %v1340, %v1500
          %v1502 = vpop.f32.mrf.mxu0
          %v1503 = vpop.f32.mrf.mxu0
          %v1504 = vadd.f32 %v1343, %v1503
          %v1505 = vpop.f32.mrf.mxu0
          %1506 = vmatprep.mubr.bf16.mxu0 %v948
          %1507 = vmatmul.mubr.bf16.gmra.mxu0 %v947
          %v1508 = vpop.f32.mrf.mxu0
          %v1509 = vadd.f32 %v1348, %v1508
          %v1510 = vpop.f32.mrf.mxu0
          %v1511 = vpop.f32.mrf.mxu0
          %v1512 = vadd.f32 %v1351, %v1511
          %v1513 = vpop.f32.mrf.mxu0
          %1514 = vmatprep.mubr.bf16.mxu0 %v952
          %1515 = vmatmul.mubr.bf16.gmra.mxu0 %v951
          %v1516 = vpop.f32.mrf.mxu0
          %v1517 = vadd.f32 %v1356, %v1516
          %v1518 = vpop.f32.mrf.mxu0
          %v1519 = vpop.f32.mrf.mxu0
          %v1520 = vadd.f32 %v1359, %v1519
          %v1521 = vpop.f32.mrf.mxu0
          %1522 = vmatprep.mubr.bf16.mxu0 %v956
          %1523 = vmatmul.mubr.bf16.gmra.mxu0 %v955
          %v1524 = vpop.f32.mrf.mxu0
          %v1525 = vadd.f32 %v1364, %v1524
          %v1526 = vpop.f32.mrf.mxu0
          %v1527 = vpop.f32.mrf.mxu0
          %v1528 = vadd.f32 %v1367, %v1527
          %v1529 = vpop.f32.mrf.mxu0
          %1530 = vmatprep.mubr.bf16.mxu0 %v960
          %1531 = vmatmul.mubr.bf16.gmra.mxu0 %v959
          %v1532 = vpop.f32.mrf.mxu0
          %v1533 = vadd.f32 %v1372, %v1532
          %v1534 = vpop.f32.mrf.mxu0
          %v1535 = vpop.f32.mrf.mxu0
          %v1536 = vadd.f32 %v1375, %v1535
          %v1537 = vpop.f32.mrf.mxu0
          %1538 = vdwg.mxu0
          %v1539 = vpack.c.bf16 %v1416, %v1413
          %v1540 = vpack.c.bf16 %v1424, %v1421
          %v1541 = vpack.c.bf16 %v1432, %v1429
          %v1542 = vpack.c.bf16 %v1440, %v1437
          %v1543 = vpack.c.bf16 %v1448, %v1445
          %v1544 = vpack.c.bf16 %v1456, %v1453
          %v1545 = vpack.c.bf16 %v1464, %v1461
          %v1546 = vpack.c.bf16 %v1472, %v1469
          %v1547 = vpack.c.bf16 %v1480, %v1477
          %v1548 = vpack.c.bf16 %v1488, %v1485
          %v1549 = vpack.c.bf16 %v1496, %v1493
          %v1550 = vpack.c.bf16 %v1504, %v1501
          %v1551 = vpack.c.bf16 %v1512, %v1509
          %v1552 = vpack.c.bf16 %v1520, %v1517
          %v1553 = vpack.c.bf16 %v1528, %v1525
          %v1554 = vpack.c.bf16 %v1536, %v1533
          %v1555 = vld [vmem:[%s365] sm:$0xf]
          %v1556 = vld [vmem:[%s365 + $0x4] sm:$0xf]
          %v1557 = vld [vmem:[%s365 + $0x8] sm:$0xf]
          %v1558 = vld [vmem:[%s365 + $0xc] sm:$0xf]
          %v1559 = vld [vmem:[%s365 + $0x10] sm:$0xf]
          %v1560 = vld [vmem:[%s365 + $0x14] sm:$0xf]
          %v1561 = vld [vmem:[%s365 + $0x18] sm:$0xf]
          %v1562 = vld [vmem:[%s365 + $0x1c] sm:$0xf]
          %v1563 = vld [vmem:[%s365 + $0x20] sm:$0xf]
          %v1564 = vld [vmem:[%s365 + $0x24] sm:$0xf]
          %v1565 = vld [vmem:[%s365 + $0x28] sm:$0xf]
          %v1566 = vld [vmem:[%s365 + $0x2c] sm:$0xf]
          %v1567 = vld [vmem:[%s365 + $0x30] sm:$0xf]
          %v1568 = vld [vmem:[%s365 + $0x34] sm:$0xf]
          %v1569 = vld [vmem:[%s365 + $0x38] sm:$0xf]
          %v1570 = vld [vmem:[%s365 + $0x3c] sm:$0xf]
          %v1571 = vlaneseq
          %v1572 = vshrl.u32 %v1571, 7
          %v1573 = vsub.s32 0, %v1572
          %v1574 = vrot.slane %v571, %v1573
          %v1591 = vunpack.c.l.b16 %v1555
          %v1592 = vunpack.c.l.b16 %v1556
          %v1593 = vunpack.c.l.b16 %v1557
          %v1594 = vunpack.c.l.b16 %v1558
          %v1595 = vunpack.c.l.b16 %v1559
          %v1596 = vunpack.c.l.b16 %v1560
          %v1597 = vunpack.c.l.b16 %v1561
          %v1598 = vunpack.c.l.b16 %v1562
          %v1599 = vunpack.c.l.b16 %v1563
          %v1600 = vunpack.c.l.b16 %v1564
          %v1601 = vunpack.c.l.b16 %v1565
          %v1602 = vunpack.c.l.b16 %v1566
          %v1603 = vunpack.c.l.b16 %v1567
          %v1604 = vunpack.c.l.b16 %v1568
          %v1605 = vunpack.c.l.b16 %v1569
          %v1606 = vunpack.c.l.b16 %v1570
          %v1607 = vpack.c.b16 %v1592, %v1591
          %v1608 = vpack.c.b16 %v1594, %v1593
          %v1609 = vpack.c.b16 %v1596, %v1595
          %v1610 = vpack.c.b16 %v1598, %v1597
          %v1611 = vpack.c.b16 %v1600, %v1599
          %v1612 = vpack.c.b16 %v1602, %v1601
          %v1613 = vpack.c.b16 %v1604, %v1603
          %v1614 = vpack.c.b16 %v1606, %v1605
          %1623 = vmatprep.subr.bf16.mxu0 0
          %1624 = vmatpush1.bf16.msra.mxu0 %v1614
          %1625 = vmatprep.subr.bf16.mxu0 0
          %1626 = vmatpush1.bf16.msra.mxu0 %v1613
          %1627 = vmatprep.subr.bf16.mxu0 0
          %1628 = vmatpush1.bf16.msra.mxu0 %v1612
          %1629 = vmatprep.subr.bf16.mxu0 0
          %1630 = vmatpush1.bf16.msra.mxu0 %v1611
          %1631 = vmatprep.subr.bf16.mxu0 0
          %1632 = vmatpush1.bf16.msra.mxu0 %v1610
          %1633 = vmatprep.subr.bf16.mxu0 0
          %1634 = vmatpush1.bf16.msra.mxu0 %v1609
          %1635 = vmatprep.subr.bf16.mxu0 0
          %1636 = vmatpush1.bf16.msra.mxu0 %v1608
          %1637 = vmatprep.subr.bf16.mxu0 0
          %1638 = vmatpush1.bf16.msra.mxu0 %v1607
          %1639 = vmatprep.subr.bf16.mxu0 0
          %1640 = vmatpush2.bf16.msra.mxu0 0
          %1641 = vmatprep.subr.bf16.mxu0 0
          %1642 = vmatpush2.bf16.msra.mxu0 0
          %1643 = vmatprep.subr.bf16.mxu0 0
          %1644 = vmatpush2.bf16.msra.mxu0 0
          %1645 = vmatprep.subr.bf16.mxu0 0
          %1646 = vmatpush2.bf16.msra.mxu0 0
          %1647 = vmatprep.subr.bf16.mxu0 0
          %1648 = vmatpush2.bf16.msra.mxu0 0
          %1649 = vmatprep.subr.bf16.mxu0 0
          %1650 = vmatpush2.bf16.msra.mxu0 0
          %1651 = vmatprep.subr.bf16.mxu0 0
          %1652 = vmatpush2.bf16.msra.mxu0 0
          %1653 = vmatprep.subr.bf16.mxu0 0
          %1654 = vmatpush2.bf16.msra.mxu0 0
          %1655 = vmatprep.mubr.bf16.mxu0 0
          %1656 = vmatmul.mubr.bf16.gmra.mxu0 %v1539
          %v1657 = vpop.f32.mrf.mxu0
          %v1658 = vadd.f32 %v1574, %v1657
          %v1659 = vpop.f32.mrf.mxu0
          %v1660 = vpop.f32.mrf.mxu0
          %v1661 = vadd.f32 %v1574, %v1660
          %v1662 = vpop.f32.mrf.mxu0
          %1663 = vmatprep.mubr.bf16.mxu0 0
          %1664 = vmatmul.mubr.bf16.gmra.mxu0 %v1540
          %v1665 = vpop.f32.mrf.mxu0
          %v1666 = vadd.f32 %v1574, %v1665
          %v1667 = vpop.f32.mrf.mxu0
          %v1668 = vpop.f32.mrf.mxu0
          %v1669 = vadd.f32 %v1574, %v1668
          %v1670 = vpop.f32.mrf.mxu0
          %1671 = vmatprep.mubr.bf16.mxu0 0
          %1672 = vmatmul.mubr.bf16.gmra.mxu0 %v1541
          %v1673 = vpop.f32.mrf.mxu0
          %v1674 = vadd.f32 %v1574, %v1673
          %v1675 = vpop.f32.mrf.mxu0
          %v1676 = vpop.f32.mrf.mxu0
          %v1677 = vadd.f32 %v1574, %v1676
          %v1678 = vpop.f32.mrf.mxu0
          %1679 = vmatprep.mubr.bf16.mxu0 0
          %1680 = vmatmul.mubr.bf16.gmra.mxu0 %v1542
          %v1681 = vpop.f32.mrf.mxu0
          %v1682 = vadd.f32 %v1574, %v1681
          %v1683 = vpop.f32.mrf.mxu0
          %v1684 = vpop.f32.mrf.mxu0
          %v1685 = vadd.f32 %v1574, %v1684
          %v1686 = vpop.f32.mrf.mxu0
          %1687 = vmatprep.mubr.bf16.mxu0 0
          %1688 = vmatmul.mubr.bf16.gmra.mxu0 %v1543
          %v1689 = vpop.f32.mrf.mxu0
          %v1690 = vadd.f32 %v1574, %v1689
          %v1691 = vpop.f32.mrf.mxu0
          %v1692 = vpop.f32.mrf.mxu0
          %v1693 = vadd.f32 %v1574, %v1692
          %v1694 = vpop.f32.mrf.mxu0
          %1695 = vmatprep.mubr.bf16.mxu0 0
          %1696 = vmatmul.mubr.bf16.gmra.mxu0 %v1544
          %v1697 = vpop.f32.mrf.mxu0
          %v1698 = vadd.f32 %v1574, %v1697
          %v1699 = vpop.f32.mrf.mxu0
          %v1700 = vpop.f32.mrf.mxu0
          %v1701 = vadd.f32 %v1574, %v1700
          %v1702 = vpop.f32.mrf.mxu0
          %1703 = vmatprep.mubr.bf16.mxu0 0
          %1704 = vmatmul.mubr.bf16.gmra.mxu0 %v1545
          %v1705 = vpop.f32.mrf.mxu0
          %v1706 = vadd.f32 %v1574, %v1705
          %v1707 = vpop.f32.mrf.mxu0
          %v1708 = vpop.f32.mrf.mxu0
          %v1709 = vadd.f32 %v1574, %v1708
          %v1710 = vpop.f32.mrf.mxu0
          %1711 = vmatprep.mubr.bf16.mxu0 0
          %1712 = vmatmul.mubr.bf16.gmra.mxu0 %v1546
          %v1713 = vpop.f32.mrf.mxu0
          %v1714 = vadd.f32 %v1574, %v1713
          %v1715 = vpop.f32.mrf.mxu0
          %v1716 = vpop.f32.mrf.mxu0
          %v1717 = vadd.f32 %v1574, %v1716
          %v1718 = vpop.f32.mrf.mxu0
          %1719 = vmatprep.mubr.bf16.mxu0 0
          %1720 = vmatmul.mubr.bf16.gmra.mxu0 %v1547
          %v1721 = vpop.f32.mrf.mxu0
          %v1722 = vadd.f32 %v1574, %v1721
          %v1723 = vpop.f32.mrf.mxu0
          %v1724 = vpop.f32.mrf.mxu0
          %v1725 = vadd.f32 %v1574, %v1724
          %v1726 = vpop.f32.mrf.mxu0
          %1727 = vmatprep.mubr.bf16.mxu0 0
          %1728 = vmatmul.mubr.bf16.gmra.mxu0 %v1548
          %v1729 = vpop.f32.mrf.mxu0
          %v1730 = vadd.f32 %v1574, %v1729
          %v1731 = vpop.f32.mrf.mxu0
          %v1732 = vpop.f32.mrf.mxu0
          %v1733 = vadd.f32 %v1574, %v1732
          %v1734 = vpop.f32.mrf.mxu0
          %1735 = vmatprep.mubr.bf16.mxu0 0
          %1736 = vmatmul.mubr.bf16.gmra.mxu0 %v1549
          %v1737 = vpop.f32.mrf.mxu0
          %v1738 = vadd.f32 %v1574, %v1737
          %v1739 = vpop.f32.mrf.mxu0
          %v1740 = vpop.f32.mrf.mxu0
          %v1741 = vadd.f32 %v1574, %v1740
          %v1742 = vpop.f32.mrf.mxu0
          %1743 = vmatprep.mubr.bf16.mxu0 0
          %1744 = vmatmul.mubr.bf16.gmra.mxu0 %v1550
          %v1745 = vpop.f32.mrf.mxu0
          %v1746 = vadd.f32 %v1574, %v1745
          %v1747 = vpop.f32.mrf.mxu0
          %v1748 = vpop.f32.mrf.mxu0
          %v1749 = vadd.f32 %v1574, %v1748
          %v1750 = vpop.f32.mrf.mxu0
          %1751 = vmatprep.mubr.bf16.mxu0 0
          %1752 = vmatmul.mubr.bf16.gmra.mxu0 %v1551
          %v1753 = vpop.f32.mrf.mxu0
          %v1754 = vadd.f32 %v1574, %v1753
          %v1755 = vpop.f32.mrf.mxu0
          %v1756 = vpop.f32.mrf.mxu0
          %v1757 = vadd.f32 %v1574, %v1756
          %v1758 = vpop.f32.mrf.mxu0
          %1759 = vmatprep.mubr.bf16.mxu0 0
          %1760 = vmatmul.mubr.bf16.gmra.mxu0 %v1552
          %v1761 = vpop.f32.mrf.mxu0
          %v1762 = vadd.f32 %v1574, %v1761
          %v1763 = vpop.f32.mrf.mxu0
          %v1764 = vpop.f32.mrf.mxu0
          %v1765 = vadd.f32 %v1574, %v1764
          %v1766 = vpop.f32.mrf.mxu0
          %1767 = vmatprep.mubr.bf16.mxu0 0
          %1768 = vmatmul.mubr.bf16.gmra.mxu0 %v1553
          %v1769 = vpop.f32.mrf.mxu0
          %v1770 = vadd.f32 %v1574, %v1769
          %v1771 = vpop.f32.mrf.mxu0
          %v1772 = vpop.f32.mrf.mxu0
          %v1773 = vadd.f32 %v1574, %v1772
          %v1774 = vpop.f32.mrf.mxu0
          %1775 = vmatprep.mubr.bf16.mxu0 0
          %1776 = vmatmul.mubr.bf16.gmra.mxu0 %v1554
          %v1777 = vpop.f32.mrf.mxu0
          %v1778 = vadd.f32 %v1574, %v1777
          %v1779 = vpop.f32.mrf.mxu0
          %v1780 = vpop.f32.mrf.mxu0
          %v1781 = vadd.f32 %v1574, %v1780
          %v1782 = vpop.f32.mrf.mxu0
          %1783 = vdwg.mxu0
          %v1784 = vmax.f32 %v1658, 0.0
          %v1785 = vmax.f32 %v1661, 0.0
          %v1786 = vmax.f32 %v1666, 0.0
          %v1787 = vmax.f32 %v1669, 0.0
          %v1788 = vmax.f32 %v1674, 0.0
          %v1789 = vmax.f32 %v1677, 0.0
          %v1790 = vmax.f32 %v1682, 0.0
          %v1791 = vmax.f32 %v1685, 0.0
          %v1792 = vmax.f32 %v1690, 0.0
          %v1793 = vmax.f32 %v1693, 0.0
          %v1794 = vmax.f32 %v1698, 0.0
          %v1795 = vmax.f32 %v1701, 0.0
          %v1796 = vmax.f32 %v1706, 0.0
          %v1797 = vmax.f32 %v1709, 0.0
          %v1798 = vmax.f32 %v1714, 0.0
          %v1799 = vmax.f32 %v1717, 0.0
          %v1800 = vmax.f32 %v1722, 0.0
          %v1801 = vmax.f32 %v1725, 0.0
          %v1802 = vmax.f32 %v1730, 0.0
          %v1803 = vmax.f32 %v1733, 0.0
          %v1804 = vmax.f32 %v1738, 0.0
          %v1805 = vmax.f32 %v1741, 0.0
          %v1806 = vmax.f32 %v1746, 0.0
          %v1807 = vmax.f32 %v1749, 0.0
          %v1808 = vmax.f32 %v1754, 0.0
          %v1809 = vmax.f32 %v1757, 0.0
          %v1810 = vmax.f32 %v1762, 0.0
          %v1811 = vmax.f32 %v1765, 0.0
          %v1812 = vmax.f32 %v1770, 0.0
          %v1813 = vmax.f32 %v1773, 0.0
          %v1814 = vmax.f32 %v1778, 0.0
          %v1815 = vmax.f32 %v1781, 0.0
          %v1816 = vpack.c.bf16 %v1785, %v1784
          %v1817 = vpack.c.bf16 %v1787, %v1786
          %v1818 = vpack.c.bf16 %v1789, %v1788
          %v1819 = vpack.c.bf16 %v1791, %v1790
          %v1820 = vpack.c.bf16 %v1793, %v1792
          %v1821 = vpack.c.bf16 %v1795, %v1794
          %v1822 = vpack.c.bf16 %v1797, %v1796
          %v1823 = vpack.c.bf16 %v1799, %v1798
          %v1824 = vpack.c.bf16 %v1801, %v1800
          %v1825 = vpack.c.bf16 %v1803, %v1802
          %v1826 = vpack.c.bf16 %v1805, %v1804
          %v1827 = vpack.c.bf16 %v1807, %v1806
          %v1828 = vpack.c.bf16 %v1809, %v1808
          %v1829 = vpack.c.bf16 %v1811, %v1810
          %v1830 = vpack.c.bf16 %v1813, %v1812
          %v1831 = vpack.c.bf16 %v1815, %v1814
          %v1832 = vld [vmem:[%s374] sm:$0xf]
          %v1833 = vld [vmem:[%s374 + $0x4] sm:$0xf]
          %v1834 = vld [vmem:[%s374 + $0x8] sm:$0xf]
          %v1835 = vld [vmem:[%s374 + $0xc] sm:$0xf]
          %v1836 = vld [vmem:[%s374 + $0x10] sm:$0xf]
          %v1837 = vld [vmem:[%s374 + $0x14] sm:$0xf]
          %v1838 = vld [vmem:[%s374 + $0x18] sm:$0xf]
          %v1839 = vld [vmem:[%s374 + $0x1c] sm:$0xf]
          %v1840 = vld [vmem:[%s374 + $0x20] sm:$0xf]
          %v1841 = vld [vmem:[%s374 + $0x24] sm:$0xf]
          %v1842 = vld [vmem:[%s374 + $0x28] sm:$0xf]
          %v1843 = vld [vmem:[%s374 + $0x2c] sm:$0xf]
          %v1844 = vld [vmem:[%s374 + $0x30] sm:$0xf]
          %v1845 = vld [vmem:[%s374 + $0x34] sm:$0xf]
          %v1846 = vld [vmem:[%s374 + $0x38] sm:$0xf]
          %v1847 = vld [vmem:[%s374 + $0x3c] sm:$0xf]
          %v1848 = vlaneseq
          %v1849 = vshrl.u32 %v1848, 7
          %v1850 = vsub.s32 1, %v1849
          %v1851 = vrot.slane %v571, %v1850
          %v1868 = vunpack.c.l.b16 %v1832
          %v1869 = vunpack.c.l.b16 %v1833
          %v1870 = vunpack.c.l.b16 %v1834
          %v1871 = vunpack.c.l.b16 %v1835
          %v1872 = vunpack.c.l.b16 %v1836
          %v1873 = vunpack.c.l.b16 %v1837
          %v1874 = vunpack.c.l.b16 %v1838
          %v1875 = vunpack.c.l.b16 %v1839
          %v1876 = vunpack.c.l.b16 %v1840
          %v1877 = vunpack.c.l.b16 %v1841
          %v1878 = vunpack.c.l.b16 %v1842
          %v1879 = vunpack.c.l.b16 %v1843
          %v1880 = vunpack.c.l.b16 %v1844
          %v1881 = vunpack.c.l.b16 %v1845
          %v1882 = vunpack.c.l.b16 %v1846
          %v1883 = vunpack.c.l.b16 %v1847
          %v1884 = vpack.c.b16 %v1869, %v1868
          %v1885 = vpack.c.b16 %v1871, %v1870
          %v1886 = vpack.c.b16 %v1873, %v1872
          %v1887 = vpack.c.b16 %v1875, %v1874
          %v1888 = vpack.c.b16 %v1877, %v1876
          %v1889 = vpack.c.b16 %v1879, %v1878
          %v1890 = vpack.c.b16 %v1881, %v1880
          %v1891 = vpack.c.b16 %v1883, %v1882
          %1900 = vmatprep.subr.bf16.mxu0 0
          %1901 = vmatpush1.bf16.msra.mxu0 %v1891
          %1902 = vmatprep.subr.bf16.mxu0 0
          %1903 = vmatpush1.bf16.msra.mxu0 %v1890
          %1904 = vmatprep.subr.bf16.mxu0 0
          %1905 = vmatpush1.bf16.msra.mxu0 %v1889
          %1906 = vmatprep.subr.bf16.mxu0 0
          %1907 = vmatpush1.bf16.msra.mxu0 %v1888
          %1908 = vmatprep.subr.bf16.mxu0 0
          %1909 = vmatpush1.bf16.msra.mxu0 %v1887
          %1910 = vmatprep.subr.bf16.mxu0 0
          %1911 = vmatpush1.bf16.msra.mxu0 %v1886
          %1912 = vmatprep.subr.bf16.mxu0 0
          %1913 = vmatpush1.bf16.msra.mxu0 %v1885
          %1914 = vmatprep.subr.bf16.mxu0 0
          %1915 = vmatpush1.bf16.msra.mxu0 %v1884
          %1916 = vmatprep.subr.bf16.mxu0 0
          %1917 = vmatpush2.bf16.msra.mxu0 0
          %1918 = vmatprep.subr.bf16.mxu0 0
          %1919 = vmatpush2.bf16.msra.mxu0 0
          %1920 = vmatprep.subr.bf16.mxu0 0
          %1921 = vmatpush2.bf16.msra.mxu0 0
          %1922 = vmatprep.subr.bf16.mxu0 0
          %1923 = vmatpush2.bf16.msra.mxu0 0
          %1924 = vmatprep.subr.bf16.mxu0 0
          %1925 = vmatpush2.bf16.msra.mxu0 0
          %1926 = vmatprep.subr.bf16.mxu0 0
          %1927 = vmatpush2.bf16.msra.mxu0 0
          %1928 = vmatprep.subr.bf16.mxu0 0
          %1929 = vmatpush2.bf16.msra.mxu0 0
          %1930 = vmatprep.subr.bf16.mxu0 0
          %1931 = vmatpush2.bf16.msra.mxu0 0
          %1932 = vmatprep.mubr.bf16.mxu0 0
          %1933 = vmatmul.mubr.bf16.gmra.mxu0 %v1816
          %v1934 = vpop.f32.mrf.mxu0
          %v1935 = vadd.f32 %v1851, %v1934
          %v1936 = vpop.f32.mrf.mxu0
          %v1937 = vpop.f32.mrf.mxu0
          %v1938 = vadd.f32 %v1851, %v1937
          %v1939 = vpop.f32.mrf.mxu0
          %1940 = vmatprep.mubr.bf16.mxu0 0
          %1941 = vmatmul.mubr.bf16.gmra.mxu0 %v1817
          %v1942 = vpop.f32.mrf.mxu0
          %v1943 = vadd.f32 %v1851, %v1942
          %v1944 = vpop.f32.mrf.mxu0
          %v1945 = vpop.f32.mrf.mxu0
          %v1946 = vadd.f32 %v1851, %v1945
          %v1947 = vpop.f32.mrf.mxu0
          %1948 = vmatprep.mubr.bf16.mxu0 0
          %1949 = vmatmul.mubr.bf16.gmra.mxu0 %v1818
          %v1950 = vpop.f32.mrf.mxu0
          %v1951 = vadd.f32 %v1851, %v1950
          %v1952 = vpop.f32.mrf.mxu0
          %v1953 = vpop.f32.mrf.mxu0
          %v1954 = vadd.f32 %v1851, %v1953
          %v1955 = vpop.f32.mrf.mxu0
          %1956 = vmatprep.mubr.bf16.mxu0 0
          %1957 = vmatmul.mubr.bf16.gmra.mxu0 %v1819
          %v1958 = vpop.f32.mrf.mxu0
          %v1959 = vadd.f32 %v1851, %v1958
          %v1960 = vpop.f32.mrf.mxu0
          %v1961 = vpop.f32.mrf.mxu0
          %v1962 = vadd.f32 %v1851, %v1961
          %v1963 = vpop.f32.mrf.mxu0
          %1964 = vmatprep.mubr.bf16.mxu0 0
          %1965 = vmatmul.mubr.bf16.gmra.mxu0 %v1820
          %v1966 = vpop.f32.mrf.mxu0
          %v1967 = vadd.f32 %v1851, %v1966
          %v1968 = vpop.f32.mrf.mxu0
          %v1969 = vpop.f32.mrf.mxu0
          %v1970 = vadd.f32 %v1851, %v1969
          %v1971 = vpop.f32.mrf.mxu0
          %1972 = vmatprep.mubr.bf16.mxu0 0
          %1973 = vmatmul.mubr.bf16.gmra.mxu0 %v1821
          %v1974 = vpop.f32.mrf.mxu0
          %v1975 = vadd.f32 %v1851, %v1974
          %v1976 = vpop.f32.mrf.mxu0
          %v1977 = vpop.f32.mrf.mxu0
          %v1978 = vadd.f32 %v1851, %v1977
          %v1979 = vpop.f32.mrf.mxu0
          %1980 = vmatprep.mubr.bf16.mxu0 0
          %1981 = vmatmul.mubr.bf16.gmra.mxu0 %v1822
          %v1982 = vpop.f32.mrf.mxu0
          %v1983 = vadd.f32 %v1851, %v1982
          %v1984 = vpop.f32.mrf.mxu0
          %v1985 = vpop.f32.mrf.mxu0
          %v1986 = vadd.f32 %v1851, %v1985
          %v1987 = vpop.f32.mrf.mxu0
          %1988 = vmatprep.mubr.bf16.mxu0 0
          %1989 = vmatmul.mubr.bf16.gmra.mxu0 %v1823
          %v1990 = vpop.f32.mrf.mxu0
          %v1991 = vadd.f32 %v1851, %v1990
          %v1992 = vpop.f32.mrf.mxu0
          %v1993 = vpop.f32.mrf.mxu0
          %v1994 = vadd.f32 %v1851, %v1993
          %v1995 = vpop.f32.mrf.mxu0
          %1996 = vmatprep.mubr.bf16.mxu0 0
          %1997 = vmatmul.mubr.bf16.gmra.mxu0 %v1824
          %v1998 = vpop.f32.mrf.mxu0
          %v1999 = vadd.f32 %v1851, %v1998
          %v2000 = vpop.f32.mrf.mxu0
          %v2001 = vpop.f32.mrf.mxu0
          %v2002 = vadd.f32 %v1851, %v2001
          %v2003 = vpop.f32.mrf.mxu0
          %2004 = vmatprep.mubr.bf16.mxu0 0
          %2005 = vmatmul.mubr.bf16.gmra.mxu0 %v1825
          %v2006 = vpop.f32.mrf.mxu0
          %v2007 = vadd.f32 %v1851, %v2006
          %v2008 = vpop.f32.mrf.mxu0
          %v2009 = vpop.f32.mrf.mxu0
          %v2010 = vadd.f32 %v1851, %v2009
          %v2011 = vpop.f32.mrf.mxu0
          %2012 = vmatprep.mubr.bf16.mxu0 0
          %2013 = vmatmul.mubr.bf16.gmra.mxu0 %v1826
          %v2014 = vpop.f32.mrf.mxu0
          %v2015 = vadd.f32 %v1851, %v2014
          %v2016 = vpop.f32.mrf.mxu0
          %v2017 = vpop.f32.mrf.mxu0
          %v2018 = vadd.f32 %v1851, %v2017
          %v2019 = vpop.f32.mrf.mxu0
          %2020 = vmatprep.mubr.bf16.mxu0 0
          %2021 = vmatmul.mubr.bf16.gmra.mxu0 %v1827
          %v2022 = vpop.f32.mrf.mxu0
          %v2023 = vadd.f32 %v1851, %v2022
          %v2024 = vpop.f32.mrf.mxu0
          %v2025 = vpop.f32.mrf.mxu0
          %v2026 = vadd.f32 %v1851, %v2025
          %v2027 = vpop.f32.mrf.mxu0
          %2028 = vmatprep.mubr.bf16.mxu0 0
          %2029 = vmatmul.mubr.bf16.gmra.mxu0 %v1828
          %v2030 = vpop.f32.mrf.mxu0
          %v2031 = vadd.f32 %v1851, %v2030
          %v2032 = vpop.f32.mrf.mxu0
          %v2033 = vpop.f32.mrf.mxu0
          %v2034 = vadd.f32 %v1851, %v2033
          %v2035 = vpop.f32.mrf.mxu0
          %2036 = vmatprep.mubr.bf16.mxu0 0
          %2037 = vmatmul.mubr.bf16.gmra.mxu0 %v1829
          %v2038 = vpop.f32.mrf.mxu0
          %v2039 = vadd.f32 %v1851, %v2038
          %v2040 = vpop.f32.mrf.mxu0
          %v2041 = vpop.f32.mrf.mxu0
          %v2042 = vadd.f32 %v1851, %v2041
          %v2043 = vpop.f32.mrf.mxu0
          %2044 = vmatprep.mubr.bf16.mxu0 0
          %2045 = vmatmul.mubr.bf16.gmra.mxu0 %v1830
          %v2046 = vpop.f32.mrf.mxu0
          %v2047 = vadd.f32 %v1851, %v2046
          %v2048 = vpop.f32.mrf.mxu0
          %v2049 = vpop.f32.mrf.mxu0
          %v2050 = vadd.f32 %v1851, %v2049
          %v2051 = vpop.f32.mrf.mxu0
          %2052 = vmatprep.mubr.bf16.mxu0 0
          %2053 = vmatmul.mubr.bf16.gmra.mxu0 %v1831
          %v2054 = vpop.f32.mrf.mxu0
          %v2055 = vadd.f32 %v1851, %v2054
          %v2056 = vpop.f32.mrf.mxu0
          %v2057 = vpop.f32.mrf.mxu0
          %v2058 = vadd.f32 %v1851, %v2057
          %v2059 = vpop.f32.mrf.mxu0
          %2060 = vdwg.mxu0
          %v2061 = vmax.f32 %v1935, 0.0
          %v2062 = vmax.f32 %v1938, 0.0
          %v2063 = vmax.f32 %v1943, 0.0
          %v2064 = vmax.f32 %v1946, 0.0
          %v2065 = vmax.f32 %v1951, 0.0
          %v2066 = vmax.f32 %v1954, 0.0
          %v2067 = vmax.f32 %v1959, 0.0
          %v2068 = vmax.f32 %v1962, 0.0
          %v2069 = vmax.f32 %v1967, 0.0
          %v2070 = vmax.f32 %v1970, 0.0
          %v2071 = vmax.f32 %v1975, 0.0
          %v2072 = vmax.f32 %v1978, 0.0
          %v2073 = vmax.f32 %v1983, 0.0
          %v2074 = vmax.f32 %v1986, 0.0
          %v2075 = vmax.f32 %v1991, 0.0
          %v2076 = vmax.f32 %v1994, 0.0
          %v2077 = vmax.f32 %v1999, 0.0
          %v2078 = vmax.f32 %v2002, 0.0
          %v2079 = vmax.f32 %v2007, 0.0
          %v2080 = vmax.f32 %v2010, 0.0
          %v2081 = vmax.f32 %v2015, 0.0
          %v2082 = vmax.f32 %v2018, 0.0
          %v2083 = vmax.f32 %v2023, 0.0
          %v2084 = vmax.f32 %v2026, 0.0
          %v2085 = vmax.f32 %v2031, 0.0
          %v2086 = vmax.f32 %v2034, 0.0
          %v2087 = vmax.f32 %v2039, 0.0
          %v2088 = vmax.f32 %v2042, 0.0
          %v2089 = vmax.f32 %v2047, 0.0
          %v2090 = vmax.f32 %v2050, 0.0
          %v2091 = vmax.f32 %v2055, 0.0
          %v2092 = vmax.f32 %v2058, 0.0
          %s2093 = scalar_lea.vmem [#allocation3], %s424
          %2094 = vst [vmem:[%s2093] sm:$0xff] %v2061
          %2095 = vst [vmem:[%s2093 + $0x8] sm:$0xff] %v2062
          %2096 = vst [vmem:[%s2093 + $0x10] sm:$0xff] %v2063
          %2097 = vst [vmem:[%s2093 + $0x18] sm:$0xff] %v2064
          %2098 = vst [vmem:[%s2093 + $0x20] sm:$0xff] %v2065
          %2099 = vst [vmem:[%s2093 + $0x28] sm:$0xff] %v2066
          %2100 = vst [vmem:[%s2093 + $0x30] sm:$0xff] %v2067
          %2101 = vst [vmem:[%s2093 + $0x38] sm:$0xff] %v2068
          %2102 = vst [vmem:[%s2093 + $0x40] sm:$0xff] %v2069
          %2103 = vst [vmem:[%s2093 + $0x48] sm:$0xff] %v2070
          %2104 = vst [vmem:[%s2093 + $0x50] sm:$0xff] %v2071
          %2105 = vst [vmem:[%s2093 + $0x58] sm:$0xff] %v2072
          %2106 = vst [vmem:[%s2093 + $0x60] sm:$0xff] %v2073
          %2107 = vst [vmem:[%s2093 + $0x68] sm:$0xff] %v2074
          %2108 = vst [vmem:[%s2093 + $0x70] sm:$0xff] %v2075
          %2109 = vst [vmem:[%s2093 + $0x78] sm:$0xff] %v2076
          %2110 = vst [vmem:[%s2093 + $0x80] sm:$0xff] %v2077
          %2111 = vst [vmem:[%s2093 + $0x88] sm:$0xff] %v2078
          %2112 = vst [vmem:[%s2093 + $0x90] sm:$0xff] %v2079
          %2113 = vst [vmem:[%s2093 + $0x98] sm:$0xff] %v2080
          %2114 = vst [vmem:[%s2093 + $0xa0] sm:$0xff] %v2081
          %2115 = vst [vmem:[%s2093 + $0xa8] sm:$0xff] %v2082
          %2116 = vst [vmem:[%s2093 + $0xb0] sm:$0xff] %v2083
          %2117 = vst [vmem:[%s2093 + $0xb8] sm:$0xff] %v2084
          %2118 = vst [vmem:[%s2093 + $0xc0] sm:$0xff] %v2085
          %2119 = vst [vmem:[%s2093 + $0xc8] sm:$0xff] %v2086
          %2120 = vst [vmem:[%s2093 + $0xd0] sm:$0xff] %v2087
          %2121 = vst [vmem:[%s2093 + $0xd8] sm:$0xff] %v2088
          %2122 = vst [vmem:[%s2093 + $0xe0] sm:$0xff] %v2089
          %2123 = vst [vmem:[%s2093 + $0xe8] sm:$0xff] %v2090
          %2124 = vst [vmem:[%s2093 + $0xf0] sm:$0xff] %v2091
          %2125 = vst [vmem:[%s2093 + $0xf8] sm:$0xff] %v2092
          %v2126 = vld [vmem:[#allocation6] sm:$0xff]
          %s2127 = sshra.s32 %s424, 7
          %s2128 = sand.u32 %s424, 127
          %s2129 = smul.addr %s2127, 8
          %s2130 = scalar_lea.vmem [#allocation12], %s2129
          %v2131 = vld [vmem:[%s2130] sm:$0xff]
          %v2132 = vld [vmem:[%s2130 + $0x8] sm:$0xff]
          %2133 = vmatprep.subr.mxu0 0.0
          %2134 = vmatpush1.msra.mxu0 %v2076
          %2135 = vmatprep.subr.mxu0 0.0
          %2136 = vmatpush1.msra.mxu0 %v2075
          %2137 = vmatprep.subr.mxu0 0.0
          %2138 = vmatpush1.msra.mxu0 %v2074
          %2139 = vmatprep.subr.mxu0 0.0
          %2140 = vmatpush1.msra.mxu0 %v2073
          %2141 = vmatprep.subr.mxu0 0.0
          %2142 = vmatpush1.msra.mxu0 %v2072
          %2143 = vmatprep.subr.mxu0 0.0
          %2144 = vmatpush1.msra.mxu0 %v2071
          %2145 = vmatprep.subr.mxu0 0.0
          %2146 = vmatpush1.msra.mxu0 %v2070
          %2147 = vmatprep.subr.mxu0 0.0
          %2148 = vmatpush1.msra.mxu0 %v2069
          %2149 = vmatprep.subr.mxu0 0.0
          %2150 = vmatpush1.msra.mxu0 %v2068
          %2151 = vmatprep.subr.mxu0 0.0
          %2152 = vmatpush1.msra.mxu0 %v2067
          %2153 = vmatprep.subr.mxu0 0.0
          %2154 = vmatpush1.msra.mxu0 %v2066
          %2155 = vmatprep.subr.mxu0 0.0
          %2156 = vmatpush1.msra.mxu0 %v2065
          %2157 = vmatprep.subr.mxu0 0.0
          %2158 = vmatpush1.msra.mxu0 %v2064
          %2159 = vmatprep.subr.mxu0 0.0
          %2160 = vmatpush1.msra.mxu0 %v2063
          %2161 = vmatprep.subr.mxu0 0.0
          %2162 = vmatpush1.msra.mxu0 %v2062
          %2163 = vmatprep.subr.mxu0 0.0
          %2164 = vmatpush1.msra.mxu0 %v2061
          %2165 = vmatprep.subr.mxu0 0.0
          %2166 = vmatpush2.msra.mxu0 %v2092
          %2167 = vmatprep.subr.mxu0 0.0
          %2168 = vmatpush2.msra.mxu0 %v2091
          %2169 = vmatprep.subr.mxu0 0.0
          %2170 = vmatpush2.msra.mxu0 %v2090
          %2171 = vmatprep.subr.mxu0 0.0
          %2172 = vmatpush2.msra.mxu0 %v2089
          %2173 = vmatprep.subr.mxu0 0.0
          %2174 = vmatpush2.msra.mxu0 %v2088
          %2175 = vmatprep.subr.mxu0 0.0
          %2176 = vmatpush2.msra.mxu0 %v2087
          %2177 = vmatprep.subr.mxu0 0.0
          %2178 = vmatpush2.msra.mxu0 %v2086
          %2179 = vmatprep.subr.mxu0 0.0
          %2180 = vmatpush2.msra.mxu0 %v2085
          %2181 = vmatprep.subr.mxu0 0.0
          %2182 = vmatpush2.msra.mxu0 %v2084
          %2183 = vmatprep.subr.mxu0 0.0
          %2184 = vmatpush2.msra.mxu0 %v2083
          %2185 = vmatprep.subr.mxu0 0.0
          %2186 = vmatpush2.msra.mxu0 %v2082
          %2187 = vmatprep.subr.mxu0 0.0
          %2188 = vmatpush2.msra.mxu0 %v2081
          %2189 = vmatprep.subr.mxu0 0.0
          %2190 = vmatpush2.msra.mxu0 %v2080
          %2191 = vmatprep.subr.mxu0 0.0
          %2192 = vmatpush2.msra.mxu0 %v2079
          %2193 = vmatprep.subr.mxu0 0.0
          %2194 = vmatpush2.msra.mxu0 %v2078
          %2195 = vmatprep.subr.mxu0 0.0
          %2196 = vmatpush2.msra.mxu0 %v2077
          %2197 = vmatprep.mubr.f32.mxu0 %v2132
          %2198 = vmatmul.mubr.f32.gmra.mxu0 %v2131
          %v2199 = vpop.f32.mrf.mxu0
          %v2200 = vadd.f32 0.0, %v2199
          %v2201 = vpop.f32.mrf.mxu0
          %2202 = vdwg.mxu0
          %v2203 = vadd.f32 %v2126, %v2200
          %2204 = vst [vmem:[#allocation6] sm:$0xff] %v2203
          %v2205 = vld [vmem:[#allocation4] sm:$0x1]
          %v2206 = vadd.f32 %v2061, %v2062
          %v2207 = vadd.f32 %v2206, %v2063
          %v2208 = vadd.f32 %v2207, %v2064
          %v2209 = vadd.f32 %v2208, %v2065
          %v2210 = vadd.f32 %v2209, %v2066
          %v2211 = vadd.f32 %v2210, %v2067
          %v2212 = vadd.f32 %v2211, %v2068
          %v2213 = vadd.f32 %v2212, %v2069
          %v2214 = vadd.f32 %v2213, %v2070
          %v2215 = vadd.f32 %v2214, %v2071
          %v2216 = vadd.f32 %v2215, %v2072
          %v2217 = vadd.f32 %v2216, %v2073
          %v2218 = vadd.f32 %v2217, %v2074
          %v2219 = vadd.f32 %v2218, %v2075
          %v2220 = vadd.f32 %v2219, %v2076
          %v2221 = vadd.f32 %v2220, %v2077
          %v2222 = vadd.f32 %v2221, %v2078
          %v2223 = vadd.f32 %v2222, %v2079
          %v2224 = vadd.f32 %v2223, %v2080
          %v2225 = vadd.f32 %v2224, %v2081
          %v2226 = vadd.f32 %v2225, %v2082
          %v2227 = vadd.f32 %v2226, %v2083
          %v2228 = vadd.f32 %v2227, %v2084
          %v2229 = vadd.f32 %v2228, %v2085
          %v2230 = vadd.f32 %v2229, %v2086
          %v2231 = vadd.f32 %v2230, %v2087
          %v2232 = vadd.f32 %v2231, %v2088
          %v2233 = vadd.f32 %v2232, %v2089
          %v2234 = vadd.f32 %v2233, %v2090
          %v2235 = vadd.f32 %v2234, %v2091
          %v2236 = vadd.f32 %v2235, %v2092
          %v2237 = vrot.slane %v2236, 4
          %v2238 = vadd.f32 %v2236, %v2237
          %v2239 = vrot.slane %v2238, 2
          %v2240 = vadd.f32 %v2238, %v2239
          %v2241 = vrot.slane %v2240, 1
          %v2242 = vadd.f32 %v2240, %v2241
          %v2243 = vadd.f32 %v2205, %v2242
          %2244 = vst [vmem:[#allocation4] sm:$0x1] %v2243
          %v2245 = vld [vmem:[#allocation5] sm:$0x1]
          %v2246 = vmul.f32 %v2061, %v2061
          %v2247 = vmul.f32 %v2062, %v2062
          %v2248 = vmul.f32 %v2063, %v2063
          %v2249 = vmul.f32 %v2064, %v2064
          %v2250 = vmul.f32 %v2065, %v2065
          %v2251 = vmul.f32 %v2066, %v2066
          %v2252 = vmul.f32 %v2067, %v2067
          %v2253 = vmul.f32 %v2068, %v2068
          %v2254 = vmul.f32 %v2069, %v2069
          %v2255 = vmul.f32 %v2070, %v2070
          %v2256 = vmul.f32 %v2071, %v2071
          %v2257 = vmul.f32 %v2072, %v2072
          %v2258 = vmul.f32 %v2073, %v2073
          %v2259 = vmul.f32 %v2074, %v2074
          %v2260 = vmul.f32 %v2075, %v2075
          %v2261 = vmul.f32 %v2076, %v2076
          %v2262 = vmul.f32 %v2077, %v2077
          %v2263 = vmul.f32 %v2078, %v2078
          %v2264 = vmul.f32 %v2079, %v2079
          %v2265 = vmul.f32 %v2080, %v2080
          %v2266 = vmul.f32 %v2081, %v2081
          %v2267 = vmul.f32 %v2082, %v2082
          %v2268 = vmul.f32 %v2083, %v2083
          %v2269 = vmul.f32 %v2084, %v2084
          %v2270 = vmul.f32 %v2085, %v2085
          %v2271 = vmul.f32 %v2086, %v2086
          %v2272 = vmul.f32 %v2087, %v2087
          %v2273 = vmul.f32 %v2088, %v2088
          %v2274 = vmul.f32 %v2089, %v2089
          %v2275 = vmul.f32 %v2090, %v2090
          %v2276 = vmul.f32 %v2091, %v2091
          %v2277 = vmul.f32 %v2092, %v2092
          %v2278 = vadd.f32 %v2246, %v2247
          %v2279 = vadd.f32 %v2278, %v2248
          %v2280 = vadd.f32 %v2279, %v2249
          %v2281 = vadd.f32 %v2280, %v2250
          %v2282 = vadd.f32 %v2281, %v2251
          %v2283 = vadd.f32 %v2282, %v2252
          %v2284 = vadd.f32 %v2283, %v2253
          %v2285 = vadd.f32 %v2284, %v2254
          %v2286 = vadd.f32 %v2285, %v2255
          %v2287 = vadd.f32 %v2286, %v2256
          %v2288 = vadd.f32 %v2287, %v2257
          %v2289 = vadd.f32 %v2288, %v2258
          %v2290 = vadd.f32 %v2289, %v2259
          %v2291 = vadd.f32 %v2290, %v2260
          %v2292 = vadd.f32 %v2291, %v2261
          %v2293 = vadd.f32 %v2292, %v2262
          %v2294 = vadd.f32 %v2293, %v2263
          %v2295 = vadd.f32 %v2294, %v2264
          %v2296 = vadd.f32 %v2295, %v2265
          %v2297 = vadd.f32 %v2296, %v2266
          %v2298 = vadd.f32 %v2297, %v2267
          %v2299 = vadd.f32 %v2298, %v2268
          %v2300 = vadd.f32 %v2299, %v2269
          %v2301 = vadd.f32 %v2300, %v2270
          %v2302 = vadd.f32 %v2301, %v2271
          %v2303 = vadd.f32 %v2302, %v2272
          %v2304 = vadd.f32 %v2303, %v2273
          %v2305 = vadd.f32 %v2304, %v2274
          %v2306 = vadd.f32 %v2305, %v2275
          %v2307 = vadd.f32 %v2306, %v2276
          %v2308 = vadd.f32 %v2307, %v2277
          %v2309 = vrot.slane %v2308, 4
          %v2310 = vadd.f32 %v2308, %v2309
          %v2311 = vrot.slane %v2310, 2
          %v2312 = vadd.f32 %v2310, %v2311
          %v2313 = vrot.slane %v2312, 1
          %v2314 = vadd.f32 %v2312, %v2313
          %v2315 = vadd.f32 %v2245, %v2314
          %2316 = vst [vmem:[#allocation5] sm:$0x1] %v2315
          %p2317 = scmp.eq.s32.totalorder %s37, 1
          // Predicated region
          $region77: #{tpu_custom_call.1} parent=71 // pred_check
            %p2318 = pneg %p2317
          $region78: #{tpu_custom_call.1} parent=71 // pred_check_branch
            %2320 = sbr.rel (%p2318) target = $region80
          $region79: #{tpu_custom_call.1} parent=71 // pred_region
            %v2321 = vld [vmem:[#allocation4] sm:$0x1]
            %v2322 = vmul.f32 %v2321, 0.001953125
            %v2323 = vld [vmem:[#allocation5] sm:$0x1]
            %v2324 = vmul.f32 %v2323, 0.001953125
            %v2325 = vmul.f32 %v2322, %v2322
            %v2326 = vsub.f32 %v2324, %v2325
            %v2327 = vmax.f32 %v2326, 0.0
            %v2328 = vadd.f32 %v2327, 1e-05
            %v2329 = vrsqrt.pop %v2328
            %v2332 = vunpack.c.l.s4 1966171168
            %v2333 = vunpack.c.0.s8 %v2332
            %v2334 = vlaneseq
            %v2335 = vshrl.u32 %v2334, 7
            %v2336 = vsub.s32 %v2333, %v2335
            %v2337 = vrot.slane %v571, %v2336
            %v2339 = vunpack.c.l.s4 1966171168
            %v2340 = vunpack.c.0.s8 %v2339
            %v2341 = vlaneseq
            %v2342 = vshrl.u32 %v2341, 7
            %v2343 = vsub.s32 %v2340, %v2342
            %v2344 = vrot.slane %v2337, %v2343
            %v2345 = vcombine.high %v2344, %v2344
            %v2347 = vmul.f32 %v2329, %v2345
            %v2348 = vmul.f32 %v2322, %v2347
            %v2350 = vlaneseq
            %v2351 = vshrl.u32 %v2350, 7
            %v2352 = vsub.s32 0, %v2351
            %v2353 = vrot.slane %v2348, %v2352
            %v2355 = vsub.f32 %v571, %v2353
            %2356 = vst [vmem:[#allocation4] sm:$0x1] %v2347
            %2357 = vst [vmem:[#allocation5 - $0x3] sm:$0x8] %v2355
            %v2358 = vld [vmem:[#allocation12] sm:$0xff]
            %v2359 = vld [vmem:[#allocation12 + $0x8] sm:$0xff]
            %v2360 = vld [vmem:[#allocation12 + $0x10] sm:$0xff]
            %v2361 = vld [vmem:[#allocation12 + $0x18] sm:$0xff]
            %v2362 = vadd.f32 %v2358, %v2359
            %v2363 = vadd.f32 %v2362, %v2360
            %v2364 = vadd.f32 %v2363, %v2361
            %2365 = vadd.xlane.f32.xlu0 %v2364
            %v2366 = vpop.xlane.xlu0 %2365
            %v2367 = vld [vmem:[#allocation6] sm:$0xff]
            %v2369 = vlaneseq
            %v2370 = vshrl.u32 %v2369, 7
            %v2371 = vsub.s32 0, %v2370
            %v2372 = vrot.slane %v2347, %v2371
            %v2374 = vmul.f32 %v2367, %v2372
            %v2375 = vlaneseq
            %v2376 = vshrl.u32 %v2375, 7
            %v2377 = vsub.s32 3, %v2376
            %v2378 = vrot.slane %v2355, %v2377
            %v2379 = vmul.f32 %v2366, %v2378
            %v2380 = vadd.f32 %v2374, %v2379
            %2381 = vst [vmem:[%s418] sm:$0xff] %v2380
          $region80: #{tpu_custom_call.1} parent=71 // pred_fallthru
            _
        $region72: #{tpu_custom_call.1} parent=43 // pred_fallthru
          _
        %p2382 = scmp.eq.s32.totalorder %s36, 1
        // Predicated region
        $region81: #{tpu_custom_call.1} parent=43 // pred_check
          %p2383 = pneg %p2382
        $region82: #{tpu_custom_call.1} parent=43 // pred_check_branch
          %2385 = sbr.rel (%p2383) target = $region84
        $region83: #{tpu_custom_call.1} parent=43 // pred_region
          %s2386 = scalar_lea.vmem [#allocation3], %s424
          %v2387 = vld [vmem:[%s2386] sm:$0xff]
          %v2388 = vld [vmem:[%s2386 + $0x8] sm:$0xff]
          %v2389 = vld [vmem:[%s2386 + $0x10] sm:$0xff]
          %v2390 = vld [vmem:[%s2386 + $0x18] sm:$0xff]
          %v2391 = vld [vmem:[%s2386 + $0x20] sm:$0xff]
          %v2392 = vld [vmem:[%s2386 + $0x28] sm:$0xff]
          %v2393 = vld [vmem:[%s2386 + $0x30] sm:$0xff]
          %v2394 = vld [vmem:[%s2386 + $0x38] sm:$0xff]
          %v2395 = vld [vmem:[%s2386 + $0x40] sm:$0xff]
          %v2396 = vld [vmem:[%s2386 + $0x48] sm:$0xff]
          %v2397 = vld [vmem:[%s2386 + $0x50] sm:$0xff]
          %v2398 = vld [vmem:[%s2386 + $0x58] sm:$0xff]
          %v2399 = vld [vmem:[%s2386 + $0x60] sm:$0xff]
          %v2400 = vld [vmem:[%s2386 + $0x68] sm:$0xff]
          %v2401 = vld [vmem:[%s2386 + $0x70] sm:$0xff]
          %v2402 = vld [vmem:[%s2386 + $0x78] sm:$0xff]
          %v2403 = vld [vmem:[%s2386 + $0x80] sm:$0xff]
          %v2404 = vld [vmem:[%s2386 + $0x88] sm:$0xff]
          %v2405 = vld [vmem:[%s2386 + $0x90] sm:$0xff]
          %v2406 = vld [vmem:[%s2386 + $0x98] sm:$0xff]
          %v2407 = vld [vmem:[%s2386 + $0xa0] sm:$0xff]
          %v2408 = vld [vmem:[%s2386 + $0xa8] sm:$0xff]
          %v2409 = vld [vmem:[%s2386 + $0xb0] sm:$0xff]
          %v2410 = vld [vmem:[%s2386 + $0xb8] sm:$0xff]
          %v2411 = vld [vmem:[%s2386 + $0xc0] sm:$0xff]
          %v2412 = vld [vmem:[%s2386 + $0xc8] sm:$0xff]
          %v2413 = vld [vmem:[%s2386 + $0xd0] sm:$0xff]
          %v2414 = vld [vmem:[%s2386 + $0xd8] sm:$0xff]
          %v2415 = vld [vmem:[%s2386 + $0xe0] sm:$0xff]
          %v2416 = vld [vmem:[%s2386 + $0xe8] sm:$0xff]
          %v2417 = vld [vmem:[%s2386 + $0xf0] sm:$0xff]
          %v2418 = vld [vmem:[%s2386 + $0xf8] sm:$0xff]
          %v2419 = vld [vmem:[#allocation4] sm:$0x1]
          %v2421 = vlaneseq
          %v2422 = vshrl.u32 %v2421, 7
          %v2423 = vsub.s32 0, %v2422
          %v2424 = vrot.slane %v2419, %v2423
          %v2426 = vmul.f32 %v2387, %v2424
          %v2427 = vmul.f32 %v2388, %v2424
          %v2428 = vmul.f32 %v2389, %v2424
          %v2429 = vmul.f32 %v2390, %v2424
          %v2430 = vmul.f32 %v2391, %v2424
          %v2431 = vmul.f32 %v2392, %v2424
          %v2432 = vmul.f32 %v2393, %v2424
          %v2433 = vmul.f32 %v2394, %v2424
          %v2434 = vmul.f32 %v2395, %v2424
          %v2435 = vmul.f32 %v2396, %v2424
          %v2436 = vmul.f32 %v2397, %v2424
          %v2437 = vmul.f32 %v2398, %v2424
          %v2438 = vmul.f32 %v2399, %v2424
          %v2439 = vmul.f32 %v2400, %v2424
          %v2440 = vmul.f32 %v2401, %v2424
          %v2441 = vmul.f32 %v2402, %v2424
          %v2442 = vmul.f32 %v2403, %v2424
          %v2443 = vmul.f32 %v2404, %v2424
          %v2444 = vmul.f32 %v2405, %v2424
          %v2445 = vmul.f32 %v2406, %v2424
          %v2446 = vmul.f32 %v2407, %v2424
          %v2447 = vmul.f32 %v2408, %v2424
          %v2448 = vmul.f32 %v2409, %v2424
          %v2449 = vmul.f32 %v2410, %v2424
          %v2450 = vmul.f32 %v2411, %v2424
          %v2451 = vmul.f32 %v2412, %v2424
          %v2452 = vmul.f32 %v2413, %v2424
          %v2453 = vmul.f32 %v2414, %v2424
          %v2454 = vmul.f32 %v2415, %v2424
          %v2455 = vmul.f32 %v2416, %v2424
          %v2456 = vmul.f32 %v2417, %v2424
          %v2457 = vmul.f32 %v2418, %v2424
          %v2458 = vld [vmem:[#allocation5] sm:$0x1]
          %v2460 = vlaneseq
          %v2461 = vshrl.u32 %v2460, 7
          %v2462 = vsub.s32 0, %v2461
          %v2463 = vrot.slane %v2458, %v2462
          %v2465 = vadd.f32 %v2426, %v2463
          %v2466 = vadd.f32 %v2427, %v2463
          %v2467 = vadd.f32 %v2428, %v2463
          %v2468 = vadd.f32 %v2429, %v2463
          %v2469 = vadd.f32 %v2430, %v2463
          %v2470 = vadd.f32 %v2431, %v2463
          %v2471 = vadd.f32 %v2432, %v2463
          %v2472 = vadd.f32 %v2433, %v2463
          %v2473 = vadd.f32 %v2434, %v2463
          %v2474 = vadd.f32 %v2435, %v2463
          %v2475 = vadd.f32 %v2436, %v2463
          %v2476 = vadd.f32 %v2437, %v2463
          %v2477 = vadd.f32 %v2438, %v2463
          %v2478 = vadd.f32 %v2439, %v2463
          %v2479 = vadd.f32 %v2440, %v2463
          %v2480 = vadd.f32 %v2441, %v2463
          %v2481 = vadd.f32 %v2442, %v2463
          %v2482 = vadd.f32 %v2443, %v2463
          %v2483 = vadd.f32 %v2444, %v2463
          %v2484 = vadd.f32 %v2445, %v2463
          %v2485 = vadd.f32 %v2446, %v2463
          %v2486 = vadd.f32 %v2447, %v2463
          %v2487 = vadd.f32 %v2448, %v2463
          %v2488 = vadd.f32 %v2449, %v2463
          %v2489 = vadd.f32 %v2450, %v2463
          %v2490 = vadd.f32 %v2451, %v2463
          %v2491 = vadd.f32 %v2452, %v2463
          %v2492 = vadd.f32 %v2453, %v2463
          %v2493 = vadd.f32 %v2454, %v2463
          %v2494 = vadd.f32 %v2455, %v2463
          %v2495 = vadd.f32 %v2456, %v2463
          %v2496 = vadd.f32 %v2457, %v2463
          %s2497 = scalar_lea.vmem %s411, %s424 [#allocation16]
          %2498 = vst [vmem:[%s2497] sm:$0xff] %v2465
          %2499 = vst [vmem:[%s2497 + $0x8] sm:$0xff] %v2466
          %2500 = vst [vmem:[%s2497 + $0x10] sm:$0xff] %v2467
          %2501 = vst [vmem:[%s2497 + $0x18] sm:$0xff] %v2468
          %2502 = vst [vmem:[%s2497 + $0x20] sm:$0xff] %v2469
          %2503 = vst [vmem:[%s2497 + $0x28] sm:$0xff] %v2470
          %2504 = vst [vmem:[%s2497 + $0x30] sm:$0xff] %v2471
          %2505 = vst [vmem:[%s2497 + $0x38] sm:$0xff] %v2472
          %2506 = vst [vmem:[%s2497 + $0x40] sm:$0xff] %v2473
          %2507 = vst [vmem:[%s2497 + $0x48] sm:$0xff] %v2474
          %2508 = vst [vmem:[%s2497 + $0x50] sm:$0xff] %v2475
          %2509 = vst [vmem:[%s2497 + $0x58] sm:$0xff] %v2476
          %2510 = vst [vmem:[%s2497 + $0x60] sm:$0xff] %v2477
          %2511 = vst [vmem:[%s2497 + $0x68] sm:$0xff] %v2478
          %2512 = vst [vmem:[%s2497 + $0x70] sm:$0xff] %v2479
          %2513 = vst [vmem:[%s2497 + $0x78] sm:$0xff] %v2480
          %2514 = vst [vmem:[%s2497 + $0x80] sm:$0xff] %v2481
          %2515 = vst [vmem:[%s2497 + $0x88] sm:$0xff] %v2482
          %2516 = vst [vmem:[%s2497 + $0x90] sm:$0xff] %v2483
          %2517 = vst [vmem:[%s2497 + $0x98] sm:$0xff] %v2484
          %2518 = vst [vmem:[%s2497 + $0xa0] sm:$0xff] %v2485
          %2519 = vst [vmem:[%s2497 + $0xa8] sm:$0xff] %v2486
          %2520 = vst [vmem:[%s2497 + $0xb0] sm:$0xff] %v2487
          %2521 = vst [vmem:[%s2497 + $0xb8] sm:$0xff] %v2488
          %2522 = vst [vmem:[%s2497 + $0xc0] sm:$0xff] %v2489
          %2523 = vst [vmem:[%s2497 + $0xc8] sm:$0xff] %v2490
          %2524 = vst [vmem:[%s2497 + $0xd0] sm:$0xff] %v2491
          %2525 = vst [vmem:[%s2497 + $0xd8] sm:$0xff] %v2492
          %2526 = vst [vmem:[%s2497 + $0xe0] sm:$0xff] %v2493
          %2527 = vst [vmem:[%s2497 + $0xe8] sm:$0xff] %v2494
          %2528 = vst [vmem:[%s2497 + $0xf0] sm:$0xff] %v2495
          %2529 = vst [vmem:[%s2497 + $0xf8] sm:$0xff] %v2496
          %v2530 = vpack.c.bf16 %v2466, %v2465
          %v2531 = vpack.c.bf16 %v2468, %v2467
          %v2532 = vpack.c.bf16 %v2470, %v2469
          %v2533 = vpack.c.bf16 %v2472, %v2471
          %v2534 = vpack.c.bf16 %v2474, %v2473
          %v2535 = vpack.c.bf16 %v2476, %v2475
          %v2536 = vpack.c.bf16 %v2478, %v2477
          %v2537 = vpack.c.bf16 %v2480, %v2479
          %v2538 = vpack.c.bf16 %v2482, %v2481
          %v2539 = vpack.c.bf16 %v2484, %v2483
          %v2540 = vpack.c.bf16 %v2486, %v2485
          %v2541 = vpack.c.bf16 %v2488, %v2487
          %v2542 = vpack.c.bf16 %v2490, %v2489
          %v2543 = vpack.c.bf16 %v2492, %v2491
          %v2544 = vpack.c.bf16 %v2494, %v2493
          %v2545 = vpack.c.bf16 %v2496, %v2495
          %v2562 = vunpack.c.l.b16 %v2530
          %v2563 = vunpack.c.h.b16 %v2530
          %v2564 = vunpack.c.l.b16 %v2531
          %v2565 = vunpack.c.h.b16 %v2531
          %v2566 = vunpack.c.l.b16 %v2532
          %v2567 = vunpack.c.h.b16 %v2532
          %v2568 = vunpack.c.l.b16 %v2533
          %v2569 = vunpack.c.h.b16 %v2533
          %v2570 = vunpack.c.l.b16 %v2534
          %v2571 = vunpack.c.h.b16 %v2534
          %v2572 = vunpack.c.l.b16 %v2535
          %v2573 = vunpack.c.h.b16 %v2535
          %v2574 = vunpack.c.l.b16 %v2536
          %v2575 = vunpack.c.h.b16 %v2536
          %v2576 = vunpack.c.l.b16 %v2537
          %v2577 = vunpack.c.h.b16 %v2537
          %v2578 = vunpack.c.l.b16 %v2538
          %v2579 = vunpack.c.h.b16 %v2538
          %v2580 = vunpack.c.l.b16 %v2539
          %v2581 = vunpack.c.h.b16 %v2539
          %v2582 = vunpack.c.l.b16 %v2540
          %v2583 = vunpack.c.h.b16 %v2540
          %v2584 = vunpack.c.l.b16 %v2541
          %v2585 = vunpack.c.h.b16 %v2541
          %v2586 = vunpack.c.l.b16 %v2542
          %v2587 = vunpack.c.h.b16 %v2542
          %v2588 = vunpack.c.l.b16 %v2543
          %v2589 = vunpack.c.h.b16 %v2543
          %v2590 = vunpack.c.l.b16 %v2544
          %v2591 = vunpack.c.h.b16 %v2544
          %v2592 = vunpack.c.l.b16 %v2545
          %v2593 = vunpack.c.h.b16 %v2545
          %v2594 = vpack.c.b16 %v2562, %v2562
          %v2595 = vpack.c.b16 %v2563, %v2563
          %v2596 = vpack.c.b16 %v2564, %v2564
          %v2597 = vpack.c.b16 %v2565, %v2565
          %v2598 = vpack.c.b16 %v2566, %v2566
          %v2599 = vpack.c.b16 %v2567, %v2567
          %v2600 = vpack.c.b16 %v2568, %v2568
          %v2601 = vpack.c.b16 %v2569, %v2569
          %v2602 = vpack.c.b16 %v2570, %v2570
          %v2603 = vpack.c.b16 %v2571, %v2571
          %v2604 = vpack.c.b16 %v2572, %v2572
          %v2605 = vpack.c.b16 %v2573, %v2573
          %v2606 = vpack.c.b16 %v2574, %v2574
          %v2607 = vpack.c.b16 %v2575, %v2575
          %v2608 = vpack.c.b16 %v2576, %v2576
          %v2609 = vpack.c.b16 %v2577, %v2577
          %v2610 = vpack.c.b16 %v2578, %v2578
          %v2611 = vpack.c.b16 %v2579, %v2579
          %v2612 = vpack.c.b16 %v2580, %v2580
          %v2613 = vpack.c.b16 %v2581, %v2581
          %v2614 = vpack.c.b16 %v2582, %v2582
          %v2615 = vpack.c.b16 %v2583, %v2583
          %v2616 = vpack.c.b16 %v2584, %v2584
          %v2617 = vpack.c.b16 %v2585, %v2585
          %v2618 = vpack.c.b16 %v2586, %v2586
          %v2619 = vpack.c.b16 %v2587, %v2587
          %v2620 = vpack.c.b16 %v2588, %v2588
          %v2621 = vpack.c.b16 %v2589, %v2589
          %v2622 = vpack.c.b16 %v2590, %v2590
          %v2623 = vpack.c.b16 %v2591, %v2591
          %v2624 = vpack.c.b16 %v2592, %v2592
          %v2625 = vpack.c.b16 %v2593, %v2593
          %s2658 = sshra.s32 %s424, 3
          %s2659 = sand.u32 %s424, 7
          %s2660 = smul.addr %s2658, 4
          %s2661 = scalar_lea.vmem [#allocation2], %s2660
          %2662 = vst [vmem:[%s2661] sm:$0xf] %v2594
          %2663 = vst [vmem:[%s2661 + $0x4] sm:$0xf] %v2595
          %2664 = vst [vmem:[%s2661 + $0x8] sm:$0xf] %v2596
          %2665 = vst [vmem:[%s2661 + $0xc] sm:$0xf] %v2597
          %2666 = vst [vmem:[%s2661 + $0x10] sm:$0xf] %v2598
          %2667 = vst [vmem:[%s2661 + $0x14] sm:$0xf] %v2599
          %2668 = vst [vmem:[%s2661 + $0x18] sm:$0xf] %v2600
          %2669 = vst [vmem:[%s2661 + $0x1c] sm:$0xf] %v2601
          %2670 = vst [vmem:[%s2661 + $0x20] sm:$0xf] %v2602
          %2671 = vst [vmem:[%s2661 + $0x24] sm:$0xf] %v2603
          %2672 = vst [vmem:[%s2661 + $0x28] sm:$0xf] %v2604
          %2673 = vst [vmem:[%s2661 + $0x2c] sm:$0xf] %v2605
          %2674 = vst [vmem:[%s2661 + $0x30] sm:$0xf] %v2606
          %2675 = vst [vmem:[%s2661 + $0x34] sm:$0xf] %v2607
          %2676 = vst [vmem:[%s2661 + $0x38] sm:$0xf] %v2608
          %2677 = vst [vmem:[%s2661 + $0x3c] sm:$0xf] %v2609
          %2678 = vst [vmem:[%s2661 + $0x40] sm:$0xf] %v2610
          %2679 = vst [vmem:[%s2661 + $0x44] sm:$0xf] %v2611
          %2680 = vst [vmem:[%s2661 + $0x48] sm:$0xf] %v2612
          %2681 = vst [vmem:[%s2661 + $0x4c] sm:$0xf] %v2613
          %2682 = vst [vmem:[%s2661 + $0x50] sm:$0xf] %v2614
          %2683 = vst [vmem:[%s2661 + $0x54] sm:$0xf] %v2615
          %2684 = vst [vmem:[%s2661 + $0x58] sm:$0xf] %v2616
          %2685 = vst [vmem:[%s2661 + $0x5c] sm:$0xf] %v2617
          %2686 = vst [vmem:[%s2661 + $0x60] sm:$0xf] %v2618
          %2687 = vst [vmem:[%s2661 + $0x64] sm:$0xf] %v2619
          %2688 = vst [vmem:[%s2661 + $0x68] sm:$0xf] %v2620
          %2689 = vst [vmem:[%s2661 + $0x6c] sm:$0xf] %v2621
          %2690 = vst [vmem:[%s2661 + $0x70] sm:$0xf] %v2622
          %2691 = vst [vmem:[%s2661 + $0x74] sm:$0xf] %v2623
          %2692 = vst [vmem:[%s2661 + $0x78] sm:$0xf] %v2624
          %2693 = vst [vmem:[%s2661 + $0x7c] sm:$0xf] %v2625
        $region84: #{tpu_custom_call.1} parent=43 // pred_fallthru
          _
        %s2694 = sand.u32 %s198, 1
        %s2695 = scalar_lea.sflag [#allocation9], %s2694
        %s2696 = sand.u32 %s198, 1
        %s2697 = smul.addr %s2696, 512
        %s2698 = scalar_lea.vmem [#allocation16], %s2697
        %s2699 = sand.u32 %s224, 1
        %s2700 = scalar_lea.sflag [#allocation18], %s2699
        %s2701 = sand.u32 %s224, 1
        %s2702 = smul.addr %s2701, 8
        %s2703 = scalar_lea.vmem [#allocation17], %s2702
        // Predicated region
        $region85: #{tpu_custom_call.1} parent=43 // pred_check
          %p2704 = pneg %p208
        $region86: #{tpu_custom_call.1} parent=43 // pred_check_branch
          %2706 = sbr.rel (%p2704) target = $region88
        $region87: #{tpu_custom_call.1} parent=43 // pred_region
          %s2708 = ssub.s32 8192, 8192
          %2709 = vsyncadd %s2695, %s2708
          %s2710 = smul.addr %s35, 128
          %s2711 = scalar_lea.hbm %s6, %s2710
          %s2712 = sshll.u32 %s2698, 4
          %s2713 = int_to_ptr.vmem [resolvable:$true] %s2712
          %2718 = dma.vmem_to_hbm [thread:$0]  %s2713, 8192, %s2711, %s2695, 128, 256, 8
        $region88: #{tpu_custom_call.1} parent=43 // pred_fallthru
          _
        // Predicated region
        $region89: #{tpu_custom_call.1} parent=43 // pred_check
          %p2719 = pneg %p234
        $region90: #{tpu_custom_call.1} parent=43 // pred_check_branch
          %2721 = sbr.rel (%p2719) target = $region92
        $region91: #{tpu_custom_call.1} parent=43 // pred_region
          %s2723 = ssub.s32 128, 128
          %2724 = vsyncadd %s2700, %s2723
          %s2725 = smul.addr %s35, 128
          %s2726 = scalar_lea.hbm %s7, %s2725
          %s2728 = sshll.u32 %s2703, 4
          %s2729 = int_to_ptr.vmem [resolvable:$true] %s2728
          %2731 = dma.vmem_to_hbm [thread:$0]  %s2729, 128, %s2726, %s2700
        $region92: #{tpu_custom_call.1} parent=43 // pred_fallthru
          _
      $region44: #{tpu_custom_call.1} parent=5 // pred_fallthru
        _
      %p2732 = scmp.le.s32.totalorder 2, %s25
      // Predicated region
      $region93: #{tpu_custom_call.1} parent=5 // pred_check
        %p2733 = pneg %p2732
      $region94: #{tpu_custom_call.1} parent=5 // pred_check_branch
        %2735 = sbr.rel (%p2733) target = $region96
      $region95: #{tpu_custom_call.1} parent=5 // pred_region
        %s2736 = ssub.s32 %s25, 2
        // Predicated region
        $region97: #{tpu_custom_call.1} parent=95 // pred_check
          %p2737 = pneg %p214
        $region98: #{tpu_custom_call.1} parent=95 // pred_check_branch
          %2739 = sbr.rel (%p2737) target = $region100
        $region99: #{tpu_custom_call.1} parent=95 // pred_region
          %s2740 = sand.u32 %s199, 1
          %s2741 = scalar_lea.sflag [#allocation9], %s2740
          %s2742 = sand.u32 %s199, 1
          %s2743 = smul.addr %s2742, 512
          %s2744 = scalar_lea.vmem [#allocation16], %s2743
          %2745 = dma.done %s2741, 8192
        $region100: #{tpu_custom_call.1} parent=95 // pred_fallthru
          _
        // Predicated region
        $region101: #{tpu_custom_call.1} parent=95 // pred_check
          %p2746 = pneg %p240
        $region102: #{tpu_custom_call.1} parent=95 // pred_check_branch
          %2748 = sbr.rel (%p2746) target = $region104
        $region103: #{tpu_custom_call.1} parent=95 // pred_region
          %s2749 = sand.u32 %s225, 1
          %s2750 = scalar_lea.sflag [#allocation18], %s2749
          %s2751 = sand.u32 %s225, 1
          %s2752 = smul.addr %s2751, 8
          %s2753 = scalar_lea.vmem [#allocation17], %s2752
          %2754 = dma.done %s2750, 128
        $region104: #{tpu_custom_call.1} parent=95 // pred_fallthru
          _
      $region96: #{tpu_custom_call.1} parent=5 // pred_fallthru
        _
    $region6: #{tpu_custom_call.1} parent=1 // loop_footer
      %s29 = sadd.s32 1, %s25
    $region7: #{tpu_custom_call.1} parent=1 // loop_footer_branch
      %24 = sbr.rel target = $region3
    $region8: #{tpu_custom_call.1} parent=1 // loop_exit
      _
    %2755 = vsyncpa [#allocation8], 1
    %s2756 = scalar_lea.sflag [#allocation8], 1
    %2757 = vsyncpa %s2756, 1
    %2758 = vsyncpa [#allocation11], 1
    %2759 = vsyncpa [#allocation14], 1
    %s2760 = scalar_lea.sflag [#allocation14], 1
    %2761 = vsyncpa %s2760, 1
    %2762 = vsyncpa [#allocation9], 1
    %s2763 = scalar_lea.sflag [#allocation9], 1
    %2764 = vsyncpa %s2763, 1
    %2765 = vsyncpa [#allocation18], 1
    %s2766 = scalar_lea.sflag [#allocation18], 1
    %2767 = vsyncpa %s2766, 1

// kernel: tpu_custom_call.1
$region0: #{tpu_custom_call.1}
  #allocation0 [shape = 'u32[]', space=smem, size = 0x4, offset = 0x4, fixed_abs, tag = 'smem constant byte address 0x4 - core index']
  #allocation1 [shape = 'u32[144,128]{1,0:T(1,128)}', space=vmem, size = 0x12000, scoped, tag = 'internal scratch']
  #allocation2 [shape = 'bf16[512,128]{1,0:T(8,128)(2,1)}', space=vmem, size = 0x20000, scoped, tag = 'scratch operand']
  #allocation3 [shape = 'f32[512,128]{1,0:T(8,128)}', space=vmem, size = 0x40000, scoped, tag = 'scratch operand']
  #allocation4 [shape = 'f32[1,128]{1,0:T(1,128)}', space=vmem, size = 0x200, scoped, tag = 'scratch operand']
  #allocation5 [shape = 'f32[1,128]{1,0:T(1,128)}', space=vmem, size = 0x200, scoped, tag = 'scratch operand']
  #allocation6 [shape = 'f32[8,128]{1,0:T(8,128)}', space=vmem, size = 0x1000, scoped, tag = 'scratch operand']
  %s0 = inlined_call_operand.hbm [shape: bf16[512,128], index: 0, kind: input, shape index: {}]
  %s1 = inlined_call_operand.hbm [shape: bf16[512,512], index: 1, kind: input, shape index: {}]
  %s2 = inlined_call_operand.hbm [shape: f32[8,512], index: 2, kind: input, shape index: {}]
  %s3 = inlined_call_operand.hbm [shape: bf16[2,128,128], index: 3, kind: input, shape index: {}]
  %s4 = inlined_call_operand.hbm [shape: bf16[2,128,128], index: 4, kind: input, shape index: {}]
  %s5 = inlined_call_operand.vmem [shape: f32[2,4,128], index: 5, kind: input, shape index: {}]
  %s6 = inlined_call_operand.hbm [shape: f32[512,256], index: 6, kind: output, shape index: {0}]
  %s7 = inlined_call_operand.hbm [shape: f32[8,256], index: 7, kind: output, shape index: {1}]
  %8 = xla_tuple %s6, %s7
  %s9 = sld [smem:[#allocation0]]
  $region105: #{tpu_custom_call.1} parent=0
    _
  %s11 = ssub.s32 1, %s9
  %s12 = scalar_select 0, %s11, %s9
  $region1: #{tpu_custom_call.1} parent=0
    #allocation7 [shape = 'u8[131072]{0}', space=vmem, size = 0x20000, scoped, tag = 'input window, operand 0, single buffered']
    #allocation8 [shape = 's32[2]{0}', space=sflag, size = 0x8, scoped, tag = 'scoped memory for tpu_custom_call.1']
    #allocation9 [shape = 's32[2]{0}', space=sflag, size = 0x8, scoped, tag = 'scoped memory for tpu_custom_call.1']
    #allocation10 [shape = 'u8[524288]{0}', space=vmem, size = 0x80000, scoped, tag = 'input window, operand 1, single buffered']
    #allocation11 [shape = 's32[1]{0}', space=sflag, size = 0x4, scoped, tag = 'scoped memory for tpu_custom_call.1']
    #allocation12 [shape = 'u8[16384]{0}', space=vmem, size = 0x4000, scoped, tag = 'input window, operand 2, single buffered']
    #allocation13 [shape = 'u8[65536]{0}', space=vmem, size = 0x10000, scoped, tag = 'input window, operand 3']
    #allocation14 [shape = 's32[2]{0}', space=sflag, size = 0x8, scoped, tag = 'scoped memory for tpu_custom_call.1']
    #allocation15 [shape = 'u8[65536]{0}', space=vmem, size = 0x10000, scoped, tag = 'input window, operand 4']
    #allocation16 [shape = 'u8[524288]{0}', space=vmem, size = 0x80000, scoped, tag = 'output window, operand 0']
    #allocation17 [shape = 'u8[8192]{0}', space=vmem, size = 0x2000, scoped, tag = 'output window, operand 1']
    #allocation18 [shape = 's32[2]{0}', space=sflag, size = 0x8, scoped, tag = 'scoped memory for tpu_custom_call.1']
    %13 = vsyncpa [#allocation8], 0
    %14 = vsyncpa [#allocation11], 0
    %15 = vsyncpa [#allocation14], 0
    %s16 = scalar_lea.sflag [#allocation14], 1
    %17 = vsyncpa %s16, 0
    %18 = vsyncpa [#allocation9], 0
    %s19 = scalar_lea.sflag [#allocation9], 1
    %20 = vsyncpa %s19, 0
    %21 = vsyncpa [#allocation18], 0
    %s22 = scalar_lea.sflag [#allocation18], 1
    %23 = vsyncpa %s22, 0
    loop: start=0, step=1, limit=10
    $region2: #{tpu_custom_call.1} parent=1 // loop_pre_header
      _
    $region3: #{tpu_custom_call.1} parent=1 // loop_header
      %s25 = sphi 0, %s29
      %p26 = scmp.ge.s32.totalorder %s25, 10
      %s32 = sphi 0, %s51
      %s33 = sphi 0, %s47
      %s34 = sphi 0, %s43
      %s35 = sphi 0, %s32
      %s36 = sphi 0, %s33
      %s37 = sphi 0, %s34
      %s38 = sphi 0, %s35
      %s39 = sphi 0, %s36
      %s40 = sphi 0, %s37
      %s52 = sphi 0, %s52
      %s54 = sphi 0, %s52
      %s55 = sphi 0, %s54
      %s69 = sphi 0, %s55
      %s73 = sphi 0, %s73
      %s75 = sphi 0, %s73
      %s76 = sphi 0, %s75
      %s90 = sphi 0, %s76
      %s94 = sphi 0, %s94
      %s96 = sphi 0, %s94
      %s97 = sphi 0, %s96
      %s111 = sphi 0, %s97
      %s117 = sphi 0, %s119
      %s120 = sphi 0, %s117
      %s121 = sphi 0, %s120
      %s137 = sphi 0, %s121
      %s143 = sphi 0, %s145
      %s146 = sphi 0, %s143
      %s147 = sphi 0, %s146
      %s163 = sphi 0, %s147
      %s169 = sphi 0, %s171
      %s172 = sphi 0, %s169
      %s173 = sphi 0, %s172
      %s189 = sphi 0, %s173
      %s195 = sphi 0, %s197
      %s198 = sphi 0, %s195
      %s199 = sphi 0, %s198
      %s215 = sphi 0, %s199
      %s221 = sphi 0, %s223
      %s224 = sphi 0, %s221
      %s225 = sphi 0, %s224
      %s241 = sphi 0, %s225
    $region4: #{tpu_custom_call.1} parent=1 // loop_header_branch
      %28 = sbr.rel (%p26) target = $region8
    $region5: #{tpu_custom_call.1} parent=1 // loop_body
      %s30 = ssub.s32 %s25, 1
      %s31 = ssub.s32 %s25, 2
      %s41 = sadd.s32 1, %s34
      %p42 = scmp.ge.s32.totalorder %s41, 2
      %s43 = scalar_select %p42, 0, %s41
      %s44 = sadd.s32 1, %s33
      %s45 = scalar_select %p42, %s44, %s33
      %p46 = scmp.ge.s32.totalorder %s45, 2
      %s47 = scalar_select %p46, 0, %s45
      %s48 = sadd.s32 1, %s32
      %s49 = scalar_select %p46, %s48, %s32
      %p50 = scmp.ge.s32.totalorder %s49, 2
      %s51 = scalar_select %p50, 0, %s49
      %s53 = sadd.s32 %s52, 1
      %p56 = scmp.eq.s32.totalorder %s25, 7
      %p57 = scmp.ne.s32.totalorder %s52, %s54
      %p58 = scmp.eq.s32.totalorder %s25, 0
      %p59 = por %p57, %p58
      %p60 = scmp.ne.s32.totalorder %s52, %s54
      %p61 = scmp.eq.s32.totalorder %s30, 7
      %p62 = por %p60, %p61
      %p63 = scmp.ne.s32.totalorder %s54, %s55
      %p64 = scmp.eq.s32.totalorder %s30, 0
      %p65 = por %p63, %p64
      %p66 = scmp.ne.s32.totalorder %s54, %s55
      %p67 = scmp.eq.s32.totalorder %s31, 7
      %p68 = por %p66, %p67
      %p70 = scmp.ne.s32.totalorder %s55, %s69
      %p71 = scmp.eq.s32.totalorder %s31, 0
      %p72 = por %p70, %p71
      %s74 = sadd.s32 %s73, 1
      %p77 = scmp.eq.s32.totalorder %s25, 7
      %p78 = scmp.ne.s32.totalorder %s73, %s75
      %p79 = scmp.eq.s32.totalorder %s25, 0
      %p80 = por %p78, %p79
      %p81 = scmp.ne.s32.totalorder %s73, %s75
      %p82 = scmp.eq.s32.totalorder %s30, 7
      %p83 = por %p81, %p82
      %p84 = scmp.ne.s32.totalorder %s75, %s76
      %p85 = scmp.eq.s32.totalorder %s30, 0
      %p86 = por %p84, %p85
      %p87 = scmp.ne.s32.totalorder %s75, %s76
      %p88 = scmp.eq.s32.totalorder %s31, 7
      %p89 = por %p87, %p88
      %p91 = scmp.ne.s32.totalorder %s76, %s90
      %p92 = scmp.eq.s32.totalorder %s31, 0
      %p93 = por %p91, %p92
      %s95 = sadd.s32 %s94, 1
      %p98 = scmp.eq.s32.totalorder %s25, 7
      %p99 = scmp.ne.s32.totalorder %s94, %s96
      %p100 = scmp.eq.s32.totalorder %s25, 0
      %p101 = por %p99, %p100
      %p102 = scmp.ne.s32.totalorder %s94, %s96
      %p103 = scmp.eq.s32.totalorder %s30, 7
      %p104 = por %p102, %p103
      %p105 = scmp.ne.s32.totalorder %s96, %s97
      %p106 = scmp.eq.s32.totalorder %s30, 0
      %p107 = por %p105, %p106
      %p108 = scmp.ne.s32.totalorder %s96, %s97
      %p109 = scmp.eq.s32.totalorder %s31, 7
      %p110 = por %p108, %p109
      %p112 = scmp.ne.s32.totalorder %s97, %s111
      %p113 = scmp.eq.s32.totalorder %s31, 0
      %p114 = por %p112, %p113
      %s115 = ssub.s32 %s32, %s51
      %p116 = scmp.eq.s32.totalorder %s115, 0
      %s118 = sadd.s32 %s117, 1
      %s119 = scalar_select %p116, %s117, %s118
      %p122 = pneg %p116
      %p123 = scmp.eq.s32.totalorder %s25, 7
      %p124 = por %p122, %p123
      %p125 = scmp.ne.s32.totalorder %s117, %s120
      %p126 = scmp.eq.s32.totalorder %s25, 0
      %p127 = por %p125, %p126
      %p128 = scmp.ne.s32.totalorder %s117, %s120
      %p129 = scmp.eq.s32.totalorder %s30, 7
      %p130 = por %p128, %p129
      %p131 = scmp.ne.s32.totalorder %s120, %s121
      %p132 = scmp.eq.s32.totalorder %s30, 0
      %p133 = por %p131, %p132
      %p134 = scmp.ne.s32.totalorder %s120, %s121
      %p135 = scmp.eq.s32.totalorder %s31, 7
      %p136 = por %p134, %p135
      %p138 = scmp.ne.s32.totalorder %s121, %s137
      %p139 = scmp.eq.s32.totalorder %s31, 0
      %p140 = por %p138, %p139
      %s141 = ssub.s32 %s32, %s51
      %p142 = scmp.eq.s32.totalorder %s141, 0
      %s144 = sadd.s32 %s143, 1
      %s145 = scalar_select %p142, %s143, %s144
      %p148 = pneg %p142
      %p149 = scmp.eq.s32.totalorder %s25, 7
      %p150 = por %p148, %p149
      %p151 = scmp.ne.s32.totalorder %s143, %s146
      %p152 = scmp.eq.s32.totalorder %s25, 0
      %p153 = por %p151, %p152
      %p154 = scmp.ne.s32.totalorder %s143, %s146
      %p155 = scmp.eq.s32.totalorder %s30, 7
      %p156 = por %p154, %p155
      %p157 = scmp.ne.s32.totalorder %s146, %s147
      %p158 = scmp.eq.s32.totalorder %s30, 0
      %p159 = por %p157, %p158
      %p160 = scmp.ne.s32.totalorder %s146, %s147
      %p161 = scmp.eq.s32.totalorder %s31, 7
      %p162 = por %p160, %p161
      %p164 = scmp.ne.s32.totalorder %s147, %s163
      %p165 = scmp.eq.s32.totalorder %s31, 0
      %p166 = por %p164, %p165
      %s167 = ssub.s32 %s32, %s51
      %p168 = scmp.eq.s32.totalorder %s167, 0
      %s170 = sadd.s32 %s169, 1
      %s171 = scalar_select %p168, %s169, %s170
      %p174 = pneg %p168
      %p175 = scmp.eq.s32.totalorder %s25, 7
      %p176 = por %p174, %p175
      %p177 = scmp.ne.s32.totalorder %s169, %s172
      %p178 = scmp.eq.s32.totalorder %s25, 0
      %p179 = por %p177, %p178
      %p180 = scmp.ne.s32.totalorder %s169, %s172
      %p181 = scmp.eq.s32.totalorder %s30, 7
      %p182 = por %p180, %p181
      %p183 = scmp.ne.s32.totalorder %s172, %s173
      %p184 = scmp.eq.s32.totalorder %s30, 0
      %p185 = por %p183, %p184
      %p186 = scmp.ne.s32.totalorder %s172, %s173
      %p187 = scmp.eq.s32.totalorder %s31, 7
      %p188 = por %p186, %p187
      %p190 = scmp.ne.s32.totalorder %s173, %s189
      %p191 = scmp.eq.s32.totalorder %s31, 0
      %p192 = por %p190, %p191
      %s193 = ssub.s32 %s32, %s51
      %p194 = scmp.eq.s32.totalorder %s193, 0
      %s196 = sadd.s32 %s195, 1
      %s197 = scalar_select %p194, %s195, %s196
      %p200 = pneg %p194
      %p201 = scmp.eq.s32.totalorder %s25, 7
      %p202 = por %p200, %p201
      %p203 = scmp.ne.s32.totalorder %s195, %s198
      %p204 = scmp.eq.s32.totalorder %s25, 0
      %p205 = por %p203, %p204
      %p206 = scmp.ne.s32.totalorder %s195, %s198
      %p207 = scmp.eq.s32.totalorder %s30, 7
      %p208 = por %p206, %p207
      %p209 = scmp.ne.s32.totalorder %s198, %s199
      %p210 = scmp.eq.s32.totalorder %s30, 0
      %p211 = por %p209, %p210
      %p212 = scmp.ne.s32.totalorder %s198, %s199
      %p213 = scmp.eq.s32.totalorder %s31, 7
      %p214 = por %p212, %p213
      %p216 = scmp.ne.s32.totalorder %s199, %s215
      %p217 = scmp.eq.s32.totalorder %s31, 0
      %p218 = por %p216, %p217
      %s219 = ssub.s32 %s32, %s51
      %p220 = scmp.eq.s32.totalorder %s219, 0
      %s222 = sadd.s32 %s221, 1
      %s223 = scalar_select %p220, %s221, %s222
      %p226 = pneg %p220
      %p227 = scmp.eq.s32.totalorder %s25, 7
      %p228 = por %p226, %p227
      %p229 = scmp.ne.s32.totalorder %s221, %s224
      %p230 = scmp.eq.s32.totalorder %s25, 0
      %p231 = por %p229, %p230
      %p232 = scmp.ne.s32.totalorder %s221, %s224
      %p233 = scmp.eq.s32.totalorder %s30, 7
      %p234 = por %p232, %p233
      %p235 = scmp.ne.s32.totalorder %s224, %s225
      %p236 = scmp.eq.s32.totalorder %s30, 0
      %p237 = por %p235, %p236
      %p238 = scmp.ne.s32.totalorder %s224, %s225
      %p239 = scmp.eq.s32.totalorder %s31, 7
      %p240 = por %p238, %p239
      %p242 = scmp.ne.s32.totalorder %s225, %s241
      %p243 = scmp.eq.s32.totalorder %s31, 0
      %p244 = por %p242, %p243
      %p245 = scmp.le.s32.totalorder 1, %s25
      %p246 = scmp.lt.s32.totalorder %s25, 9
      %p247 = pnand %p245, %p246
      %p248 = pneg %p247
      // Predicated region
      $region9: #{tpu_custom_call.1} parent=5 // pred_check
        _
      $region10: #{tpu_custom_call.1} parent=5 // pred_check_branch
        %250 = sbr.rel (%p247) target = $region12
      $region11: #{tpu_custom_call.1} parent=5 // pred_region
        %s251 = ssub.s32 %s25, 1
        // Predicated region
        $region13: #{tpu_custom_call.1} parent=11 // pred_check
          %p252 = pneg %p65
        $region14: #{tpu_custom_call.1} parent=11 // pred_check_branch
          %254 = sbr.rel (%p252) target = $region16
        $region15: #{tpu_custom_call.1} parent=11 // pred_region
          %s256 = ssub.s32 4096, 4096
          %257 = vsyncadd [#allocation8], %s256
          %s258 = sshll.u32 [#allocation7], 4
          %s259 = int_to_ptr.vmem [resolvable:$true] %s258
          %264 = dma.hbm_to_vmem [thread:$0]  %s0, 4096, %s259, [#allocation8], 64, 64, 4
        $region16: #{tpu_custom_call.1} parent=11 // pred_fallthru
          _
        // Predicated region
        $region17: #{tpu_custom_call.1} parent=11 // pred_check
          %p265 = pneg %p86
        $region18: #{tpu_custom_call.1} parent=11 // pred_check_branch
          %267 = sbr.rel (%p265) target = $region20
        $region19: #{tpu_custom_call.1} parent=11 // pred_region
          %s269 = ssub.s32 16384, 16384
          %270 = vsyncadd [#allocation11], %s269
          %s271 = sshll.u32 [#allocation10], 4
          %s272 = int_to_ptr.vmem [resolvable:$true] %s271
          %277 = dma.hbm_to_vmem [thread:$0]  %s1, 16384, %s272, [#allocation11], 256, 256, 16
        $region20: #{tpu_custom_call.1} parent=11 // pred_fallthru
          _
        // Predicated region
        $region21: #{tpu_custom_call.1} parent=11 // pred_check
          %p278 = pneg %p107
        $region22: #{tpu_custom_call.1} parent=11 // pred_check_branch
          %280 = sbr.rel (%p278) target = $region24
        $region23: #{tpu_custom_call.1} parent=11 // pred_region
          %s282 = ssub.s32 512, 512
          %283 = vsyncadd [#allocation11], %s282
          %s285 = sshll.u32 [#allocation12], 4
          %s286 = int_to_ptr.vmem [resolvable:$true] %s285
          %288 = dma.hbm_to_vmem [thread:$0]  %s2, 512, %s286, [#allocation11]
        $region24: #{tpu_custom_call.1} parent=11 // pred_fallthru
          _
      $region12: #{tpu_custom_call.1} parent=5 // pred_fallthru
        _
      %p289 = scmp.lt.s32.totalorder %s25, 8
      // Predicated region
      $region25: #{tpu_custom_call.1} parent=5 // pred_check
        %p290 = pneg %p289
      $region26: #{tpu_custom_call.1} parent=5 // pred_check_branch
        %292 = sbr.rel (%p290) target = $region28
      $region27: #{tpu_custom_call.1} parent=5 // pred_region
        // Predicated region
        $region29: #{tpu_custom_call.1} parent=27 // pred_check
          %p293 = pneg %p127
        $region30: #{tpu_custom_call.1} parent=27 // pred_check_branch
          %295 = sbr.rel (%p293) target = $region32
        $region31: #{tpu_custom_call.1} parent=27 // pred_region
          %s296 = sand.u32 %s25, 1
          %s297 = scalar_lea.sflag [#allocation14], %s296
          %s298 = sand.u32 %s117, 1
          %s299 = smul.addr %s298, 64
          %s300 = scalar_lea.vmem [#allocation13], %s299
          %s302 = ssub.s32 1024, 1024
          %303 = vsyncadd %s297, %s302
          %s304 = smul.addr %s32, 16
          %s305 = smul.addr %s304, 64
          %s306 = scalar_lea.hbm %s3, %s305
          %s307 = sshll.u32 %s300, 4
          %s308 = int_to_ptr.vmem [resolvable:$true] %s307
          %313 = dma.hbm_to_vmem [thread:$0]  %s306, 1024, %s308, %s297, 64, 64, 4
        $region32: #{tpu_custom_call.1} parent=27 // pred_fallthru
          _
        // Predicated region
        $region33: #{tpu_custom_call.1} parent=27 // pred_check
          %p314 = pneg %p153
        $region34: #{tpu_custom_call.1} parent=27 // pred_check_branch
          %316 = sbr.rel (%p314) target = $region36
        $region35: #{tpu_custom_call.1} parent=27 // pred_region
          %s317 = sand.u32 %s25, 1
          %s318 = scalar_lea.sflag [#allocation14], %s317
          %s319 = sand.u32 %s143, 1
          %s320 = smul.addr %s319, 64
          %s321 = scalar_lea.vmem [#allocation15], %s320
          %s323 = ssub.s32 1024, 1024
          %324 = vsyncadd %s318, %s323
          %s325 = smul.addr %s32, 16
          %s326 = smul.addr %s325, 64
          %s327 = scalar_lea.hbm %s4, %s326
          %s328 = sshll.u32 %s321, 4
          %s329 = int_to_ptr.vmem [resolvable:$true] %s328
          %334 = dma.hbm_to_vmem [thread:$0]  %s327, 1024, %s329, %s318, 64, 64, 4
        $region36: #{tpu_custom_call.1} parent=27 // pred_fallthru
          _
        // Predicated region
        $region37: #{tpu_custom_call.1} parent=27 // pred_check
          %p335 = pneg %p179
        $region38: #{tpu_custom_call.1} parent=27 // pred_check_branch
          %337 = sbr.rel (%p335) target = $region40
        $region39: #{tpu_custom_call.1} parent=27 // pred_region
          %p338 = scmp.lt.s32.totalorder %s32, 1
          %s339 = scalar_select %p338, %s32, 1
          %s340 = smul.addr %s339, 4
          %s341 = scalar_lea.vmem %s5, %s340
        $region40: #{tpu_custom_call.1} parent=27 // pred_fallthru
          _
      $region28: #{tpu_custom_call.1} parent=5 // pred_fallthru
        _
      %p342 = scmp.le.s32.totalorder 1, %s25
      %p343 = scmp.lt.s32.totalorder %s25, 9
      %p344 = pnand %p342, %p343
      %p345 = pneg %p344
      // Predicated region
      $region41: #{tpu_custom_call.1} parent=5 // pred_check
        _
      $region42: #{tpu_custom_call.1} parent=5 // pred_check_branch
        %347 = sbr.rel (%p344) target = $region44
      $region43: #{tpu_custom_call.1} parent=5 // pred_region
        %s348 = ssub.s32 %s25, 1
        // Predicated region
        $region45: #{tpu_custom_call.1} parent=43 // pred_check
          %p349 = pneg %p65
        $region46: #{tpu_custom_call.1} parent=43 // pred_check_branch
          %351 = sbr.rel (%p349) target = $region48
        $region47: #{tpu_custom_call.1} parent=43 // pred_region
          %352 = dma.done [#allocation8], 4096
        $region48: #{tpu_custom_call.1} parent=43 // pred_fallthru
          _
        // Predicated region
        $region49: #{tpu_custom_call.1} parent=43 // pred_check
          %p353 = pneg %p86
        $region50: #{tpu_custom_call.1} parent=43 // pred_check_branch
          %355 = sbr.rel (%p353) target = $region52
        $region51: #{tpu_custom_call.1} parent=43 // pred_region
          %356 = dma.done [#allocation11], 16384
        $region52: #{tpu_custom_call.1} parent=43 // pred_fallthru
          _
        // Predicated region
        $region53: #{tpu_custom_call.1} parent=43 // pred_check
          %p357 = pneg %p107
        $region54: #{tpu_custom_call.1} parent=43 // pred_check_branch
          %359 = sbr.rel (%p357) target = $region56
        $region55: #{tpu_custom_call.1} parent=43 // pred_region
          %360 = dma.done [#allocation11], 512
        $region56: #{tpu_custom_call.1} parent=43 // pred_fallthru
          _
        %s361 = sand.u32 %s30, 1
        %s362 = scalar_lea.sflag [#allocation14], %s361
        %s363 = sand.u32 %s120, 1
        %s364 = smul.addr %s363, 64
        %s365 = scalar_lea.vmem [#allocation13], %s364
        // Predicated region
        $region57: #{tpu_custom_call.1} parent=43 // pred_check
          %p366 = pneg %p133
        $region58: #{tpu_custom_call.1} parent=43 // pred_check_branch
          %368 = sbr.rel (%p366) target = $region60
        $region59: #{tpu_custom_call.1} parent=43 // pred_region
          %369 = dma.done %s362, 1024
        $region60: #{tpu_custom_call.1} parent=43 // pred_fallthru
          _
        %s370 = sand.u32 %s30, 1
        %s371 = scalar_lea.sflag [#allocation14], %s370
        %s372 = sand.u32 %s146, 1
        %s373 = smul.addr %s372, 64
        %s374 = scalar_lea.vmem [#allocation15], %s373
        // Predicated region
        $region61: #{tpu_custom_call.1} parent=43 // pred_check
          %p375 = pneg %p159
        $region62: #{tpu_custom_call.1} parent=43 // pred_check_branch
          %377 = sbr.rel (%p375) target = $region64
        $region63: #{tpu_custom_call.1} parent=43 // pred_region
          %378 = dma.done %s371, 1024
        $region64: #{tpu_custom_call.1} parent=43 // pred_fallthru
          _
        %p379 = pneg %p65
        %p380 = pneg %p62
        %p381 = pneg %p86
        %p382 = pneg %p83
        %p383 = pneg %p107
        %p384 = pneg %p104
        %s385 = sand.u32 %s30, 1
        %s386 = scalar_lea.sflag [#allocation14], %s385
        %s387 = sand.u32 %s120, 1
        %s388 = smul.addr %s387, 64
        %s389 = scalar_lea.vmem [#allocation13], %s388
        %p390 = pneg %p133
        %p391 = pneg %p130
        %s392 = sand.u32 %s30, 1
        %s393 = scalar_lea.sflag [#allocation14], %s392
        %s394 = sand.u32 %s146, 1
        %s395 = smul.addr %s394, 64
        %s396 = scalar_lea.vmem [#allocation15], %s395
        %p397 = pneg %p159
        %p398 = pneg %p156
        %p399 = scmp.lt.s32.totalorder %s35, 1
        %s400 = scalar_select %p399, %s35, 1
        %s401 = smul.addr %s400, 4
        %s402 = scalar_lea.vmem %s5, %s401
        %p403 = pneg %p185
        %p404 = pneg %p182
        %p405 = pneg %p211
        %p406 = pneg %p208
        %s407 = sand.u32 %s198, 1
        %s408 = scalar_lea.sflag [#allocation9], %s407
        %s409 = sand.u32 %s198, 1
        %s410 = smul.addr %s409, 512
        %s411 = scalar_lea.vmem [#allocation16], %s410
        %p412 = pneg %p237
        %p413 = pneg %p234
        %s414 = sand.u32 %s224, 1
        %s415 = scalar_lea.sflag [#allocation18], %s414
        %s416 = sand.u32 %s224, 1
        %s417 = smul.addr %s416, 8
        %s418 = scalar_lea.vmem [#allocation17], %s417
        %p419 = scmp.lt.s32.totalorder %s35, 1
        %s420 = scalar_select %p419, %s35, 1
        %s421 = smul.addr %s420, 4
        %s422 = scalar_lea.vmem %s5, %s421
        %s424 = smul.u32 %s37, 256
        %p425 = scmp.eq.s32.totalorder %s35, 0
        %p426 = scmp.eq.s32.totalorder %s36, 0
        %p427 = scmp.eq.s32.totalorder %s37, 0
        %p428 = pnand %p426, %p427
        %p429 = pneg %p428
        %p430 = pnand %p425, %p429
        %p431 = pneg %p430
        // Predicated region
        $region65: #{tpu_custom_call.1} parent=43 // pred_check
          _
        $region66: #{tpu_custom_call.1} parent=43 // pred_check_branch
          %433 = sbr.rel (%p430) target = $region68
        $region67: #{tpu_custom_call.1} parent=43 // pred_region
          %v434 = vld [vmem:[#allocation7] sm:$0xf]
          %v435 = vld [vmem:[#allocation7 + $0x4] sm:$0xf]
          %v436 = vld [vmem:[#allocation7 + $0x8] sm:$0xf]
          %v437 = vld [vmem:[#allocation7 + $0xc] sm:$0xf]
          %v438 = vld [vmem:[#allocation7 + $0x10] sm:$0xf]
          %v439 = vld [vmem:[#allocation7 + $0x14] sm:$0xf]
          %v440 = vld [vmem:[#allocation7 + $0x18] sm:$0xf]
          %v441 = vld [vmem:[#allocation7 + $0x1c] sm:$0xf]
          %v442 = vld [vmem:[#allocation7 + $0x20] sm:$0xf]
          %v443 = vld [vmem:[#allocation7 + $0x24] sm:$0xf]
          %v444 = vld [vmem:[#allocation7 + $0x28] sm:$0xf]
          %v445 = vld [vmem:[#allocation7 + $0x2c] sm:$0xf]
          %v446 = vld [vmem:[#allocation7 + $0x30] sm:$0xf]
          %v447 = vld [vmem:[#allocation7 + $0x34] sm:$0xf]
          %v448 = vld [vmem:[#allocation7 + $0x38] sm:$0xf]
          %v449 = vld [vmem:[#allocation7 + $0x3c] sm:$0xf]
          %v450 = vld [vmem:[#allocation7 + $0x40] sm:$0xf]
          %v451 = vld [vmem:[#allocation7 + $0x44] sm:$0xf]
          %v452 = vld [vmem:[#allocation7 + $0x48] sm:$0xf]
          %v453 = vld [vmem:[#allocation7 + $0x4c] sm:$0xf]
          %v454 = vld [vmem:[#allocation7 + $0x50] sm:$0xf]
          %v455 = vld [vmem:[#allocation7 + $0x54] sm:$0xf]
          %v456 = vld [vmem:[#allocation7 + $0x58] sm:$0xf]
          %v457 = vld [vmem:[#allocation7 + $0x5c] sm:$0xf]
          %v458 = vld [vmem:[#allocation7 + $0x60] sm:$0xf]
          %v459 = vld [vmem:[#allocation7 + $0x64] sm:$0xf]
          %v460 = vld [vmem:[#allocation7 + $0x68] sm:$0xf]
          %v461 = vld [vmem:[#allocation7 + $0x6c] sm:$0xf]
          %v462 = vld [vmem:[#allocation7 + $0x70] sm:$0xf]
          %v463 = vld [vmem:[#allocation7 + $0x74] sm:$0xf]
          %v464 = vld [vmem:[#allocation7 + $0x78] sm:$0xf]
          %v465 = vld [vmem:[#allocation7 + $0x7c] sm:$0xf]
          %v466 = vld [vmem:[#allocation7 + $0x80] sm:$0xf]
          %v467 = vld [vmem:[#allocation7 + $0x84] sm:$0xf]
          %v468 = vld [vmem:[#allocation7 + $0x88] sm:$0xf]
          %v469 = vld [vmem:[#allocation7 + $0x8c] sm:$0xf]
          %v470 = vld [vmem:[#allocation7 + $0x90] sm:$0xf]
          %v471 = vld [vmem:[#allocation7 + $0x94] sm:$0xf]
          %v472 = vld [vmem:[#allocation7 + $0x98] sm:$0xf]
          %v473 = vld [vmem:[#allocation7 + $0x9c] sm:$0xf]
          %v474 = vld [vmem:[#allocation7 + $0xa0] sm:$0xf]
          %v475 = vld [vmem:[#allocation7 + $0xa4] sm:$0xf]
          %v476 = vld [vmem:[#allocation7 + $0xa8] sm:$0xf]
          %v477 = vld [vmem:[#allocation7 + $0xac] sm:$0xf]
          %v478 = vld [vmem:[#allocation7 + $0xb0] sm:$0xf]
          %v479 = vld [vmem:[#allocation7 + $0xb4] sm:$0xf]
          %v480 = vld [vmem:[#allocation7 + $0xb8] sm:$0xf]
          %v481 = vld [vmem:[#allocation7 + $0xbc] sm:$0xf]
          %v482 = vld [vmem:[#allocation7 + $0xc0] sm:$0xf]
          %v483 = vld [vmem:[#allocation7 + $0xc4] sm:$0xf]
          %v484 = vld [vmem:[#allocation7 + $0xc8] sm:$0xf]
          %v485 = vld [vmem:[#allocation7 + $0xcc] sm:$0xf]
          %v486 = vld [vmem:[#allocation7 + $0xd0] sm:$0xf]
          %v487 = vld [vmem:[#allocation7 + $0xd4] sm:$0xf]
          %v488 = vld [vmem:[#allocation7 + $0xd8] sm:$0xf]
          %v489 = vld [vmem:[#allocation7 + $0xdc] sm:$0xf]
          %v490 = vld [vmem:[#allocation7 + $0xe0] sm:$0xf]
          %v491 = vld [vmem:[#allocation7 + $0xe4] sm:$0xf]
          %v492 = vld [vmem:[#allocation7 + $0xe8] sm:$0xf]
          %v493 = vld [vmem:[#allocation7 + $0xec] sm:$0xf]
          %v494 = vld [vmem:[#allocation7 + $0xf0] sm:$0xf]
          %v495 = vld [vmem:[#allocation7 + $0xf4] sm:$0xf]
          %v496 = vld [vmem:[#allocation7 + $0xf8] sm:$0xf]
          %v497 = vld [vmem:[#allocation7 + $0xfc] sm:$0xf]
          %498 = vst [vmem:[#allocation2] sm:$0xf] %v434
          %499 = vst [vmem:[#allocation2 + $0x4] sm:$0xf] %v435
          %500 = vst [vmem:[#allocation2 + $0x8] sm:$0xf] %v436
          %501 = vst [vmem:[#allocation2 + $0xc] sm:$0xf] %v437
          %502 = vst [vmem:[#allocation2 + $0x10] sm:$0xf] %v438
          %503 = vst [vmem:[#allocation2 + $0x14] sm:$0xf] %v439
          %504 = vst [vmem:[#allocation2 + $0x18] sm:$0xf] %v440
          %505 = vst [vmem:[#allocation2 + $0x1c] sm:$0xf] %v441
          %506 = vst [vmem:[#allocation2 + $0x20] sm:$0xf] %v442
          %507 = vst [vmem:[#allocation2 + $0x24] sm:$0xf] %v443
          %508 = vst [vmem:[#allocation2 + $0x28] sm:$0xf] %v444
          %509 = vst [vmem:[#allocation2 + $0x2c] sm:$0xf] %v445
          %510 = vst [vmem:[#allocation2 + $0x30] sm:$0xf] %v446
          %511 = vst [vmem:[#allocation2 + $0x34] sm:$0xf] %v447
          %512 = vst [vmem:[#allocation2 + $0x38] sm:$0xf] %v448
          %513 = vst [vmem:[#allocation2 + $0x3c] sm:$0xf] %v449
          %514 = vst [vmem:[#allocation2 + $0x40] sm:$0xf] %v450
          %515 = vst [vmem:[#allocation2 + $0x44] sm:$0xf] %v451
          %516 = vst [vmem:[#allocation2 + $0x48] sm:$0xf] %v452
          %517 = vst [vmem:[#allocation2 + $0x4c] sm:$0xf] %v453
          %518 = vst [vmem:[#allocation2 + $0x50] sm:$0xf] %v454
          %519 = vst [vmem:[#allocation2 + $0x54] sm:$0xf] %v455
          %520 = vst [vmem:[#allocation2 + $0x58] sm:$0xf] %v456
          %521 = vst [vmem:[#allocation2 + $0x5c] sm:$0xf] %v457
          %522 = vst [vmem:[#allocation2 + $0x60] sm:$0xf] %v458
          %523 = vst [vmem:[#allocation2 + $0x64] sm:$0xf] %v459
          %524 = vst [vmem:[#allocation2 + $0x68] sm:$0xf] %v460
          %525 = vst [vmem:[#allocation2 + $0x6c] sm:$0xf] %v461
          %526 = vst [vmem:[#allocation2 + $0x70] sm:$0xf] %v462
          %527 = vst [vmem:[#allocation2 + $0x74] sm:$0xf] %v463
          %528 = vst [vmem:[#allocation2 + $0x78] sm:$0xf] %v464
          %529 = vst [vmem:[#allocation2 + $0x7c] sm:$0xf] %v465
          %530 = vst [vmem:[#allocation2 + $0x80] sm:$0xf] %v466
          %531 = vst [vmem:[#allocation2 + $0x84] sm:$0xf] %v467
          %532 = vst [vmem:[#allocation2 + $0x88] sm:$0xf] %v468
          %533 = vst [vmem:[#allocation2 + $0x8c] sm:$0xf] %v469
          %534 = vst [vmem:[#allocation2 + $0x90] sm:$0xf] %v470
          %535 = vst [vmem:[#allocation2 + $0x94] sm:$0xf] %v471
          %536 = vst [vmem:[#allocation2 + $0x98] sm:$0xf] %v472
          %537 = vst [vmem:[#allocation2 + $0x9c] sm:$0xf] %v473
          %538 = vst [vmem:[#allocation2 + $0xa0] sm:$0xf] %v474
          %539 = vst [vmem:[#allocation2 + $0xa4] sm:$0xf] %v475
          %540 = vst [vmem:[#allocation2 + $0xa8] sm:$0xf] %v476
          %541 = vst [vmem:[#allocation2 + $0xac] sm:$0xf] %v477
          %542 = vst [vmem:[#allocation2 + $0xb0] sm:$0xf] %v478
          %543 = vst [vmem:[#allocation2 + $0xb4] sm:$0xf] %v479
          %544 = vst [vmem:[#allocation2 + $0xb8] sm:$0xf] %v480
          %545 = vst [vmem:[#allocation2 + $0xbc] sm:$0xf] %v481
          %546 = vst [vmem:[#allocation2 + $0xc0] sm:$0xf] %v482
          %547 = vst [vmem:[#allocation2 + $0xc4] sm:$0xf] %v483
          %548 = vst [vmem:[#allocation2 + $0xc8] sm:$0xf] %v484
          %549 = vst [vmem:[#allocation2 + $0xcc] sm:$0xf] %v485
          %550 = vst [vmem:[#allocation2 + $0xd0] sm:$0xf] %v486
          %551 = vst [vmem:[#allocation2 + $0xd4] sm:$0xf] %v487
          %552 = vst [vmem:[#allocation2 + $0xd8] sm:$0xf] %v488
          %553 = vst [vmem:[#allocation2 + $0xdc] sm:$0xf] %v489
          %554 = vst [vmem:[#allocation2 + $0xe0] sm:$0xf] %v490
          %555 = vst [vmem:[#allocation2 + $0xe4] sm:$0xf] %v491
          %556 = vst [vmem:[#allocation2 + $0xe8] sm:$0xf] %v492
          %557 = vst [vmem:[#allocation2 + $0xec] sm:$0xf] %v493
          %558 = vst [vmem:[#allocation2 + $0xf0] sm:$0xf] %v494
          %559 = vst [vmem:[#allocation2 + $0xf4] sm:$0xf] %v495
          %560 = vst [vmem:[#allocation2 + $0xf8] sm:$0xf] %v496
          %561 = vst [vmem:[#allocation2 + $0xfc] sm:$0xf] %v497
        $region68: #{tpu_custom_call.1} parent=43 // pred_fallthru
          _
        // Predicated region
        $region69: #{tpu_custom_call.1} parent=43 // pred_check
          %p562 = pneg %p426
        $region70: #{tpu_custom_call.1} parent=43 // pred_check_branch
          %564 = sbr.rel (%p562) target = $region72
        $region71: #{tpu_custom_call.1} parent=43 // pred_region
          // Predicated region
          $region73: #{tpu_custom_call.1} parent=71 // pred_check
            %p565 = pneg %p427
          $region74: #{tpu_custom_call.1} parent=71 // pred_check_branch
            %567 = sbr.rel (%p565) target = $region76
          $region75: #{tpu_custom_call.1} parent=71 // pred_region
            %568 = vst [vmem:[#allocation4] sm:$0x1] 0.0
            %569 = vst [vmem:[#allocation5] sm:$0x1] 0.0
            %570 = vst [vmem:[#allocation6] sm:$0xff] 0.0
          $region76: #{tpu_custom_call.1} parent=71 // pred_fallthru
            _
          %v571 = vld [vmem:[%s422] sm:$0xf]
          %s572 = sshra.s32 %s424, 3
          %s573 = sand.u32 %s424, 7
          %s574 = smul.u32 %s572, 4
          %s575 = smul.addr %s574, 4
          %s576 = scalar_lea.vmem [#allocation10], %s575
          %v577 = vld [vmem:[%s576] sm:$0xff]
          %v578 = vld [vmem:[%s576 + $0x8] sm:$0xff]
          %v579 = vld [vmem:[%s576 + $0x10] sm:$0xff]
          %v580 = vld [vmem:[%s576 + $0x18] sm:$0xff]
          %v581 = vld [vmem:[%s576 + $0x20] sm:$0xff]
          %v582 = vld [vmem:[%s576 + $0x28] sm:$0xff]
          %v583 = vld [vmem:[%s576 + $0x30] sm:$0xff]
          %v584 = vld [vmem:[%s576 + $0x38] sm:$0xff]
          %v585 = vld [vmem:[%s576 + $0x40] sm:$0xff]
          %v586 = vld [vmem:[%s576 + $0x48] sm:$0xff]
          %v587 = vld [vmem:[%s576 + $0x50] sm:$0xff]
          %v588 = vld [vmem:[%s576 + $0x58] sm:$0xff]
          %v589 = vld [vmem:[%s576 + $0x60] sm:$0xff]
          %v590 = vld [vmem:[%s576 + $0x68] sm:$0xff]
          %v591 = vld [vmem:[%s576 + $0x70] sm:$0xff]
          %v592 = vld [vmem:[%s576 + $0x78] sm:$0xff]
          %v593 = vld [vmem:[%s576 + $0x80] sm:$0xff]
          %v594 = vld [vmem:[%s576 + $0x88] sm:$0xff]
          %v595 = vld [vmem:[%s576 + $0x90] sm:$0xff]
          %v596 = vld [vmem:[%s576 + $0x98] sm:$0xff]
          %v597 = vld [vmem:[%s576 + $0xa0] sm:$0xff]
          %v598 = vld [vmem:[%s576 + $0xa8] sm:$0xff]
          %v599 = vld [vmem:[%s576 + $0xb0] sm:$0xff]
          %v600 = vld [vmem:[%s576 + $0xb8] sm:$0xff]
          %v601 = vld [vmem:[%s576 + $0xc0] sm:$0xff]
          %v602 = vld [vmem:[%s576 + $0xc8] sm:$0xff]
          %v603 = vld [vmem:[%s576 + $0xd0] sm:$0xff]
          %v604 = vld [vmem:[%s576 + $0xd8] sm:$0xff]
          %v605 = vld [vmem:[%s576 + $0xe0] sm:$0xff]
          %v606 = vld [vmem:[%s576 + $0xe8] sm:$0xff]
          %v607 = vld [vmem:[%s576 + $0xf0] sm:$0xff]
          %v608 = vld [vmem:[%s576 + $0xf8] sm:$0xff]
          %v609 = vld [vmem:[%s576 + $0x100] sm:$0xff]
          %v610 = vld [vmem:[%s576 + $0x108] sm:$0xff]
          %v611 = vld [vmem:[%s576 + $0x110] sm:$0xff]
          %v612 = vld [vmem:[%s576 + $0x118] sm:$0xff]
          %v613 = vld [vmem:[%s576 + $0x120] sm:$0xff]
          %v614 = vld [vmem:[%s576 + $0x128] sm:$0xff]
          %v615 = vld [vmem:[%s576 + $0x130] sm:$0xff]
          %v616 = vld [vmem:[%s576 + $0x138] sm:$0xff]
          %v617 = vld [vmem:[%s576 + $0x140] sm:$0xff]
          %v618 = vld [vmem:[%s576 + $0x148] sm:$0xff]
          %v619 = vld [vmem:[%s576 + $0x150] sm:$0xff]
          %v620 = vld [vmem:[%s576 + $0x158] sm:$0xff]
          %v621 = vld [vmem:[%s576 + $0x160] sm:$0xff]
          %v622 = vld [vmem:[%s576 + $0x168] sm:$0xff]
          %v623 = vld [vmem:[%s576 + $0x170] sm:$0xff]
          %v624 = vld [vmem:[%s576 + $0x178] sm:$0xff]
          %v625 = vld [vmem:[%s576 + $0x180] sm:$0xff]
          %v626 = vld [vmem:[%s576 + $0x188] sm:$0xff]
          %v627 = vld [vmem:[%s576 + $0x190] sm:$0xff]
          %v628 = vld [vmem:[%s576 + $0x198] sm:$0xff]
          %v629 = vld [vmem:[%s576 + $0x1a0] sm:$0xff]
          %v630 = vld [vmem:[%s576 + $0x1a8] sm:$0xff]
          %v631 = vld [vmem:[%s576 + $0x1b0] sm:$0xff]
          %v632 = vld [vmem:[%s576 + $0x1b8] sm:$0xff]
          %v633 = vld [vmem:[%s576 + $0x1c0] sm:$0xff]
          %v634 = vld [vmem:[%s576 + $0x1c8] sm:$0xff]
          %v635 = vld [vmem:[%s576 + $0x1d0] sm:$0xff]
          %v636 = vld [vmem:[%s576 + $0x1d8] sm:$0xff]
          %v637 = vld [vmem:[%s576 + $0x1e0] sm:$0xff]
          %v638 = vld [vmem:[%s576 + $0x1e8] sm:$0xff]
          %v639 = vld [vmem:[%s576 + $0x1f0] sm:$0xff]
          %v640 = vld [vmem:[%s576 + $0x1f8] sm:$0xff]
          %v641 = vld [vmem:[#allocation2] sm:$0xf]
          %v642 = vld [vmem:[#allocation2 + $0x4] sm:$0xf]
          %v643 = vld [vmem:[#allocation2 + $0x8] sm:$0xf]
          %v644 = vld [vmem:[#allocation2 + $0xc] sm:$0xf]
          %v645 = vld [vmem:[#allocation2 + $0x10] sm:$0xf]
          %v646 = vld [vmem:[#allocation2 + $0x14] sm:$0xf]
          %v647 = vld [vmem:[#allocation2 + $0x18] sm:$0xf]
          %v648 = vld [vmem:[#allocation2 + $0x1c] sm:$0xf]
          %v649 = vld [vmem:[#allocation2 + $0x20] sm:$0xf]
          %v650 = vld [vmem:[#allocation2 + $0x24] sm:$0xf]
          %v651 = vld [vmem:[#allocation2 + $0x28] sm:$0xf]
          %v652 = vld [vmem:[#allocation2 + $0x2c] sm:$0xf]
          %v653 = vld [vmem:[#allocation2 + $0x30] sm:$0xf]
          %v654 = vld [vmem:[#allocation2 + $0x34] sm:$0xf]
          %v655 = vld [vmem:[#allocation2 + $0x38] sm:$0xf]
          %v656 = vld [vmem:[#allocation2 + $0x3c] sm:$0xf]
          %v657 = vld [vmem:[#allocation2 + $0x40] sm:$0xf]
          %v658 = vld [vmem:[#allocation2 + $0x44] sm:$0xf]
          %v659 = vld [vmem:[#allocation2 + $0x48] sm:$0xf]
          %v660 = vld [vmem:[#allocation2 + $0x4c] sm:$0xf]
          %v661 = vld [vmem:[#allocation2 + $0x50] sm:$0xf]
          %v662 = vld [vmem:[#allocation2 + $0x54] sm:$0xf]
          %v663 = vld [vmem:[#allocation2 + $0x58] sm:$0xf]
          %v664 = vld [vmem:[#allocation2 + $0x5c] sm:$0xf]
          %v665 = vld [vmem:[#allocation2 + $0x60] sm:$0xf]
          %v666 = vld [vmem:[#allocation2 + $0x64] sm:$0xf]
          %v667 = vld [vmem:[#allocation2 + $0x68] sm:$0xf]
          %v668 = vld [vmem:[#allocation2 + $0x6c] sm:$0xf]
          %v669 = vld [vmem:[#allocation2 + $0x70] sm:$0xf]
          %v670 = vld [vmem:[#allocation2 + $0x74] sm:$0xf]
          %v671 = vld [vmem:[#allocation2 + $0x78] sm:$0xf]
          %v672 = vld [vmem:[#allocation2 + $0x7c] sm:$0xf]
          %v673 = vld [vmem:[#allocation2 + $0x80] sm:$0xf]
          %v674 = vld [vmem:[#allocation2 + $0x84] sm:$0xf]
          %v675 = vld [vmem:[#allocation2 + $0x88] sm:$0xf]
          %v676 = vld [vmem:[#allocation2 + $0x8c] sm:$0xf]
          %v677 = vld [vmem:[#allocation2 + $0x90] sm:$0xf]
          %v678 = vld [vmem:[#allocation2 + $0x94] sm:$0xf]
          %v679 = vld [vmem:[#allocation2 + $0x98] sm:$0xf]
          %v680 = vld [vmem:[#allocation2 + $0x9c] sm:$0xf]
          %v681 = vld [vmem:[#allocation2 + $0xa0] sm:$0xf]
          %v682 = vld [vmem:[#allocation2 + $0xa4] sm:$0xf]
          %v683 = vld [vmem:[#allocation2 + $0xa8] sm:$0xf]
          %v684 = vld [vmem:[#allocation2 + $0xac] sm:$0xf]
          %v685 = vld [vmem:[#allocation2 + $0xb0] sm:$0xf]
          %v686 = vld [vmem:[#allocation2 + $0xb4] sm:$0xf]
          %v687 = vld [vmem:[#allocation2 + $0xb8] sm:$0xf]
          %v688 = vld [vmem:[#allocation2 + $0xbc] sm:$0xf]
          %v689 = vld [vmem:[#allocation2 + $0xc0] sm:$0xf]
          %v690 = vld [vmem:[#allocation2 + $0xc4] sm:$0xf]
          %v691 = vld [vmem:[#allocation2 + $0xc8] sm:$0xf]
          %v692 = vld [vmem:[#allocation2 + $0xcc] sm:$0xf]
          %v693 = vld [vmem:[#allocation2 + $0xd0] sm:$0xf]
          %v694 = vld [vmem:[#allocation2 + $0xd4] sm:$0xf]
          %v695 = vld [vmem:[#allocation2 + $0xd8] sm:$0xf]
          %v696 = vld [vmem:[#allocation2 + $0xdc] sm:$0xf]
          %v697 = vld [vmem:[#allocation2 + $0xe0] sm:$0xf]
          %v698 = vld [vmem:[#allocation2 + $0xe4] sm:$0xf]
          %v699 = vld [vmem:[#allocation2 + $0xe8] sm:$0xf]
          %v700 = vld [vmem:[#allocation2 + $0xec] sm:$0xf]
          %v701 = vld [vmem:[#allocation2 + $0xf0] sm:$0xf]
          %v702 = vld [vmem:[#allocation2 + $0xf4] sm:$0xf]
          %v703 = vld [vmem:[#allocation2 + $0xf8] sm:$0xf]
          %v704 = vld [vmem:[#allocation2 + $0xfc] sm:$0xf]
          %v769 = vunpack.c.l.b16 %v577
          %v770 = vunpack.c.h.b16 %v577
          %v771 = vunpack.c.l.b16 %v578
          %v772 = vunpack.c.h.b16 %v578
          %v773 = vunpack.c.l.b16 %v579
          %v774 = vunpack.c.h.b16 %v579
          %v775 = vunpack.c.l.b16 %v580
          %v776 = vunpack.c.h.b16 %v580
          %v777 = vunpack.c.l.b16 %v581
          %v778 = vunpack.c.h.b16 %v581
          %v779 = vunpack.c.l.b16 %v582
          %v780 = vunpack.c.h.b16 %v582
          %v781 = vunpack.c.l.b16 %v583
          %v782 = vunpack.c.h.b16 %v583
          %v783 = vunpack.c.l.b16 %v584
          %v784 = vunpack.c.h.b16 %v584
          %v785 = vunpack.c.l.b16 %v585
          %v786 = vunpack.c.h.b16 %v585
          %v787 = vunpack.c.l.b16 %v586
          %v788 = vunpack.c.h.b16 %v586
          %v789 = vunpack.c.l.b16 %v587
          %v790 = vunpack.c.h.b16 %v587
          %v791 = vunpack.c.l.b16 %v588
          %v792 = vunpack.c.h.b16 %v588
          %v793 = vunpack.c.l.b16 %v589
          %v794 = vunpack.c.h.b16 %v589
          %v795 = vunpack.c.l.b16 %v590
          %v796 = vunpack.c.h.b16 %v590
          %v797 = vunpack.c.l.b16 %v591
          %v798 = vunpack.c.h.b16 %v591
          %v799 = vunpack.c.l.b16 %v592
          %v800 = vunpack.c.h.b16 %v592
          %v801 = vunpack.c.l.b16 %v593
          %v802 = vunpack.c.h.b16 %v593
          %v803 = vunpack.c.l.b16 %v594
          %v804 = vunpack.c.h.b16 %v594
          %v805 = vunpack.c.l.b16 %v595
          %v806 = vunpack.c.h.b16 %v595
          %v807 = vunpack.c.l.b16 %v596
          %v808 = vunpack.c.h.b16 %v596
          %v809 = vunpack.c.l.b16 %v597
          %v810 = vunpack.c.h.b16 %v597
          %v811 = vunpack.c.l.b16 %v598
          %v812 = vunpack.c.h.b16 %v598
          %v813 = vunpack.c.l.b16 %v599
          %v814 = vunpack.c.h.b16 %v599
          %v815 = vunpack.c.l.b16 %v600
          %v816 = vunpack.c.h.b16 %v600
          %v817 = vunpack.c.l.b16 %v601
          %v818 = vunpack.c.h.b16 %v601
          %v819 = vunpack.c.l.b16 %v602
          %v820 = vunpack.c.h.b16 %v602
          %v821 = vunpack.c.l.b16 %v603
          %v822 = vunpack.c.h.b16 %v603
          %v823 = vunpack.c.l.b16 %v604
          %v824 = vunpack.c.h.b16 %v604
          %v825 = vunpack.c.l.b16 %v605
          %v826 = vunpack.c.h.b16 %v605
          %v827 = vunpack.c.l.b16 %v606
          %v828 = vunpack.c.h.b16 %v606
          %v829 = vunpack.c.l.b16 %v607
          %v830 = vunpack.c.h.b16 %v607
          %v831 = vunpack.c.l.b16 %v608
          %v832 = vunpack.c.h.b16 %v608
          %v833 = vunpack.c.l.b16 %v609
          %v834 = vunpack.c.h.b16 %v609
          %v835 = vunpack.c.l.b16 %v610
          %v836 = vunpack.c.h.b16 %v610
          %v837 = vunpack.c.l.b16 %v611
          %v838 = vunpack.c.h.b16 %v611
          %v839 = vunpack.c.l.b16 %v612
          %v840 = vunpack.c.h.b16 %v612
          %v841 = vunpack.c.l.b16 %v613
          %v842 = vunpack.c.h.b16 %v613
          %v843 = vunpack.c.l.b16 %v614
          %v844 = vunpack.c.h.b16 %v614
          %v845 = vunpack.c.l.b16 %v615
          %v846 = vunpack.c.h.b16 %v615
          %v847 = vunpack.c.l.b16 %v616
          %v848 = vunpack.c.h.b16 %v616
          %v849 = vunpack.c.l.b16 %v617
          %v850 = vunpack.c.h.b16 %v617
          %v851 = vunpack.c.l.b16 %v618
          %v852 = vunpack.c.h.b16 %v618
          %v853 = vunpack.c.l.b16 %v619
          %v854 = vunpack.c.h.b16 %v619
          %v855 = vunpack.c.l.b16 %v620
          %v856 = vunpack.c.h.b16 %v620
          %v857 = vunpack.c.l.b16 %v621
          %v858 = vunpack.c.h.b16 %v621
          %v859 = vunpack.c.l.b16 %v622
          %v860 = vunpack.c.h.b16 %v622
          %v861 = vunpack.c.l.b16 %v623
          %v862 = vunpack.c.h.b16 %v623
          %v863 = vunpack.c.l.b16 %v624
          %v864 = vunpack.c.h.b16 %v624
          %v865 = vunpack.c.l.b16 %v625
          %v866 = vunpack.c.h.b16 %v625
          %v867 = vunpack.c.l.b16 %v626
          %v868 = vunpack.c.h.b16 %v626
          %v869 = vunpack.c.l.b16 %v627
          %v870 = vunpack.c.h.b16 %v627
          %v871 = vunpack.c.l.b16 %v628
          %v872 = vunpack.c.h.b16 %v628
          %v873 = vunpack.c.l.b16 %v629
          %v874 = vunpack.c.h.b16 %v629
          %v875 = vunpack.c.l.b16 %v630
          %v876 = vunpack.c.h.b16 %v630
          %v877 = vunpack.c.l.b16 %v631
          %v878 = vunpack.c.h.b16 %v631
          %v879 = vunpack.c.l.b16 %v632
          %v880 = vunpack.c.h.b16 %v632
          %v881 = vunpack.c.l.b16 %v633
          %v882 = vunpack.c.h.b16 %v633
          %v883 = vunpack.c.l.b16 %v634
          %v884 = vunpack.c.h.b16 %v634
          %v885 = vunpack.c.l.b16 %v635
          %v886 = vunpack.c.h.b16 %v635
          %v887 = vunpack.c.l.b16 %v636
          %v888 = vunpack.c.h.b16 %v636
          %v889 = vunpack.c.l.b16 %v637
          %v890 = vunpack.c.h.b16 %v637
          %v891 = vunpack.c.l.b16 %v638
          %v892 = vunpack.c.h.b16 %v638
          %v893 = vunpack.c.l.b16 %v639
          %v894 = vunpack.c.h.b16 %v639
          %v895 = vunpack.c.l.b16 %v640
          %v896 = vunpack.c.h.b16 %v640
          %v897 = vpack.c.b16 %v773, %v769
          %v898 = vpack.c.b16 %v774, %v770
          %v899 = vpack.c.b16 %v775, %v771
          %v900 = vpack.c.b16 %v776, %v772
          %v901 = vpack.c.b16 %v781, %v777
          %v902 = vpack.c.b16 %v782, %v778
          %v903 = vpack.c.b16 %v783, %v779
          %v904 = vpack.c.b16 %v784, %v780
          %v905 = vpack.c.b16 %v789, %v785
          %v906 = vpack.c.b16 %v790, %v786
          %v907 = vpack.c.b16 %v791, %v787
          %v908 = vpack.c.b16 %v792, %v788
          %v909 = vpack.c.b16 %v797, %v793
          %v910 = vpack.c.b16 %v798, %v794
          %v911 = vpack.c.b16 %v799, %v795
          %v912 = vpack.c.b16 %v800, %v796
          %v913 = vpack.c.b16 %v805, %v801
          %v914 = vpack.c.b16 %v806, %v802
          %v915 = vpack.c.b16 %v807, %v803
          %v916 = vpack.c.b16 %v808, %v804
          %v917 = vpack.c.b16 %v813, %v809
          %v918 = vpack.c.b16 %v814, %v810
          %v919 = vpack.c.b16 %v815, %v811
          %v920 = vpack.c.b16 %v816, %v812
          %v921 = vpack.c.b16 %v821, %v817
          %v922 = vpack.c.b16 %v822, %v818
          %v923 = vpack.c.b16 %v823, %v819
          %v924 = vpack.c.b16 %v824, %v820
          %v925 = vpack.c.b16 %v829, %v825
          %v926 = vpack.c.b16 %v830, %v826
          %v927 = vpack.c.b16 %v831, %v827
          %v928 = vpack.c.b16 %v832, %v828
          %v929 = vpack.c.b16 %v837, %v833
          %v930 = vpack.c.b16 %v838, %v834
          %v931 = vpack.c.b16 %v839, %v835
          %v932 = vpack.c.b16 %v840, %v836
          %v933 = vpack.c.b16 %v845, %v841
          %v934 = vpack.c.b16 %v846, %v842
          %v935 = vpack.c.b16 %v847, %v843
          %v936 = vpack.c.b16 %v848, %v844
          %v937 = vpack.c.b16 %v853, %v849
          %v938 = vpack.c.b16 %v854, %v850
          %v939 = vpack.c.b16 %v855, %v851
          %v940 = vpack.c.b16 %v856, %v852
          %v941 = vpack.c.b16 %v861, %v857
          %v942 = vpack.c.b16 %v862, %v858
          %v943 = vpack.c.b16 %v863, %v859
          %v944 = vpack.c.b16 %v864, %v860
          %v945 = vpack.c.b16 %v869, %v865
          %v946 = vpack.c.b16 %v870, %v866
          %v947 = vpack.c.b16 %v871, %v867
          %v948 = vpack.c.b16 %v872, %v868
          %v949 = vpack.c.b16 %v877, %v873
          %v950 = vpack.c.b16 %v878, %v874
          %v951 = vpack.c.b16 %v879, %v875
          %v952 = vpack.c.b16 %v880, %v876
          %v953 = vpack.c.b16 %v885, %v881
          %v954 = vpack.c.b16 %v886, %v882
          %v955 = vpack.c.b16 %v887, %v883
          %v956 = vpack.c.b16 %v888, %v884
          %v957 = vpack.c.b16 %v893, %v889
          %v958 = vpack.c.b16 %v894, %v890
          %v959 = vpack.c.b16 %v895, %v891
          %v960 = vpack.c.b16 %v896, %v892
          %v1089 = vunpack.c.l.b16 %v641
          %v1090 = vunpack.c.l.b16 %v642
          %v1091 = vunpack.c.l.b16 %v643
          %v1092 = vunpack.c.l.b16 %v644
          %v1093 = vunpack.c.l.b16 %v645
          %v1094 = vunpack.c.l.b16 %v646
          %v1095 = vunpack.c.l.b16 %v647
          %v1096 = vunpack.c.l.b16 %v648
          %v1097 = vunpack.c.l.b16 %v649
          %v1098 = vunpack.c.l.b16 %v650
          %v1099 = vunpack.c.l.b16 %v651
          %v1100 = vunpack.c.l.b16 %v652
          %v1101 = vunpack.c.l.b16 %v653
          %v1102 = vunpack.c.l.b16 %v654
          %v1103 = vunpack.c.l.b16 %v655
          %v1104 = vunpack.c.l.b16 %v656
          %v1105 = vunpack.c.l.b16 %v657
          %v1106 = vunpack.c.l.b16 %v658
          %v1107 = vunpack.c.l.b16 %v659
          %v1108 = vunpack.c.l.b16 %v660
          %v1109 = vunpack.c.l.b16 %v661
          %v1110 = vunpack.c.l.b16 %v662
          %v1111 = vunpack.c.l.b16 %v663
          %v1112 = vunpack.c.l.b16 %v664
          %v1113 = vunpack.c.l.b16 %v665
          %v1114 = vunpack.c.l.b16 %v666
          %v1115 = vunpack.c.l.b16 %v667
          %v1116 = vunpack.c.l.b16 %v668
          %v1117 = vunpack.c.l.b16 %v669
          %v1118 = vunpack.c.l.b16 %v670
          %v1119 = vunpack.c.l.b16 %v671
          %v1120 = vunpack.c.l.b16 %v672
          %v1121 = vunpack.c.l.b16 %v673
          %v1122 = vunpack.c.l.b16 %v674
          %v1123 = vunpack.c.l.b16 %v675
          %v1124 = vunpack.c.l.b16 %v676
          %v1125 = vunpack.c.l.b16 %v677
          %v1126 = vunpack.c.l.b16 %v678
          %v1127 = vunpack.c.l.b16 %v679
          %v1128 = vunpack.c.l.b16 %v680
          %v1129 = vunpack.c.l.b16 %v681
          %v1130 = vunpack.c.l.b16 %v682
          %v1131 = vunpack.c.l.b16 %v683
          %v1132 = vunpack.c.l.b16 %v684
          %v1133 = vunpack.c.l.b16 %v685
          %v1134 = vunpack.c.l.b16 %v686
          %v1135 = vunpack.c.l.b16 %v687
          %v1136 = vunpack.c.l.b16 %v688
          %v1137 = vunpack.c.l.b16 %v689
          %v1138 = vunpack.c.l.b16 %v690
          %v1139 = vunpack.c.l.b16 %v691
          %v1140 = vunpack.c.l.b16 %v692
          %v1141 = vunpack.c.l.b16 %v693
          %v1142 = vunpack.c.l.b16 %v694
          %v1143 = vunpack.c.l.b16 %v695
          %v1144 = vunpack.c.l.b16 %v696
          %v1145 = vunpack.c.l.b16 %v697
          %v1146 = vunpack.c.l.b16 %v698
          %v1147 = vunpack.c.l.b16 %v699
          %v1148 = vunpack.c.l.b16 %v700
          %v1149 = vunpack.c.l.b16 %v701
          %v1150 = vunpack.c.l.b16 %v702
          %v1151 = vunpack.c.l.b16 %v703
          %v1152 = vunpack.c.l.b16 %v704
          %v1153 = vpack.c.b16 %v1090, %v1089
          %v1154 = vpack.c.b16 %v1092, %v1091
          %v1155 = vpack.c.b16 %v1094, %v1093
          %v1156 = vpack.c.b16 %v1096, %v1095
          %v1157 = vpack.c.b16 %v1098, %v1097
          %v1158 = vpack.c.b16 %v1100, %v1099
          %v1159 = vpack.c.b16 %v1102, %v1101
          %v1160 = vpack.c.b16 %v1104, %v1103
          %v1161 = vpack.c.b16 %v1106, %v1105
          %v1162 = vpack.c.b16 %v1108, %v1107
          %v1163 = vpack.c.b16 %v1110, %v1109
          %v1164 = vpack.c.b16 %v1112, %v1111
          %v1165 = vpack.c.b16 %v1114, %v1113
          %v1166 = vpack.c.b16 %v1116, %v1115
          %v1167 = vpack.c.b16 %v1118, %v1117
          %v1168 = vpack.c.b16 %v1120, %v1119
          %v1169 = vpack.c.b16 %v1122, %v1121
          %v1170 = vpack.c.b16 %v1124, %v1123
          %v1171 = vpack.c.b16 %v1126, %v1125
          %v1172 = vpack.c.b16 %v1128, %v1127
          %v1173 = vpack.c.b16 %v1130, %v1129
          %v1174 = vpack.c.b16 %v1132, %v1131
          %v1175 = vpack.c.b16 %v1134, %v1133
          %v1176 = vpack.c.b16 %v1136, %v1135
          %v1177 = vpack.c.b16 %v1138, %v1137
          %v1178 = vpack.c.b16 %v1140, %v1139
          %v1179 = vpack.c.b16 %v1142, %v1141
          %v1180 = vpack.c.b16 %v1144, %v1143
          %v1181 = vpack.c.b16 %v1146, %v1145
          %v1182 = vpack.c.b16 %v1148, %v1147
          %v1183 = vpack.c.b16 %v1150, %v1149
          %v1184 = vpack.c.b16 %v1152, %v1151
          %1217 = vmatprep.subr.bf16.mxu0 0
          %1218 = vmatpush1.bf16.msra.mxu0 %v1160
          %1219 = vmatprep.subr.bf16.mxu0 0
          %1220 = vmatpush1.bf16.msra.mxu0 %v1159
          %1221 = vmatprep.subr.bf16.mxu0 0
          %1222 = vmatpush1.bf16.msra.mxu0 %v1158
          %1223 = vmatprep.subr.bf16.mxu0 0
          %1224 = vmatpush1.bf16.msra.mxu0 %v1157
          %1225 = vmatprep.subr.bf16.mxu0 0
          %1226 = vmatpush1.bf16.msra.mxu0 %v1156
          %1227 = vmatprep.subr.bf16.mxu0 0
          %1228 = vmatpush1.bf16.msra.mxu0 %v1155
          %1229 = vmatprep.subr.bf16.mxu0 0
          %1230 = vmatpush1.bf16.msra.mxu0 %v1154
          %1231 = vmatprep.subr.bf16.mxu0 0
          %1232 = vmatpush1.bf16.msra.mxu0 %v1153
          %1233 = vmatprep.subr.bf16.mxu0 0
          %1234 = vmatpush2.bf16.msra.mxu0 %v1168
          %1235 = vmatprep.subr.bf16.mxu0 0
          %1236 = vmatpush2.bf16.msra.mxu0 %v1167
          %1237 = vmatprep.subr.bf16.mxu0 0
          %1238 = vmatpush2.bf16.msra.mxu0 %v1166
          %1239 = vmatprep.subr.bf16.mxu0 0
          %1240 = vmatpush2.bf16.msra.mxu0 %v1165
          %1241 = vmatprep.subr.bf16.mxu0 0
          %1242 = vmatpush2.bf16.msra.mxu0 %v1164
          %1243 = vmatprep.subr.bf16.mxu0 0
          %1244 = vmatpush2.bf16.msra.mxu0 %v1163
          %1245 = vmatprep.subr.bf16.mxu0 0
          %1246 = vmatpush2.bf16.msra.mxu0 %v1162
          %1247 = vmatprep.subr.bf16.mxu0 0
          %1248 = vmatpush2.bf16.msra.mxu0 %v1161
          %1249 = vmatprep.mubr.bf16.mxu0 %v898
          %1250 = vmatmul.mubr.bf16.gmra.mxu0 %v897
          %v1251 = vpop.f32.mrf.mxu0
          %v1252 = vadd.f32 0.0, %v1251
          %v1253 = vpop.f32.mrf.mxu0
          %v1254 = vpop.f32.mrf.mxu0
          %v1255 = vadd.f32 0.0, %v1254
          %v1256 = vpop.f32.mrf.mxu0
          %1257 = vmatprep.mubr.bf16.mxu0 %v902
          %1258 = vmatmul.mubr.bf16.gmra.mxu0 %v901
          %v1259 = vpop.f32.mrf.mxu0
          %v1260 = vadd.f32 0.0, %v1259
          %v1261 = vpop.f32.mrf.mxu0
          %v1262 = vpop.f32.mrf.mxu0
          %v1263 = vadd.f32 0.0, %v1262
          %v1264 = vpop.f32.mrf.mxu0
          %1265 = vmatprep.mubr.bf16.mxu0 %v906
          %1266 = vmatmul.mubr.bf16.gmra.mxu0 %v905
          %v1267 = vpop.f32.mrf.mxu0
          %v1268 = vadd.f32 0.0, %v1267
          %v1269 = vpop.f32.mrf.mxu0
          %v1270 = vpop.f32.mrf.mxu0
          %v1271 = vadd.f32 0.0, %v1270
          %v1272 = vpop.f32.mrf.mxu0
          %1273 = vmatprep.mubr.bf16.mxu0 %v910
          %1274 = vmatmul.mubr.bf16.gmra.mxu0 %v909
          %v1275 = vpop.f32.mrf.mxu0
          %v1276 = vadd.f32 0.0, %v1275
          %v1277 = vpop.f32.mrf.mxu0
          %v1278 = vpop.f32.mrf.mxu0
          %v1279 = vadd.f32 0.0, %v1278
          %v1280 = vpop.f32.mrf.mxu0
          %1281 = vmatprep.mubr.bf16.mxu0 %v914
          %1282 = vmatmul.mubr.bf16.gmra.mxu0 %v913
          %v1283 = vpop.f32.mrf.mxu0
          %v1284 = vadd.f32 0.0, %v1283
          %v1285 = vpop.f32.mrf.mxu0
          %v1286 = vpop.f32.mrf.mxu0
          %v1287 = vadd.f32 0.0, %v1286
          %v1288 = vpop.f32.mrf.mxu0
          %1289 = vmatprep.mubr.bf16.mxu0 %v918
          %1290 = vmatmul.mubr.bf16.gmra.mxu0 %v917
          %v1291 = vpop.f32.mrf.mxu0
          %v1292 = vadd.f32 0.0, %v1291
          %v1293 = vpop.f32.mrf.mxu0
          %v1294 = vpop.f32.mrf.mxu0
          %v1295 = vadd.f32 0.0, %v1294
          %v1296 = vpop.f32.mrf.mxu0
          %1297 = vmatprep.mubr.bf16.mxu0 %v922
          %1298 = vmatmul.mubr.bf16.gmra.mxu0 %v921
          %v1299 = vpop.f32.mrf.mxu0
          %v1300 = vadd.f32 0.0, %v1299
          %v1301 = vpop.f32.mrf.mxu0
          %v1302 = vpop.f32.mrf.mxu0
          %v1303 = vadd.f32 0.0, %v1302
          %v1304 = vpop.f32.mrf.mxu0
          %1305 = vmatprep.mubr.bf16.mxu0 %v926
          %1306 = vmatmul.mubr.bf16.gmra.mxu0 %v925
          %v1307 = vpop.f32.mrf.mxu0
          %v1308 = vadd.f32 0.0, %v1307
          %v1309 = vpop.f32.mrf.mxu0
          %v1310 = vpop.f32.mrf.mxu0
          %v1311 = vadd.f32 0.0, %v1310
          %v1312 = vpop.f32.mrf.mxu0
          %1313 = vmatprep.mubr.bf16.mxu0 %v930
          %1314 = vmatmul.mubr.bf16.gmra.mxu0 %v929
          %v1315 = vpop.f32.mrf.mxu0
          %v1316 = vadd.f32 0.0, %v1315
          %v1317 = vpop.f32.mrf.mxu0
          %v1318 = vpop.f32.mrf.mxu0
          %v1319 = vadd.f32 0.0, %v1318
          %v1320 = vpop.f32.mrf.mxu0
          %1321 = vmatprep.mubr.bf16.mxu0 %v934
          %1322 = vmatmul.mubr.bf16.gmra.mxu0 %v933
          %v1323 = vpop.f32.mrf.mxu0
          %v1324 = vadd.f32 0.0, %v1323
          %v1325 = vpop.f32.mrf.mxu0
          %v1326 = vpop.f32.mrf.mxu0
          %v1327 = vadd.f32 0.0, %v1326
          %v1328 = vpop.f32.mrf.mxu0
          %1329 = vmatprep.mubr.bf16.mxu0 %v938
          %1330 = vmatmul.mubr.bf16.gmra.mxu0 %v937
          %v1331 = vpop.f32.mrf.mxu0
          %v1332 = vadd.f32 0.0, %v1331
          %v1333 = vpop.f32.mrf.mxu0
          %v1334 = vpop.f32.mrf.mxu0
          %v1335 = vadd.f32 0.0, %v1334
          %v1336 = vpop.f32.mrf.mxu0
          %1337 = vmatprep.mubr.bf16.mxu0 %v942
          %1338 = vmatmul.mubr.bf16.gmra.mxu0 %v941
          %v1339 = vpop.f32.mrf.mxu0
          %v1340 = vadd.f32 0.0, %v1339
          %v1341 = vpop.f32.mrf.mxu0
          %v1342 = vpop.f32.mrf.mxu0
          %v1343 = vadd.f32 0.0, %v1342
          %v1344 = vpop.f32.mrf.mxu0
          %1345 = vmatprep.mubr.bf16.mxu0 %v946
          %1346 = vmatmul.mubr.bf16.gmra.mxu0 %v945
          %v1347 = vpop.f32.mrf.mxu0
          %v1348 = vadd.f32 0.0, %v1347
          %v1349 = vpop.f32.mrf.mxu0
          %v1350 = vpop.f32.mrf.mxu0
          %v1351 = vadd.f32 0.0, %v1350
          %v1352 = vpop.f32.mrf.mxu0
          %1353 = vmatprep.mubr.bf16.mxu0 %v950
          %1354 = vmatmul.mubr.bf16.gmra.mxu0 %v949
          %v1355 = vpop.f32.mrf.mxu0
          %v1356 = vadd.f32 0.0, %v1355
          %v1357 = vpop.f32.mrf.mxu0
          %v1358 = vpop.f32.mrf.mxu0
          %v1359 = vadd.f32 0.0, %v1358
          %v1360 = vpop.f32.mrf.mxu0
          %1361 = vmatprep.mubr.bf16.mxu0 %v954
          %1362 = vmatmul.mubr.bf16.gmra.mxu0 %v953
          %v1363 = vpop.f32.mrf.mxu0
          %v1364 = vadd.f32 0.0, %v1363
          %v1365 = vpop.f32.mrf.mxu0
          %v1366 = vpop.f32.mrf.mxu0
          %v1367 = vadd.f32 0.0, %v1366
          %v1368 = vpop.f32.mrf.mxu0
          %1369 = vmatprep.mubr.bf16.mxu0 %v958
          %1370 = vmatmul.mubr.bf16.gmra.mxu0 %v957
          %v1371 = vpop.f32.mrf.mxu0
          %v1372 = vadd.f32 0.0, %v1371
          %v1373 = vpop.f32.mrf.mxu0
          %v1374 = vpop.f32.mrf.mxu0
          %v1375 = vadd.f32 0.0, %v1374
          %v1376 = vpop.f32.mrf.mxu0
          %1377 = vdwg.mxu0
          %1378 = vmatprep.subr.bf16.mxu0 0
          %1379 = vmatpush1.bf16.msra.mxu0 %v1176
          %1380 = vmatprep.subr.bf16.mxu0 0
          %1381 = vmatpush1.bf16.msra.mxu0 %v1175
          %1382 = vmatprep.subr.bf16.mxu0 0
          %1383 = vmatpush1.bf16.msra.mxu0 %v1174
          %1384 = vmatprep.subr.bf16.mxu0 0
          %1385 = vmatpush1.bf16.msra.mxu0 %v1173
          %1386 = vmatprep.subr.bf16.mxu0 0
          %1387 = vmatpush1.bf16.msra.mxu0 %v1172
          %1388 = vmatprep.subr.bf16.mxu0 0
          %1389 = vmatpush1.bf16.msra.mxu0 %v1171
          %1390 = vmatprep.subr.bf16.mxu0 0
          %1391 = vmatpush1.bf16.msra.mxu0 %v1170
          %1392 = vmatprep.subr.bf16.mxu0 0
          %1393 = vmatpush1.bf16.msra.mxu0 %v1169
          %1394 = vmatprep.subr.bf16.mxu0 0
          %1395 = vmatpush2.bf16.msra.mxu0 %v1184
          %1396 = vmatprep.subr.bf16.mxu0 0
          %1397 = vmatpush2.bf16.msra.mxu0 %v1183
          %1398 = vmatprep.subr.bf16.mxu0 0
          %1399 = vmatpush2.bf16.msra.mxu0 %v1182
          %1400 = vmatprep.subr.bf16.mxu0 0
          %1401 = vmatpush2.bf16.msra.mxu0 %v1181
          %1402 = vmatprep.subr.bf16.mxu0 0
          %1403 = vmatpush2.bf16.msra.mxu0 %v1180
          %1404 = vmatprep.subr.bf16.mxu0 0
          %1405 = vmatpush2.bf16.msra.mxu0 %v1179
          %1406 = vmatprep.subr.bf16.mxu0 0
          %1407 = vmatpush2.bf16.msra.mxu0 %v1178
          %1408 = vmatprep.subr.bf16.mxu0 0
          %1409 = vmatpush2.bf16.msra.mxu0 %v1177
          %1410 = vmatprep.mubr.bf16.mxu0 %v900
          %1411 = vmatmul.mubr.bf16.gmra.mxu0 %v899
          %v1412 = vpop.f32.mrf.mxu0
          %v1413 = vadd.f32 %v1252, %v1412
          %v1414 = vpop.f32.mrf.mxu0
          %v1415 = vpop.f32.mrf.mxu0
          %v1416 = vadd.f32 %v1255, %v1415
          %v1417 = vpop.f32.mrf.mxu0
          %1418 = vmatprep.mubr.bf16.mxu0 %v904
          %1419 = vmatmul.mubr.bf16.gmra.mxu0 %v903
          %v1420 = vpop.f32.mrf.mxu0
          %v1421 = vadd.f32 %v1260, %v1420
          %v1422 = vpop.f32.mrf.mxu0
          %v1423 = vpop.f32.mrf.mxu0
          %v1424 = vadd.f32 %v1263, %v1423
          %v1425 = vpop.f32.mrf.mxu0
          %1426 = vmatprep.mubr.bf16.mxu0 %v908
          %1427 = vmatmul.mubr.bf16.gmra.mxu0 %v907
          %v1428 = vpop.f32.mrf.mxu0
          %v1429 = vadd.f32 %v1268, %v1428
          %v1430 = vpop.f32.mrf.mxu0
          %v1431 = vpop.f32.mrf.mxu0
          %v1432 = vadd.f32 %v1271, %v1431
          %v1433 = vpop.f32.mrf.mxu0
          %1434 = vmatprep.mubr.bf16.mxu0 %v912
          %1435 = vmatmul.mubr.bf16.gmra.mxu0 %v911
          %v1436 = vpop.f32.mrf.mxu0
          %v1437 = vadd.f32 %v1276, %v1436
          %v1438 = vpop.f32.mrf.mxu0
          %v1439 = vpop.f32.mrf.mxu0
          %v1440 = vadd.f32 %v1279, %v1439
          %v1441 = vpop.f32.mrf.mxu0
          %1442 = vmatprep.mubr.bf16.mxu0 %v916
          %1443 = vmatmul.mubr.bf16.gmra.mxu0 %v915
          %v1444 = vpop.f32.mrf.mxu0
          %v1445 = vadd.f32 %v1284, %v1444
          %v1446 = vpop.f32.mrf.mxu0
          %v1447 = vpop.f32.mrf.mxu0
          %v1448 = vadd.f32 %v1287, %v1447
          %v1449 = vpop.f32.mrf.mxu0
          %1450 = vmatprep.mubr.bf16.mxu0 %v920
          %1451 = vmatmul.mubr.bf16.gmra.mxu0 %v919
          %v1452 = vpop.f32.mrf.mxu0
          %v1453 = vadd.f32 %v1292, %v1452
          %v1454 = vpop.f32.mrf.mxu0
          %v1455 = vpop.f32.mrf.mxu0
          %v1456 = vadd.f32 %v1295, %v1455
          %v1457 = vpop.f32.mrf.mxu0
          %1458 = vmatprep.mubr.bf16.mxu0 %v924
          %1459 = vmatmul.mubr.bf16.gmra.mxu0 %v923
          %v1460 = vpop.f32.mrf.mxu0
          %v1461 = vadd.f32 %v1300, %v1460
          %v1462 = vpop.f32.mrf.mxu0
          %v1463 = vpop.f32.mrf.mxu0
          %v1464 = vadd.f32 %v1303, %v1463
          %v1465 = vpop.f32.mrf.mxu0
          %1466 = vmatprep.mubr.bf16.mxu0 %v928
          %1467 = vmatmul.mubr.bf16.gmra.mxu0 %v927
          %v1468 = vpop.f32.mrf.mxu0
          %v1469 = vadd.f32 %v1308, %v1468
          %v1470 = vpop.f32.mrf.mxu0
          %v1471 = vpop.f32.mrf.mxu0
          %v1472 = vadd.f32 %v1311, %v1471
          %v1473 = vpop.f32.mrf.mxu0
          %1474 = vmatprep.mubr.bf16.mxu0 %v932
          %1475 = vmatmul.mubr.bf16.gmra.mxu0 %v931
          %v1476 = vpop.f32.mrf.mxu0
          %v1477 = vadd.f32 %v1316, %v1476
          %v1478 = vpop.f32.mrf.mxu0
          %v1479 = vpop.f32.mrf.mxu0
          %v1480 = vadd.f32 %v1319, %v1479
          %v1481 = vpop.f32.mrf.mxu0
          %1482 = vmatprep.mubr.bf16.mxu0 %v936
          %1483 = vmatmul.mubr.bf16.gmra.mxu0 %v935
          %v1484 = vpop.f32.mrf.mxu0
          %v1485 = vadd.f32 %v1324, %v1484
          %v1486 = vpop.f32.mrf.mxu0
          %v1487 = vpop.f32.mrf.mxu0
          %v1488 = vadd.f32 %v1327, %v1487
          %v1489 = vpop.f32.mrf.mxu0
          %1490 = vmatprep.mubr.bf16.mxu0 %v940
          %1491 = vmatmul.mubr.bf16.gmra.mxu0 %v939
          %v1492 = vpop.f32.mrf.mxu0
          %v1493 = vadd.f32 %v1332, %v1492
          %v1494 = vpop.f32.mrf.mxu0
          %v1495 = vpop.f32.mrf.mxu0
          %v1496 = vadd.f32 %v1335, %v1495
          %v1497 = vpop.f32.mrf.mxu0
          %1498 = vmatprep.mubr.bf16.mxu0 %v944
          %1499 = vmatmul.mubr.bf16.gmra.mxu0 %v943
          %v1500 = vpop.f32.mrf.mxu0
          %v1501 = vadd.f32 %v1340, %v1500
          %v1502 = vpop.f32.mrf.mxu0
          %v1503 = vpop.f32.mrf.mxu0
          %v1504 = vadd.f32 %v1343, %v1503
          %v1505 = vpop.f32.mrf.mxu0
          %1506 = vmatprep.mubr.bf16.mxu0 %v948
          %1507 = vmatmul.mubr.bf16.gmra.mxu0 %v947
          %v1508 = vpop.f32.mrf.mxu0
          %v1509 = vadd.f32 %v1348, %v1508
          %v1510 = vpop.f32.mrf.mxu0
          %v1511 = vpop.f32.mrf.mxu0
          %v1512 = vadd.f32 %v1351, %v1511
          %v1513 = vpop.f32.mrf.mxu0
          %1514 = vmatprep.mubr.bf16.mxu0 %v952
          %1515 = vmatmul.mubr.bf16.gmra.mxu0 %v951
          %v1516 = vpop.f32.mrf.mxu0
          %v1517 = vadd.f32 %v1356, %v1516
          %v1518 = vpop.f32.mrf.mxu0
          %v1519 = vpop.f32.mrf.mxu0
          %v1520 = vadd.f32 %v1359, %v1519
          %v1521 = vpop.f32.mrf.mxu0
          %1522 = vmatprep.mubr.bf16.mxu0 %v956
          %1523 = vmatmul.mubr.bf16.gmra.mxu0 %v955
          %v1524 = vpop.f32.mrf.mxu0
          %v1525 = vadd.f32 %v1364, %v1524
          %v1526 = vpop.f32.mrf.mxu0
          %v1527 = vpop.f32.mrf.mxu0
          %v1528 = vadd.f32 %v1367, %v1527
          %v1529 = vpop.f32.mrf.mxu0
          %1530 = vmatprep.mubr.bf16.mxu0 %v960
          %1531 = vmatmul.mubr.bf16.gmra.mxu0 %v959
          %v1532 = vpop.f32.mrf.mxu0
          %v1533 = vadd.f32 %v1372, %v1532
          %v1534 = vpop.f32.mrf.mxu0
          %v1535 = vpop.f32.mrf.mxu0
          %v1536 = vadd.f32 %v1375, %v1535
          %v1537 = vpop.f32.mrf.mxu0
          %1538 = vdwg.mxu0
          %v1539 = vpack.c.bf16 %v1416, %v1413
          %v1540 = vpack.c.bf16 %v1424, %v1421
          %v1541 = vpack.c.bf16 %v1432, %v1429
          %v1542 = vpack.c.bf16 %v1440, %v1437
          %v1543 = vpack.c.bf16 %v1448, %v1445
          %v1544 = vpack.c.bf16 %v1456, %v1453
          %v1545 = vpack.c.bf16 %v1464, %v1461
          %v1546 = vpack.c.bf16 %v1472, %v1469
          %v1547 = vpack.c.bf16 %v1480, %v1477
          %v1548 = vpack.c.bf16 %v1488, %v1485
          %v1549 = vpack.c.bf16 %v1496, %v1493
          %v1550 = vpack.c.bf16 %v1504, %v1501
          %v1551 = vpack.c.bf16 %v1512, %v1509
          %v1552 = vpack.c.bf16 %v1520, %v1517
          %v1553 = vpack.c.bf16 %v1528, %v1525
          %v1554 = vpack.c.bf16 %v1536, %v1533
          %v1555 = vld [vmem:[%s365] sm:$0xf]
          %v1556 = vld [vmem:[%s365 + $0x4] sm:$0xf]
          %v1557 = vld [vmem:[%s365 + $0x8] sm:$0xf]
          %v1558 = vld [vmem:[%s365 + $0xc] sm:$0xf]
          %v1559 = vld [vmem:[%s365 + $0x10] sm:$0xf]
          %v1560 = vld [vmem:[%s365 + $0x14] sm:$0xf]
          %v1561 = vld [vmem:[%s365 + $0x18] sm:$0xf]
          %v1562 = vld [vmem:[%s365 + $0x1c] sm:$0xf]
          %v1563 = vld [vmem:[%s365 + $0x20] sm:$0xf]
          %v1564 = vld [vmem:[%s365 + $0x24] sm:$0xf]
          %v1565 = vld [vmem:[%s365 + $0x28] sm:$0xf]
          %v1566 = vld [vmem:[%s365 + $0x2c] sm:$0xf]
          %v1567 = vld [vmem:[%s365 + $0x30] sm:$0xf]
          %v1568 = vld [vmem:[%s365 + $0x34] sm:$0xf]
          %v1569 = vld [vmem:[%s365 + $0x38] sm:$0xf]
          %v1570 = vld [vmem:[%s365 + $0x3c] sm:$0xf]
          %v1571 = vlaneseq
          %v1572 = vshrl.u32 %v1571, 7
          %v1573 = vsub.s32 0, %v1572
          %v1574 = vrot.slane %v571, %v1573
          %v1591 = vunpack.c.l.b16 %v1555
          %v1592 = vunpack.c.l.b16 %v1556
          %v1593 = vunpack.c.l.b16 %v1557
          %v1594 = vunpack.c.l.b16 %v1558
          %v1595 = vunpack.c.l.b16 %v1559
          %v1596 = vunpack.c.l.b16 %v1560
          %v1597 = vunpack.c.l.b16 %v1561
          %v1598 = vunpack.c.l.b16 %v1562
          %v1599 = vunpack.c.l.b16 %v1563
          %v1600 = vunpack.c.l.b16 %v1564
          %v1601 = vunpack.c.l.b16 %v1565
          %v1602 = vunpack.c.l.b16 %v1566
          %v1603 = vunpack.c.l.b16 %v1567
          %v1604 = vunpack.c.l.b16 %v1568
          %v1605 = vunpack.c.l.b16 %v1569
          %v1606 = vunpack.c.l.b16 %v1570
          %v1607 = vpack.c.b16 %v1592, %v1591
          %v1608 = vpack.c.b16 %v1594, %v1593
          %v1609 = vpack.c.b16 %v1596, %v1595
          %v1610 = vpack.c.b16 %v1598, %v1597
          %v1611 = vpack.c.b16 %v1600, %v1599
          %v1612 = vpack.c.b16 %v1602, %v1601
          %v1613 = vpack.c.b16 %v1604, %v1603
          %v1614 = vpack.c.b16 %v1606, %v1605
          %1623 = vmatprep.subr.bf16.mxu0 0
          %1624 = vmatpush1.bf16.msra.mxu0 %v1614
          %1625 = vmatprep.subr.bf16.mxu0 0
          %1626 = vmatpush1.bf16.msra.mxu0 %v1613
          %1627 = vmatprep.subr.bf16.mxu0 0
          %1628 = vmatpush1.bf16.msra.mxu0 %v1612
          %1629 = vmatprep.subr.bf16.mxu0 0
          %1630 = vmatpush1.bf16.msra.mxu0 %v1611
          %1631 = vmatprep.subr.bf16.mxu0 0
          %1632 = vmatpush1.bf16.msra.mxu0 %v1610
          %1633 = vmatprep.subr.bf16.mxu0 0
          %1634 = vmatpush1.bf16.msra.mxu0 %v1609
          %1635 = vmatprep.subr.bf16.mxu0 0
          %1636 = vmatpush1.bf16.msra.mxu0 %v1608
          %1637 = vmatprep.subr.bf16.mxu0 0
          %1638 = vmatpush1.bf16.msra.mxu0 %v1607
          %1639 = vmatprep.subr.bf16.mxu0 0
          %1640 = vmatpush2.bf16.msra.mxu0 0
          %1641 = vmatprep.subr.bf16.mxu0 0
          %1642 = vmatpush2.bf16.msra.mxu0 0
          %1643 = vmatprep.subr.bf16.mxu0 0
          %1644 = vmatpush2.bf16.msra.mxu0 0
          %1645 = vmatprep.subr.bf16.mxu0 0
          %1646 = vmatpush2.bf16.msra.mxu0 0
          %1647 = vmatprep.subr.bf16.mxu0 0
          %1648 = vmatpush2.bf16.msra.mxu0 0
          %1649 = vmatprep.subr.bf16.mxu0 0
          %1650 = vmatpush2.bf16.msra.mxu0 0
          %1651 = vmatprep.subr.bf16.mxu0 0
          %1652 = vmatpush2.bf16.msra.mxu0 0
          %1653 = vmatprep.subr.bf16.mxu0 0
          %1654 = vmatpush2.bf16.msra.mxu0 0
          %1655 = vmatprep.mubr.bf16.mxu0 0
          %1656 = vmatmul.mubr.bf16.gmra.mxu0 %v1539
          %v1657 = vpop.f32.mrf.mxu0
          %v1658 = vadd.f32 %v1574, %v1657
          %v1659 = vpop.f32.mrf.mxu0
          %v1660 = vpop.f32.mrf.mxu0
          %v1661 = vadd.f32 %v1574, %v1660
          %v1662 = vpop.f32.mrf.mxu0
          %1663 = vmatprep.mubr.bf16.mxu0 0
          %1664 = vmatmul.mubr.bf16.gmra.mxu0 %v1540
          %v1665 = vpop.f32.mrf.mxu0
          %v1666 = vadd.f32 %v1574, %v1665
          %v1667 = vpop.f32.mrf.mxu0
          %v1668 = vpop.f32.mrf.mxu0
          %v1669 = vadd.f32 %v1574, %v1668
          %v1670 = vpop.f32.mrf.mxu0
          %1671 = vmatprep.mubr.bf16.mxu0 0
          %1672 = vmatmul.mubr.bf16.gmra.mxu0 %v1541
          %v1673 = vpop.f32.mrf.mxu0
          %v1674 = vadd.f32 %v1574, %v1673
          %v1675 = vpop.f32.mrf.mxu0
          %v1676 = vpop.f32.mrf.mxu0
          %v1677 = vadd.f32 %v1574, %v1676
          %v1678 = vpop.f32.mrf.mxu0
          %1679 = vmatprep.mubr.bf16.mxu0 0
          %1680 = vmatmul.mubr.bf16.gmra.mxu0 %v1542
          %v1681 = vpop.f32.mrf.mxu0
          %v1682 = vadd.f32 %v1574, %v1681
          %v1683 = vpop.f32.mrf.mxu0
          %v1684 = vpop.f32.mrf.mxu0
          %v1685 = vadd.f32 %v1574, %v1684
          %v1686 = vpop.f32.mrf.mxu0
          %1687 = vmatprep.mubr.bf16.mxu0 0
          %1688 = vmatmul.mubr.bf16.gmra.mxu0 %v1543
          %v1689 = vpop.f32.mrf.mxu0
          %v1690 = vadd.f32 %v1574, %v1689
          %v1691 = vpop.f32.mrf.mxu0
          %v1692 = vpop.f32.mrf.mxu0
          %v1693 = vadd.f32 %v1574, %v1692
          %v1694 = vpop.f32.mrf.mxu0
          %1695 = vmatprep.mubr.bf16.mxu0 0
          %1696 = vmatmul.mubr.bf16.gmra.mxu0 %v1544
          %v1697 = vpop.f32.mrf.mxu0
          %v1698 = vadd.f32 %v1574, %v1697
          %v1699 = vpop.f32.mrf.mxu0
          %v1700 = vpop.f32.mrf.mxu0
          %v1701 = vadd.f32 %v1574, %v1700
          %v1702 = vpop.f32.mrf.mxu0
          %1703 = vmatprep.mubr.bf16.mxu0 0
          %1704 = vmatmul.mubr.bf16.gmra.mxu0 %v1545
          %v1705 = vpop.f32.mrf.mxu0
          %v1706 = vadd.f32 %v1574, %v1705
          %v1707 = vpop.f32.mrf.mxu0
          %v1708 = vpop.f32.mrf.mxu0
          %v1709 = vadd.f32 %v1574, %v1708
          %v1710 = vpop.f32.mrf.mxu0
          %1711 = vmatprep.mubr.bf16.mxu0 0
          %1712 = vmatmul.mubr.bf16.gmra.mxu0 %v1546
          %v1713 = vpop.f32.mrf.mxu0
          %v1714 = vadd.f32 %v1574, %v1713
          %v1715 = vpop.f32.mrf.mxu0
          %v1716 = vpop.f32.mrf.mxu0
          %v1717 = vadd.f32 %v1574, %v1716
          %v1718 = vpop.f32.mrf.mxu0
          %1719 = vmatprep.mubr.bf16.mxu0 0
          %1720 = vmatmul.mubr.bf16.gmra.mxu0 %v1547
          %v1721 = vpop.f32.mrf.mxu0
          %v1722 = vadd.f32 %v1574, %v1721
          %v1723 = vpop.f32.mrf.mxu0
          %v1724 = vpop.f32.mrf.mxu0
          %v1725 = vadd.f32 %v1574, %v1724
          %v1726 = vpop.f32.mrf.mxu0
          %1727 = vmatprep.mubr.bf16.mxu0 0
          %1728 = vmatmul.mubr.bf16.gmra.mxu0 %v1548
          %v1729 = vpop.f32.mrf.mxu0
          %v1730 = vadd.f32 %v1574, %v1729
          %v1731 = vpop.f32.mrf.mxu0
          %v1732 = vpop.f32.mrf.mxu0
          %v1733 = vadd.f32 %v1574, %v1732
          %v1734 = vpop.f32.mrf.mxu0
          %1735 = vmatprep.mubr.bf16.mxu0 0
          %1736 = vmatmul.mubr.bf16.gmra.mxu0 %v1549
          %v1737 = vpop.f32.mrf.mxu0
          %v1738 = vadd.f32 %v1574, %v1737
          %v1739 = vpop.f32.mrf.mxu0
          %v1740 = vpop.f32.mrf.mxu0
          %v1741 = vadd.f32 %v1574, %v1740
          %v1742 = vpop.f32.mrf.mxu0
          %1743 = vmatprep.mubr.bf16.mxu0 0
          %1744 = vmatmul.mubr.bf16.gmra.mxu0 %v1550
          %v1745 = vpop.f32.mrf.mxu0
          %v1746 = vadd.f32 %v1574, %v1745
          %v1747 = vpop.f32.mrf.mxu0
          %v1748 = vpop.f32.mrf.mxu0
          %v1749 = vadd.f32 %v1574, %v1748
          %v1750 = vpop.f32.mrf.mxu0
          %1751 = vmatprep.mubr.bf16.mxu0 0
          %1752 = vmatmul.mubr.bf16.gmra.mxu0 %v1551
          %v1753 = vpop.f32.mrf.mxu0
          %v1754 = vadd.f32 %v1574, %v1753
          %v1755 = vpop.f32.mrf.mxu0
          %v1756 = vpop.f32.mrf.mxu0
          %v1757 = vadd.f32 %v1574, %v1756
          %v1758 = vpop.f32.mrf.mxu0
          %1759 = vmatprep.mubr.bf16.mxu0 0
          %1760 = vmatmul.mubr.bf16.gmra.mxu0 %v1552
          %v1761 = vpop.f32.mrf.mxu0
          %v1762 = vadd.f32 %v1574, %v1761
          %v1763 = vpop.f32.mrf.mxu0
          %v1764 = vpop.f32.mrf.mxu0
          %v1765 = vadd.f32 %v1574, %v1764
          %v1766 = vpop.f32.mrf.mxu0
          %1767 = vmatprep.mubr.bf16.mxu0 0
          %1768 = vmatmul.mubr.bf16.gmra.mxu0 %v1553
          %v1769 = vpop.f32.mrf.mxu0
          %v1770 = vadd.f32 %v1574, %v1769
          %v1771 = vpop.f32.mrf.mxu0
          %v1772 = vpop.f32.mrf.mxu0
          %v1773 = vadd.f32 %v1574, %v1772
          %v1774 = vpop.f32.mrf.mxu0
          %1775 = vmatprep.mubr.bf16.mxu0 0
          %1776 = vmatmul.mubr.bf16.gmra.mxu0 %v1554
          %v1777 = vpop.f32.mrf.mxu0
          %v1778 = vadd.f32 %v1574, %v1777
          %v1779 = vpop.f32.mrf.mxu0
          %v1780 = vpop.f32.mrf.mxu0
          %v1781 = vadd.f32 %v1574, %v1780
          %v1782 = vpop.f32.mrf.mxu0
          %1783 = vdwg.mxu0
          %v1784 = vmax.f32 %v1658, 0.0
          %v1785 = vmax.f32 %v1661, 0.0
          %v1786 = vmax.f32 %v1666, 0.0
          %v1787 = vmax.f32 %v1669, 0.0
          %v1788 = vmax.f32 %v1674, 0.0
          %v1789 = vmax.f32 %v1677, 0.0
          %v1790 = vmax.f32 %v1682, 0.0
          %v1791 = vmax.f32 %v1685, 0.0
          %v1792 = vmax.f32 %v1690, 0.0
          %v1793 = vmax.f32 %v1693, 0.0
          %v1794 = vmax.f32 %v1698, 0.0
          %v1795 = vmax.f32 %v1701, 0.0
          %v1796 = vmax.f32 %v1706, 0.0
          %v1797 = vmax.f32 %v1709, 0.0
          %v1798 = vmax.f32 %v1714, 0.0
          %v1799 = vmax.f32 %v1717, 0.0
          %v1800 = vmax.f32 %v1722, 0.0
          %v1801 = vmax.f32 %v1725, 0.0
          %v1802 = vmax.f32 %v1730, 0.0
          %v1803 = vmax.f32 %v1733, 0.0
          %v1804 = vmax.f32 %v1738, 0.0
          %v1805 = vmax.f32 %v1741, 0.0
          %v1806 = vmax.f32 %v1746, 0.0
          %v1807 = vmax.f32 %v1749, 0.0
          %v1808 = vmax.f32 %v1754, 0.0
          %v1809 = vmax.f32 %v1757, 0.0
          %v1810 = vmax.f32 %v1762, 0.0
          %v1811 = vmax.f32 %v1765, 0.0
          %v1812 = vmax.f32 %v1770, 0.0
          %v1813 = vmax.f32 %v1773, 0.0
          %v1814 = vmax.f32 %v1778, 0.0
          %v1815 = vmax.f32 %v1781, 0.0
          %v1816 = vpack.c.bf16 %v1785, %v1784
          %v1817 = vpack.c.bf16 %v1787, %v1786
          %v1818 = vpack.c.bf16 %v1789, %v1788
          %v1819 = vpack.c.bf16 %v1791, %v1790
          %v1820 = vpack.c.bf16 %v1793, %v1792
          %v1821 = vpack.c.bf16 %v1795, %v1794
          %v1822 = vpack.c.bf16 %v1797, %v1796
          %v1823 = vpack.c.bf16 %v1799, %v1798
          %v1824 = vpack.c.bf16 %v1801, %v1800
          %v1825 = vpack.c.bf16 %v1803, %v1802
          %v1826 = vpack.c.bf16 %v1805, %v1804
          %v1827 = vpack.c.bf16 %v1807, %v1806
          %v1828 = vpack.c.bf16 %v1809, %v1808
          %v1829 = vpack.c.bf16 %v1811, %v1810
          %v1830 = vpack.c.bf16 %v1813, %v1812
          %v1831 = vpack.c.bf16 %v1815, %v1814
          %v1832 = vld [vmem:[%s374] sm:$0xf]
          %v1833 = vld [vmem:[%s374 + $0x4] sm:$0xf]
          %v1834 = vld [vmem:[%s374 + $0x8] sm:$0xf]
          %v1835 = vld [vmem:[%s374 + $0xc] sm:$0xf]
          %v1836 = vld [vmem:[%s374 + $0x10] sm:$0xf]
          %v1837 = vld [vmem:[%s374 + $0x14] sm:$0xf]
          %v1838 = vld [vmem:[%s374 + $0x18] sm:$0xf]
          %v1839 = vld [vmem:[%s374 + $0x1c] sm:$0xf]
          %v1840 = vld [vmem:[%s374 + $0x20] sm:$0xf]
          %v1841 = vld [vmem:[%s374 + $0x24] sm:$0xf]
          %v1842 = vld [vmem:[%s374 + $0x28] sm:$0xf]
          %v1843 = vld [vmem:[%s374 + $0x2c] sm:$0xf]
          %v1844 = vld [vmem:[%s374 + $0x30] sm:$0xf]
          %v1845 = vld [vmem:[%s374 + $0x34] sm:$0xf]
          %v1846 = vld [vmem:[%s374 + $0x38] sm:$0xf]
          %v1847 = vld [vmem:[%s374 + $0x3c] sm:$0xf]
          %v1848 = vlaneseq
          %v1849 = vshrl.u32 %v1848, 7
          %v1850 = vsub.s32 1, %v1849
          %v1851 = vrot.slane %v571, %v1850
          %v1868 = vunpack.c.l.b16 %v1832
          %v1869 = vunpack.c.l.b16 %v1833
          %v1870 = vunpack.c.l.b16 %v1834
          %v1871 = vunpack.c.l.b16 %v1835
          %v1872 = vunpack.c.l.b16 %v1836
          %v1873 = vunpack.c.l.b16 %v1837
          %v1874 = vunpack.c.l.b16 %v1838
          %v1875 = vunpack.c.l.b16 %v1839
          %v1876 = vunpack.c.l.b16 %v1840
          %v1877 = vunpack.c.l.b16 %v1841
          %v1878 = vunpack.c.l.b16 %v1842
          %v1879 = vunpack.c.l.b16 %v1843
          %v1880 = vunpack.c.l.b16 %v1844
          %v1881 = vunpack.c.l.b16 %v1845
          %v1882 = vunpack.c.l.b16 %v1846
          %v1883 = vunpack.c.l.b16 %v1847
          %v1884 = vpack.c.b16 %v1869, %v1868
          %v1885 = vpack.c.b16 %v1871, %v1870
          %v1886 = vpack.c.b16 %v1873, %v1872
          %v1887 = vpack.c.b16 %v1875, %v1874
          %v1888 = vpack.c.b16 %v1877, %v1876
          %v1889 = vpack.c.b16 %v1879, %v1878
          %v1890 = vpack.c.b16 %v1881, %v1880
          %v1891 = vpack.c.b16 %v1883, %v1882
          %1900 = vmatprep.subr.bf16.mxu0 0
          %1901 = vmatpush1.bf16.msra.mxu0 %v1891
          %1902 = vmatprep.subr.bf16.mxu0 0
          %1903 = vmatpush1.bf16.msra.mxu0 %v1890
          %1904 = vmatprep.subr.bf16.mxu0 0
          %1905 = vmatpush1.bf16.msra.mxu0 %v1889
          %1906 = vmatprep.subr.bf16.mxu0 0
          %1907 = vmatpush1.bf16.msra.mxu0 %v1888
          %1908 = vmatprep.subr.bf16.mxu0 0
          %1909 = vmatpush1.bf16.msra.mxu0 %v1887
          %1910 = vmatprep.subr.bf16.mxu0 0
          %1911 = vmatpush1.bf16.msra.mxu0 %v1886
          %1912 = vmatprep.subr.bf16.mxu0 0
          %1913 = vmatpush1.bf16.msra.mxu0 %v1885
          %1914 = vmatprep.subr.bf16.mxu0 0
          %1915 = vmatpush1.bf16.msra.mxu0 %v1884
          %1916 = vmatprep.subr.bf16.mxu0 0
          %1917 = vmatpush2.bf16.msra.mxu0 0
          %1918 = vmatprep.subr.bf16.mxu0 0
          %1919 = vmatpush2.bf16.msra.mxu0 0
          %1920 = vmatprep.subr.bf16.mxu0 0
          %1921 = vmatpush2.bf16.msra.mxu0 0
          %1922 = vmatprep.subr.bf16.mxu0 0
          %1923 = vmatpush2.bf16.msra.mxu0 0
          %1924 = vmatprep.subr.bf16.mxu0 0
          %1925 = vmatpush2.bf16.msra.mxu0 0
          %1926 = vmatprep.subr.bf16.mxu0 0
          %1927 = vmatpush2.bf16.msra.mxu0 0
          %1928 = vmatprep.subr.bf16.mxu0 0
          %1929 = vmatpush2.bf16.msra.mxu0 0
          %1930 = vmatprep.subr.bf16.mxu0 0
          %1931 = vmatpush2.bf16.msra.mxu0 0
          %1932 = vmatprep.mubr.bf16.mxu0 0
          %1933 = vmatmul.mubr.bf16.gmra.mxu0 %v1816
          %v1934 = vpop.f32.mrf.mxu0
          %v1935 = vadd.f32 %v1851, %v1934
          %v1936 = vpop.f32.mrf.mxu0
          %v1937 = vpop.f32.mrf.mxu0
          %v1938 = vadd.f32 %v1851, %v1937
          %v1939 = vpop.f32.mrf.mxu0
          %1940 = vmatprep.mubr.bf16.mxu0 0
          %1941 = vmatmul.mubr.bf16.gmra.mxu0 %v1817
          %v1942 = vpop.f32.mrf.mxu0
          %v1943 = vadd.f32 %v1851, %v1942
          %v1944 = vpop.f32.mrf.mxu0
          %v1945 = vpop.f32.mrf.mxu0
          %v1946 = vadd.f32 %v1851, %v1945
          %v1947 = vpop.f32.mrf.mxu0
          %1948 = vmatprep.mubr.bf16.mxu0 0
          %1949 = vmatmul.mubr.bf16.gmra.mxu0 %v1818
          %v1950 = vpop.f32.mrf.mxu0
          %v1951 = vadd.f32 %v1851, %v1950
          %v1952 = vpop.f32.mrf.mxu0
          %v1953 = vpop.f32.mrf.mxu0
          %v1954 = vadd.f32 %v1851, %v1953
          %v1955 = vpop.f32.mrf.mxu0
          %1956 = vmatprep.mubr.bf16.mxu0 0
          %1957 = vmatmul.mubr.bf16.gmra.mxu0 %v1819
          %v1958 = vpop.f32.mrf.mxu0
          %v1959 = vadd.f32 %v1851, %v1958
          %v1960 = vpop.f32.mrf.mxu0
          %v1961 = vpop.f32.mrf.mxu0
          %v1962 = vadd.f32 %v1851, %v1961
          %v1963 = vpop.f32.mrf.mxu0
          %1964 = vmatprep.mubr.bf16.mxu0 0
          %1965 = vmatmul.mubr.bf16.gmra.mxu0 %v1820
          %v1966 = vpop.f32.mrf.mxu0
          %v1967 = vadd.f32 %v1851, %v1966
          %v1968 = vpop.f32.mrf.mxu0
          %v1969 = vpop.f32.mrf.mxu0
          %v1970 = vadd.f32 %v1851, %v1969
          %v1971 = vpop.f32.mrf.mxu0
          %1972 = vmatprep.mubr.bf16.mxu0 0
          %1973 = vmatmul.mubr.bf16.gmra.mxu0 %v1821
          %v1974 = vpop.f32.mrf.mxu0
          %v1975 = vadd.f32 %v1851, %v1974
          %v1976 = vpop.f32.mrf.mxu0
          %v1977 = vpop.f32.mrf.mxu0
          %v1978 = vadd.f32 %v1851, %v1977
          %v1979 = vpop.f32.mrf.mxu0
          %1980 = vmatprep.mubr.bf16.mxu0 0
          %1981 = vmatmul.mubr.bf16.gmra.mxu0 %v1822
          %v1982 = vpop.f32.mrf.mxu0
          %v1983 = vadd.f32 %v1851, %v1982
          %v1984 = vpop.f32.mrf.mxu0
          %v1985 = vpop.f32.mrf.mxu0
          %v1986 = vadd.f32 %v1851, %v1985
          %v1987 = vpop.f32.mrf.mxu0
          %1988 = vmatprep.mubr.bf16.mxu0 0
          %1989 = vmatmul.mubr.bf16.gmra.mxu0 %v1823
          %v1990 = vpop.f32.mrf.mxu0
          %v1991 = vadd.f32 %v1851, %v1990
          %v1992 = vpop.f32.mrf.mxu0
          %v1993 = vpop.f32.mrf.mxu0
          %v1994 = vadd.f32 %v1851, %v1993
          %v1995 = vpop.f32.mrf.mxu0
          %1996 = vmatprep.mubr.bf16.mxu0 0
          %1997 = vmatmul.mubr.bf16.gmra.mxu0 %v1824
          %v1998 = vpop.f32.mrf.mxu0
          %v1999 = vadd.f32 %v1851, %v1998
          %v2000 = vpop.f32.mrf.mxu0
          %v2001 = vpop.f32.mrf.mxu0
          %v2002 = vadd.f32 %v1851, %v2001
          %v2003 = vpop.f32.mrf.mxu0
          %2004 = vmatprep.mubr.bf16.mxu0 0
          %2005 = vmatmul.mubr.bf16.gmra.mxu0 %v1825
          %v2006 = vpop.f32.mrf.mxu0
          %v2007 = vadd.f32 %v1851, %v2006
          %v2008 = vpop.f32.mrf.mxu0
          %v2009 = vpop.f32.mrf.mxu0
          %v2010 = vadd.f32 %v1851, %v2009
          %v2011 = vpop.f32.mrf.mxu0
          %2012 = vmatprep.mubr.bf16.mxu0 0
          %2013 = vmatmul.mubr.bf16.gmra.mxu0 %v1826
          %v2014 = vpop.f32.mrf.mxu0
          %v2015 = vadd.f32 %v1851, %v2014
          %v2016 = vpop.f32.mrf.mxu0
          %v2017 = vpop.f32.mrf.mxu0
          %v2018 = vadd.f32 %v1851, %v2017
          %v2019 = vpop.f32.mrf.mxu0
          %2020 = vmatprep.mubr.bf16.mxu0 0
          %2021 = vmatmul.mubr.bf16.gmra.mxu0 %v1827
          %v2022 = vpop.f32.mrf.mxu0
          %v2023 = vadd.f32 %v1851, %v2022
          %v2024 = vpop.f32.mrf.mxu0
          %v2025 = vpop.f32.mrf.mxu0
          %v2026 = vadd.f32 %v1851, %v2025
          %v2027 = vpop.f32.mrf.mxu0
          %2028 = vmatprep.mubr.bf16.mxu0 0
          %2029 = vmatmul.mubr.bf16.gmra.mxu0 %v1828
          %v2030 = vpop.f32.mrf.mxu0
          %v2031 = vadd.f32 %v1851, %v2030
          %v2032 = vpop.f32.mrf.mxu0
          %v2033 = vpop.f32.mrf.mxu0
          %v2034 = vadd.f32 %v1851, %v2033
          %v2035 = vpop.f32.mrf.mxu0
          %2036 = vmatprep.mubr.bf16.mxu0 0
          %2037 = vmatmul.mubr.bf16.gmra.mxu0 %v1829
          %v2038 = vpop.f32.mrf.mxu0
          %v2039 = vadd.f32 %v1851, %v2038
          %v2040 = vpop.f32.mrf.mxu0
          %v2041 = vpop.f32.mrf.mxu0
          %v2042 = vadd.f32 %v1851, %v2041
          %v2043 = vpop.f32.mrf.mxu0
          %2044 = vmatprep.mubr.bf16.mxu0 0
          %2045 = vmatmul.mubr.bf16.gmra.mxu0 %v1830
          %v2046 = vpop.f32.mrf.mxu0
          %v2047 = vadd.f32 %v1851, %v2046
          %v2048 = vpop.f32.mrf.mxu0
          %v2049 = vpop.f32.mrf.mxu0
          %v2050 = vadd.f32 %v1851, %v2049
          %v2051 = vpop.f32.mrf.mxu0
          %2052 = vmatprep.mubr.bf16.mxu0 0
          %2053 = vmatmul.mubr.bf16.gmra.mxu0 %v1831
          %v2054 = vpop.f32.mrf.mxu0
          %v2055 = vadd.f32 %v1851, %v2054
          %v2056 = vpop.f32.mrf.mxu0
          %v2057 = vpop.f32.mrf.mxu0
          %v2058 = vadd.f32 %v1851, %v2057
          %v2059 = vpop.f32.mrf.mxu0
          %2060 = vdwg.mxu0
          %v2061 = vmax.f32 %v1935, 0.0
          %v2062 = vmax.f32 %v1938, 0.0
          %v2063 = vmax.f32 %v1943, 0.0
          %v2064 = vmax.f32 %v1946, 0.0
          %v2065 = vmax.f32 %v1951, 0.0
          %v2066 = vmax.f32 %v1954, 0.0
          %v2067 = vmax.f32 %v1959, 0.0
          %v2068 = vmax.f32 %v1962, 0.0
          %v2069 = vmax.f32 %v1967, 0.0
          %v2070 = vmax.f32 %v1970, 0.0
          %v2071 = vmax.f32 %v1975, 0.0
          %v2072 = vmax.f32 %v1978, 0.0
          %v2073 = vmax.f32 %v1983, 0.0
          %v2074 = vmax.f32 %v1986, 0.0
          %v2075 = vmax.f32 %v1991, 0.0
          %v2076 = vmax.f32 %v1994, 0.0
          %v2077 = vmax.f32 %v1999, 0.0
          %v2078 = vmax.f32 %v2002, 0.0
          %v2079 = vmax.f32 %v2007, 0.0
          %v2080 = vmax.f32 %v2010, 0.0
          %v2081 = vmax.f32 %v2015, 0.0
          %v2082 = vmax.f32 %v2018, 0.0
          %v2083 = vmax.f32 %v2023, 0.0
          %v2084 = vmax.f32 %v2026, 0.0
          %v2085 = vmax.f32 %v2031, 0.0
          %v2086 = vmax.f32 %v2034, 0.0
          %v2087 = vmax.f32 %v2039, 0.0
          %v2088 = vmax.f32 %v2042, 0.0
          %v2089 = vmax.f32 %v2047, 0.0
          %v2090 = vmax.f32 %v2050, 0.0
          %v2091 = vmax.f32 %v2055, 0.0
          %v2092 = vmax.f32 %v2058, 0.0
          %s2093 = scalar_lea.vmem [#allocation3], %s424
          %2094 = vst [vmem:[%s2093] sm:$0xff] %v2061
          %2095 = vst [vmem:[%s2093 + $0x8] sm:$0xff] %v2062
          %2096 = vst [vmem:[%s2093 + $0x10] sm:$0xff] %v2063
          %2097 = vst [vmem:[%s2093 + $0x18] sm:$0xff] %v2064
          %2098 = vst [vmem:[%s2093 + $0x20] sm:$0xff] %v2065
          %2099 = vst [vmem:[%s2093 + $0x28] sm:$0xff] %v2066
          %2100 = vst [vmem:[%s2093 + $0x30] sm:$0xff] %v2067
          %2101 = vst [vmem:[%s2093 + $0x38] sm:$0xff] %v2068
          %2102 = vst [vmem:[%s2093 + $0x40] sm:$0xff] %v2069
          %2103 = vst [vmem:[%s2093 + $0x48] sm:$0xff] %v2070
          %2104 = vst [vmem:[%s2093 + $0x50] sm:$0xff] %v2071
          %2105 = vst [vmem:[%s2093 + $0x58] sm:$0xff] %v2072
          %2106 = vst [vmem:[%s2093 + $0x60] sm:$0xff] %v2073
          %2107 = vst [vmem:[%s2093 + $0x68] sm:$0xff] %v2074
          %2108 = vst [vmem:[%s2093 + $0x70] sm:$0xff] %v2075
          %2109 = vst [vmem:[%s2093 + $0x78] sm:$0xff] %v2076
          %2110 = vst [vmem:[%s2093 + $0x80] sm:$0xff] %v2077
          %2111 = vst [vmem:[%s2093 + $0x88] sm:$0xff] %v2078
          %2112 = vst [vmem:[%s2093 + $0x90] sm:$0xff] %v2079
          %2113 = vst [vmem:[%s2093 + $0x98] sm:$0xff] %v2080
          %2114 = vst [vmem:[%s2093 + $0xa0] sm:$0xff] %v2081
          %2115 = vst [vmem:[%s2093 + $0xa8] sm:$0xff] %v2082
          %2116 = vst [vmem:[%s2093 + $0xb0] sm:$0xff] %v2083
          %2117 = vst [vmem:[%s2093 + $0xb8] sm:$0xff] %v2084
          %2118 = vst [vmem:[%s2093 + $0xc0] sm:$0xff] %v2085
          %2119 = vst [vmem:[%s2093 + $0xc8] sm:$0xff] %v2086
          %2120 = vst [vmem:[%s2093 + $0xd0] sm:$0xff] %v2087
          %2121 = vst [vmem:[%s2093 + $0xd8] sm:$0xff] %v2088
          %2122 = vst [vmem:[%s2093 + $0xe0] sm:$0xff] %v2089
          %2123 = vst [vmem:[%s2093 + $0xe8] sm:$0xff] %v2090
          %2124 = vst [vmem:[%s2093 + $0xf0] sm:$0xff] %v2091
          %2125 = vst [vmem:[%s2093 + $0xf8] sm:$0xff] %v2092
          %v2126 = vld [vmem:[#allocation6] sm:$0xff]
          %s2127 = sshra.s32 %s424, 7
          %s2128 = sand.u32 %s424, 127
          %s2129 = smul.addr %s2127, 8
          %s2130 = scalar_lea.vmem [#allocation12], %s2129
          %v2131 = vld [vmem:[%s2130] sm:$0xff]
          %v2132 = vld [vmem:[%s2130 + $0x8] sm:$0xff]
          %2133 = vmatprep.subr.mxu0 0.0
          %2134 = vmatpush1.msra.mxu0 %v2076
          %2135 = vmatprep.subr.mxu0 0.0
          %2136 = vmatpush1.msra.mxu0 %v2075
          %2137 = vmatprep.subr.mxu0 0.0
          %2138 = vmatpush1.msra.mxu0 %v2074
          %2139 = vmatprep.subr.mxu0 0.0
          %2140 = vmatpush1.msra.mxu0 %v2073
          %2141 = vmatprep.subr.mxu0 0.0
          %2142 = vmatpush1.msra.mxu0 %v2072
          %2143 = vmatprep.subr.mxu0 0.0
          %2144 = vmatpush1.msra.mxu0 %v2071
          %2145 = vmatprep.subr.mxu0 0.0
          %2146 = vmatpush1.msra.mxu0 %v2070
          %2147 = vmatprep.subr.mxu0 0.0
          %2148 = vmatpush1.msra.mxu0 %v2069
          %2149 = vmatprep.subr.mxu0 0.0
          %2150 = vmatpush1.msra.mxu0 %v2068
          %2151 = vmatprep.subr.mxu0 0.0
          %2152 = vmatpush1.msra.mxu0 %v2067
          %2153 = vmatprep.subr.mxu0 0.0
          %2154 = vmatpush1.msra.mxu0 %v2066
          %2155 = vmatprep.subr.mxu0 0.0
          %2156 = vmatpush1.msra.mxu0 %v2065
          %2157 = vmatprep.subr.mxu0 0.0
          %2158 = vmatpush1.msra.mxu0 %v2064
          %2159 = vmatprep.subr.mxu0 0.0
          %2160 = vmatpush1.msra.mxu0 %v2063
          %2161 = vmatprep.subr.mxu0 0.0
          %2162 = vmatpush1.msra.mxu0 %v2062
          %2163 = vmatprep.subr.mxu0 0.0
          %2164 = vmatpush1.msra.mxu0 %v2061
          %2165 = vmatprep.subr.mxu0 0.0
          %2166 = vmatpush2.msra.mxu0 %v2092
          %2167 = vmatprep.subr.mxu0 0.0
          %2168 = vmatpush2.msra.mxu0 %v2091
          %2169 = vmatprep.subr.mxu0 0.0
          %2170 = vmatpush2.msra.mxu0 %v2090
          %2171 = vmatprep.subr.mxu0 0.0
          %2172 = vmatpush2.msra.mxu0 %v2089
          %2173 = vmatprep.subr.mxu0 0.0
          %2174 = vmatpush2.msra.mxu0 %v2088
          %2175 = vmatprep.subr.mxu0 0.0
          %2176 = vmatpush2.msra.mxu0 %v2087
          %2177 = vmatprep.subr.mxu0 0.0
          %2178 = vmatpush2.msra.mxu0 %v2086
          %2179 = vmatprep.subr.mxu0 0.0
          %2180 = vmatpush2.msra.mxu0 %v2085
          %2181 = vmatprep.subr.mxu0 0.0
          %2182 = vmatpush2.msra.mxu0 %v2084
          %2183 = vmatprep.subr.mxu0 0.0
          %2184 = vmatpush2.msra.mxu0 %v2083
          %2185 = vmatprep.subr.mxu0 0.0
          %2186 = vmatpush2.msra.mxu0 %v2082
          %2187 = vmatprep.subr.mxu0 0.0
          %2188 = vmatpush2.msra.mxu0 %v2081
          %2189 = vmatprep.subr.mxu0 0.0
          %2190 = vmatpush2.msra.mxu0 %v2080
          %2191 = vmatprep.subr.mxu0 0.0
          %2192 = vmatpush2.msra.mxu0 %v2079
          %2193 = vmatprep.subr.mxu0 0.0
          %2194 = vmatpush2.msra.mxu0 %v2078
          %2195 = vmatprep.subr.mxu0 0.0
          %2196 = vmatpush2.msra.mxu0 %v2077
          %2197 = vmatprep.mubr.f32.mxu0 %v2132
          %2198 = vmatmul.mubr.f32.gmra.mxu0 %v2131
          %v2199 = vpop.f32.mrf.mxu0
          %v2200 = vadd.f32 0.0, %v2199
          %v2201 = vpop.f32.mrf.mxu0
          %2202 = vdwg.mxu0
          %v2203 = vadd.f32 %v2126, %v2200
          %2204 = vst [vmem:[#allocation6] sm:$0xff] %v2203
          %v2205 = vld [vmem:[#allocation4] sm:$0x1]
          %v2206 = vadd.f32 %v2061, %v2062
          %v2207 = vadd.f32 %v2206, %v2063
          %v2208 = vadd.f32 %v2207, %v2064
          %v2209 = vadd.f32 %v2208, %v2065
          %v2210 = vadd.f32 %v2209, %v2066
          %v2211 = vadd.f32 %v2210, %v2067
          %v2212 = vadd.f32 %v2211, %v2068
          %v2213 = vadd.f32 %v2212, %v2069
          %v2214 = vadd.f32 %v2213, %v2070
          %v2215 = vadd.f32 %v2214, %v2071
          %v2216 = vadd.f32 %v2215, %v2072
          %v2217 = vadd.f32 %v2216, %v2073
          %v2218 = vadd.f32 %v2217, %v2074
          %v2219 = vadd.f32 %v2218, %v2075
          %v2220 = vadd.f32 %v2219, %v2076
          %v2221 = vadd.f32 %v2220, %v2077
          %v2222 = vadd.f32 %v2221, %v2078
          %v2223 = vadd.f32 %v2222, %v2079
          %v2224 = vadd.f32 %v2223, %v2080
          %v2225 = vadd.f32 %v2224, %v2081
          %v2226 = vadd.f32 %v2225, %v2082
          %v2227 = vadd.f32 %v2226, %v2083
          %v2228 = vadd.f32 %v2227, %v2084
          %v2229 = vadd.f32 %v2228, %v2085
          %v2230 = vadd.f32 %v2229, %v2086
          %v2231 = vadd.f32 %v2230, %v2087
          %v2232 = vadd.f32 %v2231, %v2088
          %v2233 = vadd.f32 %v2232, %v2089
          %v2234 = vadd.f32 %v2233, %v2090
          %v2235 = vadd.f32 %v2234, %v2091
          %v2236 = vadd.f32 %v2235, %v2092
          %v2237 = vrot.slane %v2236, 4
          %v2238 = vadd.f32 %v2236, %v2237
          %v2239 = vrot.slane %v2238, 2
          %v2240 = vadd.f32 %v2238, %v2239
          %v2241 = vrot.slane %v2240, 1
          %v2242 = vadd.f32 %v2240, %v2241
          %v2243 = vadd.f32 %v2205, %v2242
          %2244 = vst [vmem:[#allocation4] sm:$0x1] %v2243
          %v2245 = vld [vmem:[#allocation5] sm:$0x1]
          %v2246 = vmul.f32 %v2061, %v2061
          %v2247 = vmul.f32 %v2062, %v2062
          %v2248 = vmul.f32 %v2063, %v2063
          %v2249 = vmul.f32 %v2064, %v2064
          %v2250 = vmul.f32 %v2065, %v2065
          %v2251 = vmul.f32 %v2066, %v2066
          %v2252 = vmul.f32 %v2067, %v2067
          %v2253 = vmul.f32 %v2068, %v2068
          %v2254 = vmul.f32 %v2069, %v2069
          %v2255 = vmul.f32 %v2070, %v2070
          %v2256 = vmul.f32 %v2071, %v2071
          %v2257 = vmul.f32 %v2072, %v2072
          %v2258 = vmul.f32 %v2073, %v2073
          %v2259 = vmul.f32 %v2074, %v2074
          %v2260 = vmul.f32 %v2075, %v2075
          %v2261 = vmul.f32 %v2076, %v2076
          %v2262 = vmul.f32 %v2077, %v2077
          %v2263 = vmul.f32 %v2078, %v2078
          %v2264 = vmul.f32 %v2079, %v2079
          %v2265 = vmul.f32 %v2080, %v2080
          %v2266 = vmul.f32 %v2081, %v2081
          %v2267 = vmul.f32 %v2082, %v2082
          %v2268 = vmul.f32 %v2083, %v2083
          %v2269 = vmul.f32 %v2084, %v2084
          %v2270 = vmul.f32 %v2085, %v2085
          %v2271 = vmul.f32 %v2086, %v2086
          %v2272 = vmul.f32 %v2087, %v2087
          %v2273 = vmul.f32 %v2088, %v2088
          %v2274 = vmul.f32 %v2089, %v2089
          %v2275 = vmul.f32 %v2090, %v2090
          %v2276 = vmul.f32 %v2091, %v2091
          %v2277 = vmul.f32 %v2092, %v2092
          %v2278 = vadd.f32 %v2246, %v2247
          %v2279 = vadd.f32 %v2278, %v2248
          %v2280 = vadd.f32 %v2279, %v2249
          %v2281 = vadd.f32 %v2280, %v2250
          %v2282 = vadd.f32 %v2281, %v2251
          %v2283 = vadd.f32 %v2282, %v2252
          %v2284 = vadd.f32 %v2283, %v2253
          %v2285 = vadd.f32 %v2284, %v2254
          %v2286 = vadd.f32 %v2285, %v2255
          %v2287 = vadd.f32 %v2286, %v2256
          %v2288 = vadd.f32 %v2287, %v2257
          %v2289 = vadd.f32 %v2288, %v2258
          %v2290 = vadd.f32 %v2289, %v2259
          %v2291 = vadd.f32 %v2290, %v2260
          %v2292 = vadd.f32 %v2291, %v2261
          %v2293 = vadd.f32 %v2292, %v2262
          %v2294 = vadd.f32 %v2293, %v2263
          %v2295 = vadd.f32 %v2294, %v2264
          %v2296 = vadd.f32 %v2295, %v2265
          %v2297 = vadd.f32 %v2296, %v2266
          %v2298 = vadd.f32 %v2297, %v2267
          %v2299 = vadd.f32 %v2298, %v2268
          %v2300 = vadd.f32 %v2299, %v2269
          %v2301 = vadd.f32 %v2300, %v2270
          %v2302 = vadd.f32 %v2301, %v2271
          %v2303 = vadd.f32 %v2302, %v2272
          %v2304 = vadd.f32 %v2303, %v2273
          %v2305 = vadd.f32 %v2304, %v2274
          %v2306 = vadd.f32 %v2305, %v2275
          %v2307 = vadd.f32 %v2306, %v2276
          %v2308 = vadd.f32 %v2307, %v2277
          %v2309 = vrot.slane %v2308, 4
          %v2310 = vadd.f32 %v2308, %v2309
          %v2311 = vrot.slane %v2310, 2
          %v2312 = vadd.f32 %v2310, %v2311
          %v2313 = vrot.slane %v2312, 1
          %v2314 = vadd.f32 %v2312, %v2313
          %v2315 = vadd.f32 %v2245, %v2314
          %2316 = vst [vmem:[#allocation5] sm:$0x1] %v2315
          %p2317 = scmp.eq.s32.totalorder %s37, 1
          // Predicated region
          $region77: #{tpu_custom_call.1} parent=71 // pred_check
            %p2318 = pneg %p2317
          $region78: #{tpu_custom_call.1} parent=71 // pred_check_branch
            %2320 = sbr.rel (%p2318) target = $region80
          $region79: #{tpu_custom_call.1} parent=71 // pred_region
            %v2321 = vld [vmem:[#allocation4] sm:$0x1]
            %v2322 = vmul.f32 %v2321, 0.001953125
            %v2323 = vld [vmem:[#allocation5] sm:$0x1]
            %v2324 = vmul.f32 %v2323, 0.001953125
            %v2325 = vmul.f32 %v2322, %v2322
            %v2326 = vsub.f32 %v2324, %v2325
            %v2327 = vmax.f32 %v2326, 0.0
            %v2328 = vadd.f32 %v2327, 1e-05
            %v2329 = vrsqrt.pop %v2328
            %v2332 = vunpack.c.l.s4 1966171168
            %v2333 = vunpack.c.0.s8 %v2332
            %v2334 = vlaneseq
            %v2335 = vshrl.u32 %v2334, 7
            %v2336 = vsub.s32 %v2333, %v2335
            %v2337 = vrot.slane %v571, %v2336
            %v2339 = vunpack.c.l.s4 1966171168
            %v2340 = vunpack.c.0.s8 %v2339
            %v2341 = vlaneseq
            %v2342 = vshrl.u32 %v2341, 7
            %v2343 = vsub.s32 %v2340, %v2342
            %v2344 = vrot.slane %v2337, %v2343
            %v2345 = vcombine.high %v2344, %v2344
            %v2347 = vmul.f32 %v2329, %v2345
            %v2348 = vmul.f32 %v2322, %v2347
            %v2350 = vlaneseq
            %v2351 = vshrl.u32 %v2350, 7
            %v2352 = vsub.s32 0, %v2351
            %v2353 = vrot.slane %v2348, %v2352
            %v2355 = vsub.f32 %v571, %v2353
            %2356 = vst [vmem:[#allocation4] sm:$0x1] %v2347
            %2357 = vst [vmem:[#allocation5 - $0x3] sm:$0x8] %v2355
            %v2358 = vld [vmem:[#allocation12] sm:$0xff]
            %v2359 = vld [vmem:[#allocation12 + $0x8] sm:$0xff]
            %v2360 = vld [vmem:[#allocation12 + $0x10] sm:$0xff]
            %v2361 = vld [vmem:[#allocation12 + $0x18] sm:$0xff]
            %v2362 = vadd.f32 %v2358, %v2359
            %v2363 = vadd.f32 %v2362, %v2360
            %v2364 = vadd.f32 %v2363, %v2361
            %2365 = vadd.xlane.f32.xlu0 %v2364
            %v2366 = vpop.xlane.xlu0 %2365
            %v2367 = vld [vmem:[#allocation6] sm:$0xff]
            %v2369 = vlaneseq
            %v2370 = vshrl.u32 %v2369, 7
            %v2371 = vsub.s32 0, %v2370
            %v2372 = vrot.slane %v2347, %v2371
            %v2374 = vmul.f32 %v2367, %v2372
            %v2375 = vlaneseq
            %v2376 = vshrl.u32 %v2375, 7
            %v2377 = vsub.s32 3, %v2376
            %v2378 = vrot.slane %v2355, %v2377
            %v2379 = vmul.f32 %v2366, %v2378
            %v2380 = vadd.f32 %v2374, %v2379
            %2381 = vst [vmem:[%s418] sm:$0xff] %v2380
          $region80: #{tpu_custom_call.1} parent=71 // pred_fallthru
            _
        $region72: #{tpu_custom_call.1} parent=43 // pred_fallthru
          _
        %p2382 = scmp.eq.s32.totalorder %s36, 1
        // Predicated region
        $region81: #{tpu_custom_call.1} parent=43 // pred_check
          %p2383 = pneg %p2382
        $region82: #{tpu_custom_call.1} parent=43 // pred_check_branch
          %2385 = sbr.rel (%p2383) target = $region84
        $region83: #{tpu_custom_call.1} parent=43 // pred_region
          %s2386 = scalar_lea.vmem [#allocation3], %s424
          %v2387 = vld [vmem:[%s2386] sm:$0xff]
          %v2388 = vld [vmem:[%s2386 + $0x8] sm:$0xff]
          %v2389 = vld [vmem:[%s2386 + $0x10] sm:$0xff]
          %v2390 = vld [vmem:[%s2386 + $0x18] sm:$0xff]
          %v2391 = vld [vmem:[%s2386 + $0x20] sm:$0xff]
          %v2392 = vld [vmem:[%s2386 + $0x28] sm:$0xff]
          %v2393 = vld [vmem:[%s2386 + $0x30] sm:$0xff]
          %v2394 = vld [vmem:[%s2386 + $0x38] sm:$0xff]
          %v2395 = vld [vmem:[%s2386 + $0x40] sm:$0xff]
          %v2396 = vld [vmem:[%s2386 + $0x48] sm:$0xff]
          %v2397 = vld [vmem:[%s2386 + $0x50] sm:$0xff]
          %v2398 = vld [vmem:[%s2386 + $0x58] sm:$0xff]
          %v2399 = vld [vmem:[%s2386 + $0x60] sm:$0xff]
          %v2400 = vld [vmem:[%s2386 + $0x68] sm:$0xff]
          %v2401 = vld [vmem:[%s2386 + $0x70] sm:$0xff]
          %v2402 = vld [vmem:[%s2386 + $0x78] sm:$0xff]
          %v2403 = vld [vmem:[%s2386 + $0x80] sm:$0xff]
          %v2404 = vld [vmem:[%s2386 + $0x88] sm:$0xff]
          %v2405 = vld [vmem:[%s2386 + $0x90] sm:$0xff]
          %v2406 = vld [vmem:[%s2386 + $0x98] sm:$0xff]
          %v2407 = vld [vmem:[%s2386 + $0xa0] sm:$0xff]
          %v2408 = vld [vmem:[%s2386 + $0xa8] sm:$0xff]
          %v2409 = vld [vmem:[%s2386 + $0xb0] sm:$0xff]
          %v2410 = vld [vmem:[%s2386 + $0xb8] sm:$0xff]
          %v2411 = vld [vmem:[%s2386 + $0xc0] sm:$0xff]
          %v2412 = vld [vmem:[%s2386 + $0xc8] sm:$0xff]
          %v2413 = vld [vmem:[%s2386 + $0xd0] sm:$0xff]
          %v2414 = vld [vmem:[%s2386 + $0xd8] sm:$0xff]
          %v2415 = vld [vmem:[%s2386 + $0xe0] sm:$0xff]
          %v2416 = vld [vmem:[%s2386 + $0xe8] sm:$0xff]
          %v2417 = vld [vmem:[%s2386 + $0xf0] sm:$0xff]
          %v2418 = vld [vmem:[%s2386 + $0xf8] sm:$0xff]
          %v2419 = vld [vmem:[#allocation4] sm:$0x1]
          %v2421 = vlaneseq
          %v2422 = vshrl.u32 %v2421, 7
          %v2423 = vsub.s32 0, %v2422
          %v2424 = vrot.slane %v2419, %v2423
          %v2426 = vmul.f32 %v2387, %v2424
          %v2427 = vmul.f32 %v2388, %v2424
          %v2428 = vmul.f32 %v2389, %v2424
          %v2429 = vmul.f32 %v2390, %v2424
          %v2430 = vmul.f32 %v2391, %v2424
          %v2431 = vmul.f32 %v2392, %v2424
          %v2432 = vmul.f32 %v2393, %v2424
          %v2433 = vmul.f32 %v2394, %v2424
          %v2434 = vmul.f32 %v2395, %v2424
          %v2435 = vmul.f32 %v2396, %v2424
          %v2436 = vmul.f32 %v2397, %v2424
          %v2437 = vmul.f32 %v2398, %v2424
          %v2438 = vmul.f32 %v2399, %v2424
          %v2439 = vmul.f32 %v2400, %v2424
          %v2440 = vmul.f32 %v2401, %v2424
          %v2441 = vmul.f32 %v2402, %v2424
          %v2442 = vmul.f32 %v2403, %v2424
          %v2443 = vmul.f32 %v2404, %v2424
          %v2444 = vmul.f32 %v2405, %v2424
          %v2445 = vmul.f32 %v2406, %v2424
          %v2446 = vmul.f32 %v2407, %v2424
          %v2447 = vmul.f32 %v2408, %v2424
          %v2448 = vmul.f32 %v2409, %v2424
          %v2449 = vmul.f32 %v2410, %v2424
          %v2450 = vmul.f32 %v2411, %v2424
          %v2451 = vmul.f32 %v2412, %v2424
          %v2452 = vmul.f32 %v2413, %v2424
          %v2453 = vmul.f32 %v2414, %v2424
          %v2454 = vmul.f32 %v2415, %v2424
          %v2455 = vmul.f32 %v2416, %v2424
          %v2456 = vmul.f32 %v2417, %v2424
          %v2457 = vmul.f32 %v2418, %v2424
          %v2458 = vld [vmem:[#allocation5] sm:$0x1]
          %v2460 = vlaneseq
          %v2461 = vshrl.u32 %v2460, 7
          %v2462 = vsub.s32 0, %v2461
          %v2463 = vrot.slane %v2458, %v2462
          %v2465 = vadd.f32 %v2426, %v2463
          %v2466 = vadd.f32 %v2427, %v2463
          %v2467 = vadd.f32 %v2428, %v2463
          %v2468 = vadd.f32 %v2429, %v2463
          %v2469 = vadd.f32 %v2430, %v2463
          %v2470 = vadd.f32 %v2431, %v2463
          %v2471 = vadd.f32 %v2432, %v2463
          %v2472 = vadd.f32 %v2433, %v2463
          %v2473 = vadd.f32 %v2434, %v2463
          %v2474 = vadd.f32 %v2435, %v2463
          %v2475 = vadd.f32 %v2436, %v2463
          %v2476 = vadd.f32 %v2437, %v2463
          %v2477 = vadd.f32 %v2438, %v2463
          %v2478 = vadd.f32 %v2439, %v2463
          %v2479 = vadd.f32 %v2440, %v2463
          %v2480 = vadd.f32 %v2441, %v2463
          %v2481 = vadd.f32 %v2442, %v2463
          %v2482 = vadd.f32 %v2443, %v2463
          %v2483 = vadd.f32 %v2444, %v2463
          %v2484 = vadd.f32 %v2445, %v2463
          %v2485 = vadd.f32 %v2446, %v2463
          %v2486 = vadd.f32 %v2447, %v2463
          %v2487 = vadd.f32 %v2448, %v2463
          %v2488 = vadd.f32 %v2449, %v2463
          %v2489 = vadd.f32 %v2450, %v2463
          %v2490 = vadd.f32 %v2451, %v2463
          %v2491 = vadd.f32 %v2452, %v2463
          %v2492 = vadd.f32 %v2453, %v2463
          %v2493 = vadd.f32 %v2454, %v2463
          %v2494 = vadd.f32 %v2455, %v2463
          %v2495 = vadd.f32 %v2456, %v2463
          %v2496 = vadd.f32 %v2457, %v2463
          %s2497 = scalar_lea.vmem %s411, %s424 [#allocation16]
          %2498 = vst [vmem:[%s2497] sm:$0xff] %v2465
          %2499 = vst [vmem:[%s2497 + $0x8] sm:$0xff] %v2466
          %2500 = vst [vmem:[%s2497 + $0x10] sm:$0xff] %v2467
          %2501 = vst [vmem:[%s2497 + $0x18] sm:$0xff] %v2468
          %2502 = vst [vmem:[%s2497 + $0x20] sm:$0xff] %v2469
          %2503 = vst [vmem:[%s2497 + $0x28] sm:$0xff] %v2470
          %2504 = vst [vmem:[%s2497 + $0x30] sm:$0xff] %v2471
          %2505 = vst [vmem:[%s2497 + $0x38] sm:$0xff] %v2472
          %2506 = vst [vmem:[%s2497 + $0x40] sm:$0xff] %v2473
          %2507 = vst [vmem:[%s2497 + $0x48] sm:$0xff] %v2474
          %2508 = vst [vmem:[%s2497 + $0x50] sm:$0xff] %v2475
          %2509 = vst [vmem:[%s2497 + $0x58] sm:$0xff] %v2476
          %2510 = vst [vmem:[%s2497 + $0x60] sm:$0xff] %v2477
          %2511 = vst [vmem:[%s2497 + $0x68] sm:$0xff] %v2478
          %2512 = vst [vmem:[%s2497 + $0x70] sm:$0xff] %v2479
          %2513 = vst [vmem:[%s2497 + $0x78] sm:$0xff] %v2480
          %2514 = vst [vmem:[%s2497 + $0x80] sm:$0xff] %v2481
          %2515 = vst [vmem:[%s2497 + $0x88] sm:$0xff] %v2482
          %2516 = vst [vmem:[%s2497 + $0x90] sm:$0xff] %v2483
          %2517 = vst [vmem:[%s2497 + $0x98] sm:$0xff] %v2484
          %2518 = vst [vmem:[%s2497 + $0xa0] sm:$0xff] %v2485
          %2519 = vst [vmem:[%s2497 + $0xa8] sm:$0xff] %v2486
          %2520 = vst [vmem:[%s2497 + $0xb0] sm:$0xff] %v2487
          %2521 = vst [vmem:[%s2497 + $0xb8] sm:$0xff] %v2488
          %2522 = vst [vmem:[%s2497 + $0xc0] sm:$0xff] %v2489
          %2523 = vst [vmem:[%s2497 + $0xc8] sm:$0xff] %v2490
          %2524 = vst [vmem:[%s2497 + $0xd0] sm:$0xff] %v2491
          %2525 = vst [vmem:[%s2497 + $0xd8] sm:$0xff] %v2492
          %2526 = vst [vmem:[%s2497 + $0xe0] sm:$0xff] %v2493
          %2527 = vst [vmem:[%s2497 + $0xe8] sm:$0xff] %v2494
          %2528 = vst [vmem:[%s2497 + $0xf0] sm:$0xff] %v2495
          %2529 = vst [vmem:[%s2497 + $0xf8] sm:$0xff] %v2496
          %v2530 = vpack.c.bf16 %v2466, %v2465
          %v2531 = vpack.c.bf16 %v2468, %v2467
          %v2532 = vpack.c.bf16 %v2470, %v2469
          %v2533 = vpack.c.bf16 %v2472, %v2471
          %v2534 = vpack.c.bf16 %v2474, %v2473
          %v2535 = vpack.c.bf16 %v2476, %v2475
          %v2536 = vpack.c.bf16 %v2478, %v2477
          %v2537 = vpack.c.bf16 %v2480, %v2479
          %v2538 = vpack.c.bf16 %v2482, %v2481
          %v2539 = vpack.c.bf16 %v2484, %v2483
          %v2540 = vpack.c.bf16 %v2486, %v2485
          %v2541 = vpack.c.bf16 %v2488, %v2487
          %v2542 = vpack.c.bf16 %v2490, %v2489
          %v2543 = vpack.c.bf16 %v2492, %v2491
          %v2544 = vpack.c.bf16 %v2494, %v2493
          %v2545 = vpack.c.bf16 %v2496, %v2495
          %v2562 = vunpack.c.l.b16 %v2530
          %v2563 = vunpack.c.h.b16 %v2530
          %v2564 = vunpack.c.l.b16 %v2531
          %v2565 = vunpack.c.h.b16 %v2531
          %v2566 = vunpack.c.l.b16 %v2532
          %v2567 = vunpack.c.h.b16 %v2532
          %v2568 = vunpack.c.l.b16 %v2533
          %v2569 = vunpack.c.h.b16 %v2533
          %v2570 = vunpack.c.l.b16 %v2534
          %v2571 = vunpack.c.h.b16 %v2534
          %v2572 = vunpack.c.l.b16 %v2535
          %v2573 = vunpack.c.h.b16 %v2535
          %v2574 = vunpack.c.l.b16 %v2536
          %v2575 = vunpack.c.h.b16 %v2536
          %v2576 = vunpack.c.l.b16 %v2537
          %v2577 = vunpack.c.h.b16 %v2537
          %v2578 = vunpack.c.l.b16 %v2538
          %v2579 = vunpack.c.h.b16 %v2538
          %v2580 = vunpack.c.l.b16 %v2539
          %v2581 = vunpack.c.h.b16 %v2539
          %v2582 = vunpack.c.l.b16 %v2540
          %v2583 = vunpack.c.h.b16 %v2540
          %v2584 = vunpack.c.l.b16 %v2541
          %v2585 = vunpack.c.h.b16 %v2541
          %v2586 = vunpack.c.l.b16 %v2542
          %v2587 = vunpack.c.h.b16 %v2542
          %v2588 = vunpack.c.l.b16 %v2543
          %v2589 = vunpack.c.h.b16 %v2543
          %v2590 = vunpack.c.l.b16 %v2544
          %v2591 = vunpack.c.h.b16 %v2544
          %v2592 = vunpack.c.l.b16 %v2545
          %v2593 = vunpack.c.h.b16 %v2545
          %v2594 = vpack.c.b16 %v2562, %v2562
          %v2595 = vpack.c.b16 %v2563, %v2563
          %v2596 = vpack.c.b16 %v2564, %v2564
          %v2597 = vpack.c.b16 %v2565, %v2565
          %v2598 = vpack.c.b16 %v2566, %v2566
          %v2599 = vpack.c.b16 %v2567, %v2567
          %v2600 = vpack.c.b16 %v2568, %v2568
          %v2601 = vpack.c.b16 %v2569, %v2569
          %v2602 = vpack.c.b16 %v2570, %v2570
          %v2603 = vpack.c.b16 %v2571, %v2571
          %v2604 = vpack.c.b16 %v2572, %v2572
          %v2605 = vpack.c.b16 %v2573, %v2573
          %v2606 = vpack.c.b16 %v2574, %v2574
          %v2607 = vpack.c.b16 %v2575, %v2575
          %v2608 = vpack.c.b16 %v2576, %v2576
          %v2609 = vpack.c.b16 %v2577, %v2577
          %v2610 = vpack.c.b16 %v2578, %v2578
          %v2611 = vpack.c.b16 %v2579, %v2579
          %v2612 = vpack.c.b16 %v2580, %v2580
          %v2613 = vpack.c.b16 %v2581, %v2581
          %v2614 = vpack.c.b16 %v2582, %v2582
          %v2615 = vpack.c.b16 %v2583, %v2583
          %v2616 = vpack.c.b16 %v2584, %v2584
          %v2617 = vpack.c.b16 %v2585, %v2585
          %v2618 = vpack.c.b16 %v2586, %v2586
          %v2619 = vpack.c.b16 %v2587, %v2587
          %v2620 = vpack.c.b16 %v2588, %v2588
          %v2621 = vpack.c.b16 %v2589, %v2589
          %v2622 = vpack.c.b16 %v2590, %v2590
          %v2623 = vpack.c.b16 %v2591, %v2591
          %v2624 = vpack.c.b16 %v2592, %v2592
          %v2625 = vpack.c.b16 %v2593, %v2593
          %s2658 = sshra.s32 %s424, 3
          %s2659 = sand.u32 %s424, 7
          %s2660 = smul.addr %s2658, 4
          %s2661 = scalar_lea.vmem [#allocation2], %s2660
          %2662 = vst [vmem:[%s2661] sm:$0xf] %v2594
          %2663 = vst [vmem:[%s2661 + $0x4] sm:$0xf] %v2595
          %2664 = vst [vmem:[%s2661 + $0x8] sm:$0xf] %v2596
          %2665 = vst [vmem:[%s2661 + $0xc] sm:$0xf] %v2597
          %2666 = vst [vmem:[%s2661 + $0x10] sm:$0xf] %v2598
          %2667 = vst [vmem:[%s2661 + $0x14] sm:$0xf] %v2599
          %2668 = vst [vmem:[%s2661 + $0x18] sm:$0xf] %v2600
          %2669 = vst [vmem:[%s2661 + $0x1c] sm:$0xf] %v2601
          %2670 = vst [vmem:[%s2661 + $0x20] sm:$0xf] %v2602
          %2671 = vst [vmem:[%s2661 + $0x24] sm:$0xf] %v2603
          %2672 = vst [vmem:[%s2661 + $0x28] sm:$0xf] %v2604
          %2673 = vst [vmem:[%s2661 + $0x2c] sm:$0xf] %v2605
          %2674 = vst [vmem:[%s2661 + $0x30] sm:$0xf] %v2606
          %2675 = vst [vmem:[%s2661 + $0x34] sm:$0xf] %v2607
          %2676 = vst [vmem:[%s2661 + $0x38] sm:$0xf] %v2608
          %2677 = vst [vmem:[%s2661 + $0x3c] sm:$0xf] %v2609
          %2678 = vst [vmem:[%s2661 + $0x40] sm:$0xf] %v2610
          %2679 = vst [vmem:[%s2661 + $0x44] sm:$0xf] %v2611
          %2680 = vst [vmem:[%s2661 + $0x48] sm:$0xf] %v2612
          %2681 = vst [vmem:[%s2661 + $0x4c] sm:$0xf] %v2613
          %2682 = vst [vmem:[%s2661 + $0x50] sm:$0xf] %v2614
          %2683 = vst [vmem:[%s2661 + $0x54] sm:$0xf] %v2615
          %2684 = vst [vmem:[%s2661 + $0x58] sm:$0xf] %v2616
          %2685 = vst [vmem:[%s2661 + $0x5c] sm:$0xf] %v2617
          %2686 = vst [vmem:[%s2661 + $0x60] sm:$0xf] %v2618
          %2687 = vst [vmem:[%s2661 + $0x64] sm:$0xf] %v2619
          %2688 = vst [vmem:[%s2661 + $0x68] sm:$0xf] %v2620
          %2689 = vst [vmem:[%s2661 + $0x6c] sm:$0xf] %v2621
          %2690 = vst [vmem:[%s2661 + $0x70] sm:$0xf] %v2622
          %2691 = vst [vmem:[%s2661 + $0x74] sm:$0xf] %v2623
          %2692 = vst [vmem:[%s2661 + $0x78] sm:$0xf] %v2624
          %2693 = vst [vmem:[%s2661 + $0x7c] sm:$0xf] %v2625
        $region84: #{tpu_custom_call.1} parent=43 // pred_fallthru
          _
        %s2694 = sand.u32 %s198, 1
        %s2695 = scalar_lea.sflag [#allocation9], %s2694
        %s2696 = sand.u32 %s198, 1
        %s2697 = smul.addr %s2696, 512
        %s2698 = scalar_lea.vmem [#allocation16], %s2697
        %s2699 = sand.u32 %s224, 1
        %s2700 = scalar_lea.sflag [#allocation18], %s2699
        %s2701 = sand.u32 %s224, 1
        %s2702 = smul.addr %s2701, 8
        %s2703 = scalar_lea.vmem [#allocation17], %s2702
        // Predicated region
        $region85: #{tpu_custom_call.1} parent=43 // pred_check
          %p2704 = pneg %p208
        $region86: #{tpu_custom_call.1} parent=43 // pred_check_branch
          %2706 = sbr.rel (%p2704) target = $region88
        $region87: #{tpu_custom_call.1} parent=43 // pred_region
          %s2708 = ssub.s32 8192, 8192
          %2709 = vsyncadd %s2695, %s2708
          %s2710 = smul.addr %s35, 128
          %s2711 = scalar_lea.hbm %s6, %s2710
          %s2712 = sshll.u32 %s2698, 4
          %s2713 = int_to_ptr.vmem [resolvable:$true] %s2712
          %2718 = dma.vmem_to_hbm [thread:$0]  %s2713, 8192, %s2711, %s2695, 128, 256, 8
        $region88: #{tpu_custom_call.1} parent=43 // pred_fallthru
          _
        // Predicated region
        $region89: #{tpu_custom_call.1} parent=43 // pred_check
          %p2719 = pneg %p234
        $region90: #{tpu_custom_call.1} parent=43 // pred_check_branch
          %2721 = sbr.rel (%p2719) target = $region92
        $region91: #{tpu_custom_call.1} parent=43 // pred_region
          %s2723 = ssub.s32 128, 128
          %2724 = vsyncadd %s2700, %s2723
          %s2725 = smul.addr %s35, 128
          %s2726 = scalar_lea.hbm %s7, %s2725
          %s2728 = sshll.u32 %s2703, 4
          %s2729 = int_to_ptr.vmem [resolvable:$true] %s2728
          %2731 = dma.vmem_to_hbm [thread:$0]  %s2729, 128, %s2726, %s2700
        $region92: #{tpu_custom_call.1} parent=43 // pred_fallthru
          _
      $region44: #{tpu_custom_call.1} parent=5 // pred_fallthru
        _
      %p2732 = scmp.le.s32.totalorder 2, %s25
      // Predicated region
      $region93: #{tpu_custom_call.1} parent=5 // pred_check
        %p2733 = pneg %p2732
      $region94: #{tpu_custom_call.1} parent=5 // pred_check_branch
        %2735 = sbr.rel (%p2733) target = $region96
      $region95: #{tpu_custom_call.1} parent=5 // pred_region
        %s2736 = ssub.s32 %s25, 2
        // Predicated region
        $region97: #{tpu_custom_call.1} parent=95 // pred_check
          %p2737 = pneg %p214
        $region98: #{tpu_custom_call.1} parent=95 // pred_check_branch
          %2739 = sbr.rel (%p2737) target = $region100
        $region99: #{tpu_custom_call.1} parent=95 // pred_region
          %s2740 = sand.u32 %s199, 1
          %s2741 = scalar_lea.sflag [#allocation9], %s2740
          %s2742 = sand.u32 %s199, 1
          %s2743 = smul.addr %s2742, 512
          %s2744 = scalar_lea.vmem [#allocation16], %s2743
          %2745 = dma.done %s2741, 8192
        $region100: #{tpu_custom_call.1} parent=95 // pred_fallthru
          _
        // Predicated region
        $region101: #{tpu_custom_call.1} parent=95 // pred_check
          %p2746 = pneg %p240
        $region102: #{tpu_custom_call.1} parent=95 // pred_check_branch
          %2748 = sbr.rel (%p2746) target = $region104
        $region103: #{tpu_custom_call.1} parent=95 // pred_region
          %s2749 = sand.u32 %s225, 1
          %s2750 = scalar_lea.sflag [#allocation18], %s2749
          %s2751 = sand.u32 %s225, 1
          %s2752 = smul.addr %s2751, 8
          %s2753 = scalar_lea.vmem [#allocation17], %s2752
          %2754 = dma.done %s2750, 128
        $region104: #{tpu_custom_call.1} parent=95 // pred_fallthru
          _
      $region96: #{tpu_custom_call.1} parent=5 // pred_fallthru
        _
    $region6: #{tpu_custom_call.1} parent=1 // loop_footer
      %s29 = sadd.s32 1, %s25
    $region7: #{tpu_custom_call.1} parent=1 // loop_footer_branch
      %24 = sbr.rel target = $region3
    $region8: #{tpu_custom_call.1} parent=1 // loop_exit
      _
    %2755 = vsyncpa [#allocation8], 1
    %s2756 = scalar_lea.sflag [#allocation8], 1
    %2757 = vsyncpa %s2756, 1
    %2758 = vsyncpa [#allocation11], 1
    %2759 = vsyncpa [#allocation14], 1
    %s2760 = scalar_lea.sflag [#allocation14], 1
    %2761 = vsyncpa %s2760, 1
    %2762 = vsyncpa [#allocation9], 1
    %s2763 = scalar_lea.sflag [#allocation9], 1
    %2764 = vsyncpa %s2763, 1
    %2765 = vsyncpa [#allocation18], 1
    %s2766 = scalar_lea.sflag [#allocation18], 1
    %2767 = vsyncpa %s2766, 1

</llo_original>
